<compile_context>
chip_gen: v5e
topology: v5e:2x2
jax: 0.10.0
libtpu: 0.0.40
codegen_flags: <defaults>
</compile_context>

<pallas_src>
import numpy as np
import jax
import jax.numpy as jnp
from jax.experimental import pallas as pl
from jax.experimental.pallas import tpu as pltpu

# nn.BatchNorm1d(out_feat, 0.8): the second positional arg is EPS (not
# momentum) -> eps = 0.8, default momentum.  Faithfully replicated.
_BN_EPS = 0.8


def _round_up(x, m):
    return ((x + m - 1) // m) * m


def _leaky_relu(x, negative_slope=0.2):
    return jnp.where(x >= 0, x, negative_slope * x)


def _gen_mlp_kernel(x_ref,
                    w1_ref, b1_ref,
                    w2_ref, b2_ref,
                    w3_ref, b3_ref,
                    w4_ref, b4_ref,
                    w5_ref, b5_ref,
                    o_ref):
    """Fused 5-layer generator MLP on one (TB, ...) batch tile.

    Weights arrive pre-folded (eval-mode BatchNorm merged into the Linear),
    K/N-padded and in bf16; matmuls accumulate in f32 on the MXU, elementwise
    math (LeakyReLU, bias, tanh) stays f32 on the VPU/EUP.
    """
    f32 = jnp.float32
    bf16 = jnp.bfloat16

    # Layer 1: single K=128 matmul over the zero-padded cat((labels, noise)).
    h = (jnp.dot(x_ref[...].astype(bf16), w1_ref[...], preferred_element_type=f32)
         + b1_ref[...])
    h = _leaky_relu(h)

    # Layers 2-4: Linear + (folded eval-mode BatchNorm) + LeakyReLU(0.2)
    for w_ref, b_ref in ((w2_ref, b2_ref), (w3_ref, b3_ref), (w4_ref, b4_ref)):
        h = jnp.dot(h.astype(bf16), w_ref[...], preferred_element_type=f32) + b_ref[...]
        h = _leaky_relu(h)

    # Output layer: Linear(1024, prod(img_shape)) + Tanh (out dim padded to
    # a multiple of 128 lanes at init -> unmasked lane-dense store).
    out = jnp.dot(h.astype(bf16), w5_ref[...], preferred_element_type=f32) + b5_ref[...]
    o_ref[...] = jnp.tanh(out).astype(o_ref.dtype)
    # TODO(synk): for very large img_shape (e.g. 3x64x64 -> 12K-wide w5) on
    # v7x's 64 MiB VMEM, tile the output-layer N dimension (column blocks of
    # w5/b5/o) instead of keeping the whole w5 + (TB, out_pad) tile resident.


def init_generator_params(key, latent_dim, n_tags, img_shape):
    """Raw PyTorch-style f32 parameters. Linear: U(+/-1/sqrt(fan_in)); BatchNorm
    running stats / affine randomized so the eval-mode BN path is non-trivial."""
    out_dim = int(np.prod(img_shape))
    dims = [(latent_dim + n_tags, 128), (128, 256), (256, 512), (512, 1024),
            (1024, out_dim)]
    params = {}
    for i, (fan_in, fan_out) in enumerate(dims, start=1):
        key, kw, kb = jax.random.split(key, 3)
        bound = 1.0 / np.sqrt(fan_in)
        params[f"w{i}"] = jax.random.uniform(kw, (fan_in, fan_out), jnp.float32,
                                             -bound, bound)
        params[f"b{i}"] = jax.random.uniform(kb, (fan_out,), jnp.float32,
                                             -bound, bound)
    for i in (2, 3, 4):
        fan_out = dims[i - 1][1]
        key, kg, kbe, km, kv = jax.random.split(key, 5)
        params[f"bn{i}_gamma"] = jax.random.uniform(kg, (fan_out,), jnp.float32, 0.8, 1.2)
        params[f"bn{i}_beta"] = jax.random.uniform(kbe, (fan_out,), jnp.float32, -0.1, 0.1)
        params[f"bn{i}_mean"] = jax.random.uniform(km, (fan_out,), jnp.float32, -0.1, 0.1)
        params[f"bn{i}_var"] = jax.random.uniform(kv, (fan_out,), jnp.float32, 0.5, 1.5)
    return params


def prepare_inference_params(raw, n_tags, latent_dim):
    """One-time weight prep (kept OUT of the per-call path):
      * zero-pad w1 rows (K side) to a multiple of 128 so layer 1 is a single
        well-shaped K=128 matmul over the cat((labels, noise)) input,
      * fold eval-mode BatchNorm1d into the preceding Linear (w*s, (b-mu)*s+beta),
      * cast weights to bf16 (MXU-native), keep biases f32,
      * zero-pad the output feature dim up to a multiple of 128 (lane-dense store).
    """
    # TODO(synk): training-mode BatchNorm (batch statistics) is not implemented;
    # only eval-mode running-stats normalization is folded into the Linear.
    p = {}
    in_dim = n_tags + latent_dim
    k_pad = _round_up(in_dim, 128)
    w1 = raw["w1"]
    if k_pad != in_dim:
        w1 = jnp.pad(w1, ((0, k_pad - in_dim), (0, 0)))
    p["w1"] = w1.astype(jnp.bfloat16)
    p["b1"] = raw["b1"].reshape(1, -1).astype(jnp.float32)
    for i in (2, 3, 4):
        s = raw[f"bn{i}_gamma"] / jnp.sqrt(raw[f"bn{i}_var"] + _BN_EPS)
        p[f"w{i}"] = (raw[f"w{i}"] * s[None, :]).astype(jnp.bfloat16)
        p[f"b{i}"] = ((raw[f"b{i}"] - raw[f"bn{i}_mean"]) * s
                      + raw[f"bn{i}_beta"]).reshape(1, -1).astype(jnp.float32)
    out_dim = raw["w5"].shape[1]
    out_pad = _round_up(out_dim, 128)
    w5, b5 = raw["w5"], raw["b5"]
    if out_pad != out_dim:
        w5 = jnp.pad(w5, ((0, 0), (0, out_pad - out_dim)))
        b5 = jnp.pad(b5, (0, out_pad - out_dim))
    p["w5"] = w5.astype(jnp.bfloat16)
    p["b5"] = b5.reshape(1, -1).astype(jnp.float32)
    return p


def _choose_tb(B):
    """Batch tile choice:
      * big tiles (<=1024) amortize the ~0.35us per-grid-step pipeline overhead,
      * >=2 grid steps for mid/large B so v7x's two TensorCores both get work
        under dimension_semantics=('parallel',),
      * 16-sublane rounding (bf16 LHS packs 16 rows per vreg) and minimal
        batch padding (B=300 -> tb=160 / pad 20 rows, not tb=256 / pad 212)."""
    if B <= 128:
        return _round_up(B, 16)
    n_tiles = max(2, pl.cdiv(B, 1024))
    return _round_up(pl.cdiv(B, n_tiles), 16)


def generator_forward(noise, labels, params, img_shape):
    """noise: (B, latent_dim) f32, labels: (B, n_tags) f32 -> (B, *img_shape) f32."""
    B, latent_dim = noise.shape
    n_tags = labels.shape[1]
    in_dim = n_tags + latent_dim
    out_dim = int(np.prod(img_shape))
    k_pad = params["w1"].shape[0]
    out_pad = params["w5"].shape[1]

    tb = _choose_tb(B)
    b_pad = _round_up(B, tb)

    # cat((labels, noise), -1) + K/batch zero-pad: a (B, in_dim) f32 copy is
    # negligible HBM traffic and buys a single clean K=128 layer-1 matmul.
    x = jnp.concatenate([labels, noise], axis=-1)
    x = jnp.pad(x, ((0, b_pad - B), (0, k_pad - in_dim)))

    weight_args = (params["w1"], params["b1"],
                   params["w2"], params["b2"],
                   params["w3"], params["b3"],
                   params["w4"], params["b4"],
                   params["w5"], params["b5"])

    def resident(arr):
        # Whole array as one block, same block every grid step, and SINGLE
        # buffered: constant index_map means it is fetched exactly once, so
        # the default double buffer would only double weight VMEM footprint.
        return pl.BlockSpec(arr.shape, lambda i: (0, 0),
                            pipeline_mode=pl.Buffered(1))

    in_specs = ([pl.BlockSpec((tb, k_pad), lambda i: (i, 0))]
                + [resident(a) for a in weight_args])
    out_specs = pl.BlockSpec((tb, out_pad), lambda i: (i, 0))

    # Explicit VMEM budget: weights x 1 buffer + double-buffered input/output
    # tiles + live f32/bf16 activations, ~25% headroom; clamp to [16, 64] MiB
    # so it stays within v7x's physical per-TC VMEM.
    weight_bytes = sum(int(a.size) * a.dtype.itemsize for a in weight_args)
    in_tile_bytes = tb * k_pad * 4
    out_tile_bytes = tb * out_pad * 4
    live_act_bytes = tb * (128 + 256 + 512 + 1024 + 1024 + out_pad) * 4
    vmem_budget = int(1.25 * (weight_bytes + 2 * in_tile_bytes
                              + 2 * out_tile_bytes + live_act_bytes))
    vmem_limit = min(max(vmem_budget, 16 << 20), 64 << 20)

    flops = 2 * b_pad * (k_pad * 128 + 128 * 256 + 256 * 512 + 512 * 1024
                         + 1024 * out_pad)
    act_bytes = 4 * b_pad * (k_pad + out_pad)

    out = pl.pallas_call(
        _gen_mlp_kernel,
        out_shape=jax.ShapeDtypeStruct((b_pad, out_pad), jnp.float32),
        grid_spec=pltpu.PrefetchScalarGridSpec(
            num_scalar_prefetch=0,
            grid=(b_pad // tb,),
            in_specs=in_specs,
            out_specs=out_specs),
        compiler_params=pltpu.CompilerParams(
            dimension_semantics=("parallel",),
            vmem_limit_bytes=vmem_limit),
        cost_estimate=pl.CostEstimate(
            flops=flops,
            transcendentals=b_pad * out_pad,
            bytes_accessed=weight_bytes + act_bytes),
    )(x, *weight_args)

    return out[:B, :out_dim].reshape(B, *img_shape)


def _reference_forward(noise, labels, raw, img_shape):
    """Pure-JAX f32 reference with explicit eval-mode BatchNorm (ground truth)."""
    B = noise.shape[0]
    h = jnp.concatenate([labels, noise], axis=-1)
    h = _leaky_relu(h @ raw["w1"] + raw["b1"])
    for i in (2, 3, 4):
        z = h @ raw[f"w{i}"] + raw[f"b{i}"]
        z = ((z - raw[f"bn{i}_mean"]) / jnp.sqrt(raw[f"bn{i}_var"] + _BN_EPS)
             * raw[f"bn{i}_gamma"] + raw[f"bn{i}_beta"])
        h = _leaky_relu(z)
    out = jnp.tanh(h @ raw["w5"] + raw["b5"])
    return out.reshape(B, *img_shape)


if __name__ == "__main__":
    key = jax.random.PRNGKey(0)
    k_noise, k_lab, k_par = jax.random.split(key, 3)

    # Small, module-consistent shapes.
    B = 2
    latent_dim = 64
    n_tags = 10
    img_shape = (1, 16, 16)   # C, H, W -> prod = 256

    noise = jax.random.normal(k_noise, (B, latent_dim), jnp.float32)
    labels = jax.random.normal(k_lab, (B, n_tags), jnp.float32)

    raw_params = init_generator_params(k_par, latent_dim, n_tags, img_shape)
    infer_params = prepare_inference_params(raw_params, n_tags, latent_dim)

    img = generator_forward(noise, labels, infer_params, img_shape)
    img = jax.block_until_ready(img)

    ref = _reference_forward(noise, labels, raw_params, img_shape)
    # bf16 MXU operands vs f32 reference: loose-but-meaningful tolerance on a
    # tanh-bounded output (intentional precision deviation).
    np.testing.assert_allclose(np.asarray(img), np.asarray(ref),
                               rtol=5e-2, atol=5e-2)
    assert img.shape == (B,) + img_shape
    print("KERNEL_OK")
</pallas_src>

<mosaic_0001>
module attributes {stable_mosaic.version = 11 : i64} {
  func.func @_gen_mlp_kernel(%arg0: i32, %arg1: memref<16x128xf32, #tpu.memory_space<vmem>>, %arg2: memref<128x128xbf16, #tpu.memory_space<vmem>>, %arg3: memref<1x128xf32, #tpu.memory_space<vmem>>, %arg4: memref<128x256xbf16, #tpu.memory_space<vmem>>, %arg5: memref<1x256xf32, #tpu.memory_space<vmem>>, %arg6: memref<256x512xbf16, #tpu.memory_space<vmem>>, %arg7: memref<1x512xf32, #tpu.memory_space<vmem>>, %arg8: memref<512x1024xbf16, #tpu.memory_space<vmem>>, %arg9: memref<1x1024xf32, #tpu.memory_space<vmem>>, %arg10: memref<1024x256xbf16, #tpu.memory_space<vmem>>, %arg11: memref<1x256xf32, #tpu.memory_space<vmem>>, %arg12: memref<16x256xf32, #tpu.memory_space<vmem>>) attributes {dimension_semantics = [#tpu.dimension_semantics<parallel>], iteration_bounds = array<i64: 1>, scalar_prefetch = 0 : i64, scratch_operands = 0 : i64, tpu.core_type = #tpu.core_type<tc>, window_params = [{transform_indices = @transform_0, window_bounds = array<i64: 16, 128>}, {pipeline_mode = #tpu.pipeline_mode<synchronous>, transform_indices = @transform_1, window_bounds = array<i64: 128, 128>}, {pipeline_mode = #tpu.pipeline_mode<synchronous>, transform_indices = @transform_2, window_bounds = array<i64: 1, 128>}, {pipeline_mode = #tpu.pipeline_mode<synchronous>, transform_indices = @transform_3, window_bounds = array<i64: 128, 256>}, {pipeline_mode = #tpu.pipeline_mode<synchronous>, transform_indices = @transform_4, window_bounds = array<i64: 1, 256>}, {pipeline_mode = #tpu.pipeline_mode<synchronous>, transform_indices = @transform_5, window_bounds = array<i64: 256, 512>}, {pipeline_mode = #tpu.pipeline_mode<synchronous>, transform_indices = @transform_6, window_bounds = array<i64: 1, 512>}, {pipeline_mode = #tpu.pipeline_mode<synchronous>, transform_indices = @transform_7, window_bounds = array<i64: 512, 1024>}, {pipeline_mode = #tpu.pipeline_mode<synchronous>, transform_indices = @transform_8, window_bounds = array<i64: 1, 1024>}, {pipeline_mode = #tpu.pipeline_mode<synchronous>, transform_indices = @transform_9, window_bounds = array<i64: 1024, 256>}, {pipeline_mode = #tpu.pipeline_mode<synchronous>, transform_indices = @transform_10, window_bounds = array<i64: 1, 256>}, {transform_indices = @transform_11, window_bounds = array<i64: 16, 256>}]} {
    %c0 = arith.constant 0 : index
    %c0_0 = arith.constant 0 : index
    %0 = vector.load %arg1[%c0, %c0_0] : memref<16x128xf32, #tpu.memory_space<vmem>>, vector<16x128xf32>
    %1 = arith.truncf %0 : vector<16x128xf32> to vector<16x128xbf16>
    %c0_1 = arith.constant 0 : index
    %c0_2 = arith.constant 0 : index
    %2 = vector.load %arg2[%c0_1, %c0_2] : memref<128x128xbf16, #tpu.memory_space<vmem>>, vector<128x128xbf16>
    %cst = arith.constant dense<0.000000e+00> : vector<16x128xf32>
    %3 = tpu.matmul %1, %2, %cst {dimension_numbers = #tpu.dot_dimension_numbers<[1], [0], [0], [1], [0, 0, 1, 1], [], []>} : vector<16x128xbf16>, vector<128x128xbf16>, vector<16x128xf32> -> vector<16x128xf32>
    %c0_3 = arith.constant 0 : index
    %c0_4 = arith.constant 0 : index
    %4 = vector.load %arg3[%c0_3, %c0_4] : memref<1x128xf32, #tpu.memory_space<vmem>>, vector<1x128xf32>
    %5 = vector.broadcast %4 : vector<1x128xf32> to vector<16x128xf32>
    %6 = arith.addf %3, %5 : vector<16x128xf32>
    %cst_5 = arith.constant 0.000000e+00 : f32
    %7 = vector.broadcast %cst_5 : f32 to vector<16x128xf32>
    %8 = arith.cmpf oge, %6, %7 : vector<16x128xf32>
    %cst_6 = arith.constant 2.000000e-01 : f32
    %9 = vector.broadcast %cst_6 : f32 to vector<16x128xf32>
    %10 = arith.mulf %9, %6 : vector<16x128xf32>
    %11 = arith.select %8, %6, %10 : vector<16x128xi1>, vector<16x128xf32>
    %12 = arith.truncf %11 : vector<16x128xf32> to vector<16x128xbf16>
    %c0_7 = arith.constant 0 : index
    %c0_8 = arith.constant 0 : index
    %13 = vector.load %arg4[%c0_7, %c0_8] : memref<128x256xbf16, #tpu.memory_space<vmem>>, vector<128x256xbf16>
    %cst_9 = arith.constant dense<0.000000e+00> : vector<16x256xf32>
    %14 = tpu.matmul %12, %13, %cst_9 {dimension_numbers = #tpu.dot_dimension_numbers<[1], [0], [0], [1], [0, 0, 1, 1], [], []>} : vector<16x128xbf16>, vector<128x256xbf16>, vector<16x256xf32> -> vector<16x256xf32>
    %c0_10 = arith.constant 0 : index
    %c0_11 = arith.constant 0 : index
    %15 = vector.load %arg5[%c0_10, %c0_11] : memref<1x256xf32, #tpu.memory_space<vmem>>, vector<1x256xf32>
    %16 = vector.broadcast %15 : vector<1x256xf32> to vector<16x256xf32>
    %17 = arith.addf %14, %16 : vector<16x256xf32>
    %cst_12 = arith.constant 0.000000e+00 : f32
    %18 = vector.broadcast %cst_12 : f32 to vector<16x256xf32>
    %19 = arith.cmpf oge, %17, %18 : vector<16x256xf32>
    %cst_13 = arith.constant 2.000000e-01 : f32
    %20 = vector.broadcast %cst_13 : f32 to vector<16x256xf32>
    %21 = arith.mulf %20, %17 : vector<16x256xf32>
    %22 = arith.select %19, %17, %21 : vector<16x256xi1>, vector<16x256xf32>
    %23 = arith.truncf %22 : vector<16x256xf32> to vector<16x256xbf16>
    %c0_14 = arith.constant 0 : index
    %c0_15 = arith.constant 0 : index
    %24 = vector.load %arg6[%c0_14, %c0_15] : memref<256x512xbf16, #tpu.memory_space<vmem>>, vector<256x512xbf16>
    %cst_16 = arith.constant dense<0.000000e+00> : vector<16x512xf32>
    %25 = tpu.matmul %23, %24, %cst_16 {dimension_numbers = #tpu.dot_dimension_numbers<[1], [0], [0], [1], [0, 0, 1, 1], [], []>} : vector<16x256xbf16>, vector<256x512xbf16>, vector<16x512xf32> -> vector<16x512xf32>
    %c0_17 = arith.constant 0 : index
    %c0_18 = arith.constant 0 : index
    %26 = vector.load %arg7[%c0_17, %c0_18] : memref<1x512xf32, #tpu.memory_space<vmem>>, vector<1x512xf32>
    %27 = vector.broadcast %26 : vector<1x512xf32> to vector<16x512xf32>
    %28 = arith.addf %25, %27 : vector<16x512xf32>
    %cst_19 = arith.constant 0.000000e+00 : f32
    %29 = vector.broadcast %cst_19 : f32 to vector<16x512xf32>
    %30 = arith.cmpf oge, %28, %29 : vector<16x512xf32>
    %cst_20 = arith.constant 2.000000e-01 : f32
    %31 = vector.broadcast %cst_20 : f32 to vector<16x512xf32>
    %32 = arith.mulf %31, %28 : vector<16x512xf32>
    %33 = arith.select %30, %28, %32 : vector<16x512xi1>, vector<16x512xf32>
    %34 = arith.truncf %33 : vector<16x512xf32> to vector<16x512xbf16>
    %c0_21 = arith.constant 0 : index
    %c0_22 = arith.constant 0 : index
    %35 = vector.load %arg8[%c0_21, %c0_22] : memref<512x1024xbf16, #tpu.memory_space<vmem>>, vector<512x1024xbf16>
    %cst_23 = arith.constant dense<0.000000e+00> : vector<16x1024xf32>
    %36 = tpu.matmul %34, %35, %cst_23 {dimension_numbers = #tpu.dot_dimension_numbers<[1], [0], [0], [1], [0, 0, 1, 1], [], []>} : vector<16x512xbf16>, vector<512x1024xbf16>, vector<16x1024xf32> -> vector<16x1024xf32>
    %c0_24 = arith.constant 0 : index
    %c0_25 = arith.constant 0 : index
    %37 = vector.load %arg9[%c0_24, %c0_25] : memref<1x1024xf32, #tpu.memory_space<vmem>>, vector<1x1024xf32>
    %38 = vector.broadcast %37 : vector<1x1024xf32> to vector<16x1024xf32>
    %39 = arith.addf %36, %38 : vector<16x1024xf32>
    %cst_26 = arith.constant 0.000000e+00 : f32
    %40 = vector.broadcast %cst_26 : f32 to vector<16x1024xf32>
    %41 = arith.cmpf oge, %39, %40 : vector<16x1024xf32>
    %cst_27 = arith.constant 2.000000e-01 : f32
    %42 = vector.broadcast %cst_27 : f32 to vector<16x1024xf32>
    %43 = arith.mulf %42, %39 : vector<16x1024xf32>
    %44 = arith.select %41, %39, %43 : vector<16x1024xi1>, vector<16x1024xf32>
    %45 = arith.truncf %44 : vector<16x1024xf32> to vector<16x1024xbf16>
    %c0_28 = arith.constant 0 : index
    %c0_29 = arith.constant 0 : index
    %46 = vector.load %arg10[%c0_28, %c0_29] : memref<1024x256xbf16, #tpu.memory_space<vmem>>, vector<1024x256xbf16>
    %cst_30 = arith.constant dense<0.000000e+00> : vector<16x256xf32>
    %47 = tpu.matmul %45, %46, %cst_30 {dimension_numbers = #tpu.dot_dimension_numbers<[1], [0], [0], [1], [0, 0, 1, 1], [], []>} : vector<16x1024xbf16>, vector<1024x256xbf16>, vector<16x256xf32> -> vector<16x256xf32>
    %c0_31 = arith.constant 0 : index
    %c0_32 = arith.constant 0 : index
    %48 = vector.load %arg11[%c0_31, %c0_32] : memref<1x256xf32, #tpu.memory_space<vmem>>, vector<1x256xf32>
    %49 = vector.broadcast %48 : vector<1x256xf32> to vector<16x256xf32>
    %50 = arith.addf %47, %49 : vector<16x256xf32>
    %51 = math.tanh %50 : vector<16x256xf32>
    %c0_33 = arith.constant 0 : index
    %c0_34 = arith.constant 0 : index
    %52 = vector.load %arg12[%c0_33, %c0_34] : memref<16x256xf32, #tpu.memory_space<vmem>>, vector<16x256xf32>
    tpu.vector_store %arg12[%c0_33, %c0_34], %51 {strides = array<i32>} : memref<16x256xf32, #tpu.memory_space<vmem>>, vector<16x256xf32>,
    return
  }
  func.func @transform_0(%arg0: i32) -> (i32, i32) {
    %c0_i32 = arith.constant 0 : i32
    %c0_i32_0 = arith.constant 0 : i32
    return %arg0, %c0_i32 : i32, i32
  }
  func.func @transform_1(%arg0: i32) -> (i32, i32) {
    %c0_i32 = arith.constant 0 : i32
    %c0_i32_0 = arith.constant 0 : i32
    %c0_i32_1 = arith.constant 0 : i32
    return %c0_i32, %c0_i32_0 : i32, i32
  }
  func.func @transform_2(%arg0: i32) -> (i32, i32) {
    %c0_i32 = arith.constant 0 : i32
    %c0_i32_0 = arith.constant 0 : i32
    %c0_i32_1 = arith.constant 0 : i32
    return %c0_i32, %c0_i32_0 : i32, i32
  }
  func.func @transform_3(%arg0: i32) -> (i32, i32) {
    %c0_i32 = arith.constant 0 : i32
    %c0_i32_0 = arith.constant 0 : i32
    %c0_i32_1 = arith.constant 0 : i32
    return %c0_i32, %c0_i32_0 : i32, i32
  }
  func.func @transform_4(%arg0: i32) -> (i32, i32) {
    %c0_i32 = arith.constant 0 : i32
    %c0_i32_0 = arith.constant 0 : i32
    %c0_i32_1 = arith.constant 0 : i32
    return %c0_i32, %c0_i32_0 : i32, i32
  }
  func.func @transform_5(%arg0: i32) -> (i32, i32) {
    %c0_i32 = arith.constant 0 : i32
    %c0_i32_0 = arith.constant 0 : i32
    %c0_i32_1 = arith.constant 0 : i32
    return %c0_i32, %c0_i32_0 : i32, i32
  }
  func.func @transform_6(%arg0: i32) -> (i32, i32) {
    %c0_i32 = arith.constant 0 : i32
    %c0_i32_0 = arith.constant 0 : i32
    %c0_i32_1 = arith.constant 0 : i32
    return %c0_i32, %c0_i32_0 : i32, i32
  }
  func.func @transform_7(%arg0: i32) -> (i32, i32) {
    %c0_i32 = arith.constant 0 : i32
    %c0_i32_0 = arith.constant 0 : i32
    %c0_i32_1 = arith.constant 0 : i32
    return %c0_i32, %c0_i32_0 : i32, i32
  }
  func.func @transform_8(%arg0: i32) -> (i32, i32) {
    %c0_i32 = arith.constant 0 : i32
    %c0_i32_0 = arith.constant 0 : i32
    %c0_i32_1 = arith.constant 0 : i32
    return %c0_i32, %c0_i32_0 : i32, i32
  }
  func.func @transform_9(%arg0: i32) -> (i32, i32) {
    %c0_i32 = arith.constant 0 : i32
    %c0_i32_0 = arith.constant 0 : i32
    %c0_i32_1 = arith.constant 0 : i32
    return %c0_i32, %c0_i32_0 : i32, i32
  }
  func.func @transform_10(%arg0: i32) -> (i32, i32) {
    %c0_i32 = arith.constant 0 : i32
    %c0_i32_0 = arith.constant 0 : i32
    %c0_i32_1 = arith.constant 0 : i32
    return %c0_i32, %c0_i32_0 : i32, i32
  }
  func.func @transform_11(%arg0: i32) -> (i32, i32) {
    %c0_i32 = arith.constant 0 : i32
    %c0_i32_0 = arith.constant 0 : i32
    return %arg0, %c0_i32 : i32, i32
  }
}

</mosaic_0001>

<llo_original>
// kernel: tpu_custom_call.1
$region0: #{tpu_custom_call.1}
  #allocation0 [shape = 'u32[]', space=smem, size = 0x4, offset = 0x4, fixed_abs, tag = 'smem constant byte address 0x4 - core index']
  #allocation1 [shape = 'u32[72,128]{1,0:T(1,128)}', space=vmem, size = 0x9000, scoped, tag = 'internal scratch']
  %s0 = inlined_call_operand.hbm [shape: f32[16,128], index: 0, kind: input, shape index: {}]
  %s1 = inlined_call_operand.hbm [shape: bf16[128,128], index: 1, kind: input, shape index: {}]
  %s2 = inlined_call_operand.hbm [shape: f32[1,128], index: 2, kind: input, shape index: {}]
  %s3 = inlined_call_operand.hbm [shape: bf16[128,256], index: 3, kind: input, shape index: {}]
  %s4 = inlined_call_operand.hbm [shape: f32[1,256], index: 4, kind: input, shape index: {}]
  %s5 = inlined_call_operand.hbm [shape: bf16[256,512], index: 5, kind: input, shape index: {}]
  %s6 = inlined_call_operand.vmem [shape: f32[1,512], index: 6, kind: input, shape index: {}]
  %s7 = inlined_call_operand.hbm [shape: bf16[512,1024], index: 7, kind: input, shape index: {}]
  %s8 = inlined_call_operand.hbm [shape: f32[1,1024], index: 8, kind: input, shape index: {}]
  %s9 = inlined_call_operand.hbm [shape: bf16[1024,256], index: 9, kind: input, shape index: {}]
  %s10 = inlined_call_operand.vmem [shape: f32[1,256], index: 10, kind: input, shape index: {}]
  %s11 = inlined_call_operand.hbm [shape: f32[16,256], index: 11, kind: output, shape index: {}]
  %s12 = sld [smem:[#allocation0]]
  $region90: #{tpu_custom_call.1} parent=0
    _
  %s14 = ssub.s32 1, %s12
  %s15 = scalar_select 0, %s14, %s12
  $region1: #{tpu_custom_call.1} parent=0
    #allocation2 [shape = 'u8[8192]{0}', space=vmem, size = 0x2000, scoped, tag = 'input window, operand 0, single buffered']
    #allocation3 [shape = 's32[1]{0}', space=sflag, size = 0x4, scoped, tag = 'scoped memory for tpu_custom_call.1']
    #allocation4 [shape = 's32[1]{0}', space=sflag, size = 0x4, scoped, tag = 'scoped memory for tpu_custom_call.1']
    #allocation5 [shape = 'u8[32768]{0}', space=vmem, size = 0x8000, scoped, tag = 'input window, operand 1, single buffered']
    #allocation6 [shape = 's32[1]{0}', space=sflag, size = 0x4, scoped, tag = 'scoped memory for tpu_custom_call.1']
    #allocation7 [shape = 'u8[512]{0}', space=vmem, size = 0x400, scoped, tag = 'input window, operand 2, single buffered']
    #allocation8 [shape = 'u8[65536]{0}', space=vmem, size = 0x10000, scoped, tag = 'input window, operand 3, single buffered']
    #allocation9 [shape = 's32[1]{0}', space=sflag, size = 0x4, scoped, tag = 'scoped memory for tpu_custom_call.1']
    #allocation10 [shape = 'u8[1024]{0}', space=vmem, size = 0x400, scoped, tag = 'input window, operand 4, single buffered']
    #allocation11 [shape = 'u8[262144]{0}', space=vmem, size = 0x40000, scoped, tag = 'input window, operand 5, single buffered']
    #allocation12 [shape = 's32[1]{0}', space=sflag, size = 0x4, scoped, tag = 'scoped memory for tpu_custom_call.1']
    #allocation13 [shape = 'u8[1048576]{0}', space=vmem, size = 0x100000, scoped, tag = 'input window, operand 7, single buffered']
    #allocation14 [shape = 'u8[4096]{0}', space=vmem, size = 0x1000, scoped, tag = 'input window, operand 8, single buffered']
    #allocation15 [shape = 's32[1]{0}', space=sflag, size = 0x4, scoped, tag = 'scoped memory for tpu_custom_call.1']
    #allocation16 [shape = 'u8[524288]{0}', space=vmem, size = 0x80000, scoped, tag = 'input window, operand 9, single buffered']
    #allocation17 [shape = 'u8[16384]{0}', space=vmem, size = 0x4000, scoped, tag = 'output window, operand 0, single buffered']
    %16 = vsyncpa [#allocation3], 0
    %17 = vsyncpa [#allocation6], 0
    %18 = vsyncpa [#allocation9], 0
    %19 = vsyncpa [#allocation12], 0
    %20 = vsyncpa [#allocation15], 0
    %21 = vsyncpa [#allocation4], 0
    // Predicated region
    $region2: #{tpu_custom_call.1} parent=1 // pred_check
      _
    $region3: #{tpu_custom_call.1} parent=1 // pred_check_branch
      %23 = sbr.rel (0) target = $region5
    $region4: #{tpu_custom_call.1} parent=1 // pred_region
      %25 = vsyncadd [#allocation3], 0
      %s26 = sshll.u32 %s0, 4
      %s27 = int_to_ptr.hbm [resolvable:$true] %s26
      %s28 = sshll.u32 [#allocation2], 4
      %s29 = int_to_ptr.vmem [resolvable:$true] %s28
      %34 = dma.hbm_to_vmem [thread:$0]  %s27, 256, %s29, [#allocation3], 128, 128, 8
    $region5: #{tpu_custom_call.1} parent=1 // pred_fallthru
      _
    // Predicated region
    $region6: #{tpu_custom_call.1} parent=1 // pred_check
      _
    $region7: #{tpu_custom_call.1} parent=1 // pred_check_branch
      %36 = sbr.rel (0) target = $region9
    $region8: #{tpu_custom_call.1} parent=1 // pred_region
      %38 = vsyncadd [#allocation6], 0
      %s39 = sshll.u32 %s1, 4
      %s40 = int_to_ptr.hbm [resolvable:$true] %s39
      %s41 = sshll.u32 [#allocation5], 4
      %s42 = int_to_ptr.vmem [resolvable:$true] %s41
      %47 = dma.hbm_to_vmem [thread:$0]  %s40, 1024, %s42, [#allocation6], 64, 64, 4
    $region9: #{tpu_custom_call.1} parent=1 // pred_fallthru
      _
    // Predicated region
    $region10: #{tpu_custom_call.1} parent=1 // pred_check
      _
    $region11: #{tpu_custom_call.1} parent=1 // pred_check_branch
      %49 = sbr.rel (0) target = $region13
    $region12: #{tpu_custom_call.1} parent=1 // pred_region
      %51 = vsyncadd [#allocation6], 0
      %s53 = sshll.u32 %s2, 4
      %s54 = int_to_ptr.hbm [resolvable:$true] %s53
      %s55 = sshll.u32 [#allocation7], 4
      %s56 = int_to_ptr.vmem [resolvable:$true] %s55
      %58 = dma.hbm_to_vmem [thread:$0]  %s54, 16, %s56, [#allocation6]
    $region13: #{tpu_custom_call.1} parent=1 // pred_fallthru
      _
    // Predicated region
    $region14: #{tpu_custom_call.1} parent=1 // pred_check
      _
    $region15: #{tpu_custom_call.1} parent=1 // pred_check_branch
      %60 = sbr.rel (0) target = $region17
    $region16: #{tpu_custom_call.1} parent=1 // pred_region
      %62 = vsyncadd [#allocation9], 0
      %s63 = sshll.u32 %s3, 4
      %s64 = int_to_ptr.hbm [resolvable:$true] %s63
      %s65 = sshll.u32 [#allocation8], 4
      %s66 = int_to_ptr.vmem [resolvable:$true] %s65
      %71 = dma.hbm_to_vmem [thread:$0]  %s64, 2048, %s66, [#allocation9], 128, 128, 8
    $region17: #{tpu_custom_call.1} parent=1 // pred_fallthru
      _
    // Predicated region
    $region18: #{tpu_custom_call.1} parent=1 // pred_check
      _
    $region19: #{tpu_custom_call.1} parent=1 // pred_check_branch
      %73 = sbr.rel (0) target = $region21
    $region20: #{tpu_custom_call.1} parent=1 // pred_region
      %75 = vsyncadd [#allocation9], 0
      %s77 = sshll.u32 %s4, 4
      %s78 = int_to_ptr.hbm [resolvable:$true] %s77
      %s79 = sshll.u32 [#allocation10], 4
      %s80 = int_to_ptr.vmem [resolvable:$true] %s79
      %82 = dma.hbm_to_vmem [thread:$0]  %s78, 32, %s80, [#allocation9]
    $region21: #{tpu_custom_call.1} parent=1 // pred_fallthru
      _
    // Predicated region
    $region22: #{tpu_custom_call.1} parent=1 // pred_check
      _
    $region23: #{tpu_custom_call.1} parent=1 // pred_check_branch
      %84 = sbr.rel (0) target = $region25
    $region24: #{tpu_custom_call.1} parent=1 // pred_region
      %86 = vsyncadd [#allocation12], 0
      %s87 = sshll.u32 %s5, 4
      %s88 = int_to_ptr.hbm [resolvable:$true] %s87
      %s89 = sshll.u32 [#allocation11], 4
      %s90 = int_to_ptr.vmem [resolvable:$true] %s89
      %95 = dma.hbm_to_vmem [thread:$0]  %s88, 8192, %s90, [#allocation12], 256, 256, 16
    $region25: #{tpu_custom_call.1} parent=1 // pred_fallthru
      _
    // Predicated region
    $region26: #{tpu_custom_call.1} parent=1 // pred_check
      _
    $region27: #{tpu_custom_call.1} parent=1 // pred_check_branch
      %97 = sbr.rel (0) target = $region29
    $region28: #{tpu_custom_call.1} parent=1 // pred_region
      _
    $region29: #{tpu_custom_call.1} parent=1 // pred_fallthru
      _
    // Predicated region
    $region30: #{tpu_custom_call.1} parent=1 // pred_check
      _
    $region31: #{tpu_custom_call.1} parent=1 // pred_check_branch
      %99 = sbr.rel (0) target = $region33
    $region32: #{tpu_custom_call.1} parent=1 // pred_region
      %101 = vsyncadd [#allocation12], 0
      %s102 = sshll.u32 %s7, 4
      %s103 = int_to_ptr.hbm [resolvable:$true] %s102
      %s104 = sshll.u32 [#allocation13], 4
      %s105 = int_to_ptr.vmem [resolvable:$true] %s104
      %110 = dma.hbm_to_vmem [thread:$0]  %s103, 32768, %s105, [#allocation12], 512, 512, 32
    $region33: #{tpu_custom_call.1} parent=1 // pred_fallthru
      _
    // Predicated region
    $region34: #{tpu_custom_call.1} parent=1 // pred_check
      _
    $region35: #{tpu_custom_call.1} parent=1 // pred_check_branch
      %112 = sbr.rel (0) target = $region37
    $region36: #{tpu_custom_call.1} parent=1 // pred_region
      %114 = vsyncadd [#allocation15], 0
      %s116 = sshll.u32 %s8, 4
      %s117 = int_to_ptr.hbm [resolvable:$true] %s116
      %s118 = sshll.u32 [#allocation14], 4
      %s119 = int_to_ptr.vmem [resolvable:$true] %s118
      %121 = dma.hbm_to_vmem [thread:$0]  %s117, 128, %s119, [#allocation15]
    $region37: #{tpu_custom_call.1} parent=1 // pred_fallthru
      _
    // Predicated region
    $region38: #{tpu_custom_call.1} parent=1 // pred_check
      _
    $region39: #{tpu_custom_call.1} parent=1 // pred_check_branch
      %123 = sbr.rel (0) target = $region41
    $region40: #{tpu_custom_call.1} parent=1 // pred_region
      %125 = vsyncadd [#allocation15], 0
      %s126 = sshll.u32 %s9, 4
      %s127 = int_to_ptr.hbm [resolvable:$true] %s126
      %s128 = sshll.u32 [#allocation16], 4
      %s129 = int_to_ptr.vmem [resolvable:$true] %s128
      %134 = dma.hbm_to_vmem [thread:$0]  %s127, 16384, %s129, [#allocation15], 128, 128, 8
    $region41: #{tpu_custom_call.1} parent=1 // pred_fallthru
      _
    // Predicated region
    $region42: #{tpu_custom_call.1} parent=1 // pred_check
      _
    $region43: #{tpu_custom_call.1} parent=1 // pred_check_branch
      %136 = sbr.rel (0) target = $region45
    $region44: #{tpu_custom_call.1} parent=1 // pred_region
      _
    $region45: #{tpu_custom_call.1} parent=1 // pred_fallthru
      _
    // Predicated region
    $region46: #{tpu_custom_call.1} parent=1 // pred_check
      _
    $region47: #{tpu_custom_call.1} parent=1 // pred_check_branch
      %138 = sbr.rel (0) target = $region49
    $region48: #{tpu_custom_call.1} parent=1 // pred_region
      %140 = dma.done [#allocation3], 256
    $region49: #{tpu_custom_call.1} parent=1 // pred_fallthru
      _
    // Predicated region
    $region50: #{tpu_custom_call.1} parent=1 // pred_check
      _
    $region51: #{tpu_custom_call.1} parent=1 // pred_check_branch
      %142 = sbr.rel (0) target = $region53
    $region52: #{tpu_custom_call.1} parent=1 // pred_region
      %144 = dma.done [#allocation6], 1024
    $region53: #{tpu_custom_call.1} parent=1 // pred_fallthru
      _
    // Predicated region
    $region54: #{tpu_custom_call.1} parent=1 // pred_check
      _
    $region55: #{tpu_custom_call.1} parent=1 // pred_check_branch
      %146 = sbr.rel (0) target = $region57
    $region56: #{tpu_custom_call.1} parent=1 // pred_region
      %148 = dma.done [#allocation6], 16
    $region57: #{tpu_custom_call.1} parent=1 // pred_fallthru
      _
    // Predicated region
    $region58: #{tpu_custom_call.1} parent=1 // pred_check
      _
    $region59: #{tpu_custom_call.1} parent=1 // pred_check_branch
      %150 = sbr.rel (0) target = $region61
    $region60: #{tpu_custom_call.1} parent=1 // pred_region
      %152 = dma.done [#allocation9], 2048
    $region61: #{tpu_custom_call.1} parent=1 // pred_fallthru
      _
    // Predicated region
    $region62: #{tpu_custom_call.1} parent=1 // pred_check
      _
    $region63: #{tpu_custom_call.1} parent=1 // pred_check_branch
      %154 = sbr.rel (0) target = $region65
    $region64: #{tpu_custom_call.1} parent=1 // pred_region
      %156 = dma.done [#allocation9], 32
    $region65: #{tpu_custom_call.1} parent=1 // pred_fallthru
      _
    // Predicated region
    $region66: #{tpu_custom_call.1} parent=1 // pred_check
      _
    $region67: #{tpu_custom_call.1} parent=1 // pred_check_branch
      %158 = sbr.rel (0) target = $region69
    $region68: #{tpu_custom_call.1} parent=1 // pred_region
      %160 = dma.done [#allocation12], 8192
    $region69: #{tpu_custom_call.1} parent=1 // pred_fallthru
      _
    // Predicated region
    $region70: #{tpu_custom_call.1} parent=1 // pred_check
      _
    $region71: #{tpu_custom_call.1} parent=1 // pred_check_branch
      %162 = sbr.rel (0) target = $region73
    $region72: #{tpu_custom_call.1} parent=1 // pred_region
      %164 = dma.done [#allocation12], 32768
    $region73: #{tpu_custom_call.1} parent=1 // pred_fallthru
      _
    // Predicated region
    $region74: #{tpu_custom_call.1} parent=1 // pred_check
      _
    $region75: #{tpu_custom_call.1} parent=1 // pred_check_branch
      %166 = sbr.rel (0) target = $region77
    $region76: #{tpu_custom_call.1} parent=1 // pred_region
      %168 = dma.done [#allocation15], 128
    $region77: #{tpu_custom_call.1} parent=1 // pred_fallthru
      _
    // Predicated region
    $region78: #{tpu_custom_call.1} parent=1 // pred_check
      _
    $region79: #{tpu_custom_call.1} parent=1 // pred_check_branch
      %170 = sbr.rel (0) target = $region81
    $region80: #{tpu_custom_call.1} parent=1 // pred_region
      %172 = dma.done [#allocation15], 16384
    $region81: #{tpu_custom_call.1} parent=1 // pred_fallthru
      _
    %v173 = vld [vmem:[#allocation2] sm:$0xff]
    %v174 = vld [vmem:[#allocation2 + $0x8] sm:$0xff]
    %v175 = vpack.c.bf16 %v174, %v173
    %v176 = vld [vmem:[#allocation5] sm:$0xf]
    %v177 = vld [vmem:[#allocation5 + $0x4] sm:$0xf]
    %v178 = vld [vmem:[#allocation5 + $0x8] sm:$0xf]
    %v179 = vld [vmem:[#allocation5 + $0xc] sm:$0xf]
    %v180 = vld [vmem:[#allocation5 + $0x10] sm:$0xf]
    %v181 = vld [vmem:[#allocation5 + $0x14] sm:$0xf]
    %v182 = vld [vmem:[#allocation5 + $0x18] sm:$0xf]
    %v183 = vld [vmem:[#allocation5 + $0x1c] sm:$0xf]
    %v184 = vld [vmem:[#allocation5 + $0x20] sm:$0xf]
    %v185 = vld [vmem:[#allocation5 + $0x24] sm:$0xf]
    %v186 = vld [vmem:[#allocation5 + $0x28] sm:$0xf]
    %v187 = vld [vmem:[#allocation5 + $0x2c] sm:$0xf]
    %v188 = vld [vmem:[#allocation5 + $0x30] sm:$0xf]
    %v189 = vld [vmem:[#allocation5 + $0x34] sm:$0xf]
    %v190 = vld [vmem:[#allocation5 + $0x38] sm:$0xf]
    %v191 = vld [vmem:[#allocation5 + $0x3c] sm:$0xf]
    %v192 = vld [vmem:[#allocation7] sm:$0x1]
    %v194 = vperm.slane %v192, 0
    %v212 = vunpack.c.l.b16 %v176
    %v213 = vunpack.c.l.b16 %v177
    %v214 = vunpack.c.l.b16 %v178
    %v215 = vunpack.c.l.b16 %v179
    %v216 = vunpack.c.l.b16 %v180
    %v217 = vunpack.c.l.b16 %v181
    %v218 = vunpack.c.l.b16 %v182
    %v219 = vunpack.c.l.b16 %v183
    %v220 = vunpack.c.l.b16 %v184
    %v221 = vunpack.c.l.b16 %v185
    %v222 = vunpack.c.l.b16 %v186
    %v223 = vunpack.c.l.b16 %v187
    %v224 = vunpack.c.l.b16 %v188
    %v225 = vunpack.c.l.b16 %v189
    %v226 = vunpack.c.l.b16 %v190
    %v227 = vunpack.c.l.b16 %v191
    %v228 = vpack.c.b16 %v213, %v212
    %v229 = vpack.c.b16 %v215, %v214
    %v230 = vpack.c.b16 %v217, %v216
    %v231 = vpack.c.b16 %v219, %v218
    %v232 = vpack.c.b16 %v221, %v220
    %v233 = vpack.c.b16 %v223, %v222
    %v234 = vpack.c.b16 %v225, %v224
    %v235 = vpack.c.b16 %v227, %v226
    %244 = vmatpush.bf16.msra.mxu0 %v235
    %245 = vmatpush.bf16.msra.mxu0 %v234
    %246 = vmatpush.bf16.msra.mxu0 %v233
    %247 = vmatpush.bf16.msra.mxu0 %v232
    %248 = vmatpush.bf16.msra.mxu0 %v231
    %249 = vmatpush.bf16.msra.mxu0 %v230
    %250 = vmatpush.bf16.msra.mxu0 %v229
    %251 = vmatpush.bf16.msra.mxu0 %v228
    %252 = vmatmul.bf16.gmra.mxu0 %v175
    %v253 = vpop.f32.mrf.mxu0
    %v254 = vadd.f32 %v194, %v253
    %v255 = vpop.f32.mrf.mxu0
    %v256 = vadd.f32 %v194, %v255
    %257 = vdwg.mxu0
    %vm258 = vcmp.ge.f32.partialorder %v254, 0.0
    %vm259 = vcmp.ge.f32.partialorder %v256, 0.0
    %v260 = vmul.f32 %v254, 0.2
    %v261 = vmul.f32 %v256, 0.2
    %v262 = vsel %vm258, %v254, %v260
    %v263 = vsel %vm259, %v256, %v261
    %v264 = vpack.c.bf16 %v263, %v262
    %v265 = vld [vmem:[#allocation8] sm:$0xff]
    %v266 = vld [vmem:[#allocation8 + $0x8] sm:$0xff]
    %v267 = vld [vmem:[#allocation8 + $0x10] sm:$0xff]
    %v268 = vld [vmem:[#allocation8 + $0x18] sm:$0xff]
    %v269 = vld [vmem:[#allocation8 + $0x20] sm:$0xff]
    %v270 = vld [vmem:[#allocation8 + $0x28] sm:$0xff]
    %v271 = vld [vmem:[#allocation8 + $0x30] sm:$0xff]
    %v272 = vld [vmem:[#allocation8 + $0x38] sm:$0xff]
    %v273 = vld [vmem:[#allocation8 + $0x40] sm:$0xff]
    %v274 = vld [vmem:[#allocation8 + $0x48] sm:$0xff]
    %v275 = vld [vmem:[#allocation8 + $0x50] sm:$0xff]
    %v276 = vld [vmem:[#allocation8 + $0x58] sm:$0xff]
    %v277 = vld [vmem:[#allocation8 + $0x60] sm:$0xff]
    %v278 = vld [vmem:[#allocation8 + $0x68] sm:$0xff]
    %v279 = vld [vmem:[#allocation8 + $0x70] sm:$0xff]
    %v280 = vld [vmem:[#allocation8 + $0x78] sm:$0xff]
    %v281 = vld [vmem:[#allocation10] sm:$0x3]
    %v283 = vperm.slane %v281, 0
    %v284 = vperm.slane %v281, 1
    %v303 = vunpack.c.l.b16 %v265
    %v304 = vunpack.c.h.b16 %v265
    %v305 = vunpack.c.l.b16 %v266
    %v306 = vunpack.c.h.b16 %v266
    %v307 = vunpack.c.l.b16 %v267
    %v308 = vunpack.c.h.b16 %v267
    %v309 = vunpack.c.l.b16 %v268
    %v310 = vunpack.c.h.b16 %v268
    %v311 = vunpack.c.l.b16 %v269
    %v312 = vunpack.c.h.b16 %v269
    %v313 = vunpack.c.l.b16 %v270
    %v314 = vunpack.c.h.b16 %v270
    %v315 = vunpack.c.l.b16 %v271
    %v316 = vunpack.c.h.b16 %v271
    %v317 = vunpack.c.l.b16 %v272
    %v318 = vunpack.c.h.b16 %v272
    %v319 = vunpack.c.l.b16 %v273
    %v320 = vunpack.c.h.b16 %v273
    %v321 = vunpack.c.l.b16 %v274
    %v322 = vunpack.c.h.b16 %v274
    %v323 = vunpack.c.l.b16 %v275
    %v324 = vunpack.c.h.b16 %v275
    %v325 = vunpack.c.l.b16 %v276
    %v326 = vunpack.c.h.b16 %v276
    %v327 = vunpack.c.l.b16 %v277
    %v328 = vunpack.c.h.b16 %v277
    %v329 = vunpack.c.l.b16 %v278
    %v330 = vunpack.c.h.b16 %v278
    %v331 = vunpack.c.l.b16 %v279
    %v332 = vunpack.c.h.b16 %v279
    %v333 = vunpack.c.l.b16 %v280
    %v334 = vunpack.c.h.b16 %v280
    %v335 = vpack.c.b16 %v305, %v303
    %v336 = vpack.c.b16 %v306, %v304
    %v337 = vpack.c.b16 %v309, %v307
    %v338 = vpack.c.b16 %v310, %v308
    %v339 = vpack.c.b16 %v313, %v311
    %v340 = vpack.c.b16 %v314, %v312
    %v341 = vpack.c.b16 %v317, %v315
    %v342 = vpack.c.b16 %v318, %v316
    %v343 = vpack.c.b16 %v321, %v319
    %v344 = vpack.c.b16 %v322, %v320
    %v345 = vpack.c.b16 %v325, %v323
    %v346 = vpack.c.b16 %v326, %v324
    %v347 = vpack.c.b16 %v329, %v327
    %v348 = vpack.c.b16 %v330, %v328
    %v349 = vpack.c.b16 %v333, %v331
    %v350 = vpack.c.b16 %v334, %v332
    %367 = vmatpush.bf16.msra.mxu0 %v349
    %368 = vmatpush.bf16.msra.mxu0 %v347
    %369 = vmatpush.bf16.msra.mxu0 %v345
    %370 = vmatpush.bf16.msra.mxu0 %v343
    %371 = vmatpush.bf16.msra.mxu0 %v341
    %372 = vmatpush.bf16.msra.mxu0 %v339
    %373 = vmatpush.bf16.msra.mxu0 %v337
    %374 = vmatpush.bf16.msra.mxu0 %v335
    %375 = vmatmul.bf16.gmra.mxu0 %v264
    %v376 = vpop.f32.mrf.mxu0
    %v377 = vadd.f32 %v283, %v376
    %v378 = vpop.f32.mrf.mxu0
    %v379 = vadd.f32 %v283, %v378
    %380 = vdwg.mxu0
    %381 = vmatpush.bf16.msra.mxu0 %v350
    %382 = vmatpush.bf16.msra.mxu0 %v348
    %383 = vmatpush.bf16.msra.mxu0 %v346
    %384 = vmatpush.bf16.msra.mxu0 %v344
    %385 = vmatpush.bf16.msra.mxu0 %v342
    %386 = vmatpush.bf16.msra.mxu0 %v340
    %387 = vmatpush.bf16.msra.mxu0 %v338
    %388 = vmatpush.bf16.msra.mxu0 %v336
    %389 = vmatmul.bf16.gmra.mxu0 %v264
    %v390 = vpop.f32.mrf.mxu0
    %v391 = vadd.f32 %v284, %v390
    %v392 = vpop.f32.mrf.mxu0
    %v393 = vadd.f32 %v284, %v392
    %394 = vdwg.mxu0
    %vm395 = vcmp.ge.f32.partialorder %v377, 0.0
    %vm396 = vcmp.ge.f32.partialorder %v391, 0.0
    %vm397 = vcmp.ge.f32.partialorder %v379, 0.0
    %vm398 = vcmp.ge.f32.partialorder %v393, 0.0
    %v399 = vmul.f32 %v377, 0.2
    %v400 = vmul.f32 %v391, 0.2
    %v401 = vmul.f32 %v379, 0.2
    %v402 = vmul.f32 %v393, 0.2
    %v403 = vsel %vm395, %v377, %v399
    %v404 = vsel %vm396, %v391, %v400
    %v405 = vsel %vm397, %v379, %v401
    %v406 = vsel %vm398, %v393, %v402
    %v407 = vpack.c.bf16 %v405, %v403
    %v408 = vpack.c.bf16 %v406, %v404
    %v409 = vld [vmem:[#allocation11] sm:$0xff]
    %v410 = vld [vmem:[#allocation11 + $0x8] sm:$0xff]
    %v411 = vld [vmem:[#allocation11 + $0x10] sm:$0xff]
    %v412 = vld [vmem:[#allocation11 + $0x18] sm:$0xff]
    %v413 = vld [vmem:[#allocation11 + $0x20] sm:$0xff]
    %v414 = vld [vmem:[#allocation11 + $0x28] sm:$0xff]
    %v415 = vld [vmem:[#allocation11 + $0x30] sm:$0xff]
    %v416 = vld [vmem:[#allocation11 + $0x38] sm:$0xff]
    %v417 = vld [vmem:[#allocation11 + $0x40] sm:$0xff]
    %v418 = vld [vmem:[#allocation11 + $0x48] sm:$0xff]
    %v419 = vld [vmem:[#allocation11 + $0x50] sm:$0xff]
    %v420 = vld [vmem:[#allocation11 + $0x58] sm:$0xff]
    %v421 = vld [vmem:[#allocation11 + $0x60] sm:$0xff]
    %v422 = vld [vmem:[#allocation11 + $0x68] sm:$0xff]
    %v423 = vld [vmem:[#allocation11 + $0x70] sm:$0xff]
    %v424 = vld [vmem:[#allocation11 + $0x78] sm:$0xff]
    %v425 = vld [vmem:[#allocation11 + $0x80] sm:$0xff]
    %v426 = vld [vmem:[#allocation11 + $0x88] sm:$0xff]
    %v427 = vld [vmem:[#allocation11 + $0x90] sm:$0xff]
    %v428 = vld [vmem:[#allocation11 + $0x98] sm:$0xff]
    %v429 = vld [vmem:[#allocation11 + $0xa0] sm:$0xff]
    %v430 = vld [vmem:[#allocation11 + $0xa8] sm:$0xff]
    %v431 = vld [vmem:[#allocation11 + $0xb0] sm:$0xff]
    %v432 = vld [vmem:[#allocation11 + $0xb8] sm:$0xff]
    %v433 = vld [vmem:[#allocation11 + $0xc0] sm:$0xff]
    %v434 = vld [vmem:[#allocation11 + $0xc8] sm:$0xff]
    %v435 = vld [vmem:[#allocation11 + $0xd0] sm:$0xff]
    %v436 = vld [vmem:[#allocation11 + $0xd8] sm:$0xff]
    %v437 = vld [vmem:[#allocation11 + $0xe0] sm:$0xff]
    %v438 = vld [vmem:[#allocation11 + $0xe8] sm:$0xff]
    %v439 = vld [vmem:[#allocation11 + $0xf0] sm:$0xff]
    %v440 = vld [vmem:[#allocation11 + $0xf8] sm:$0xff]
    %v441 = vld [vmem:[#allocation11 + $0x100] sm:$0xff]
    %v442 = vld [vmem:[#allocation11 + $0x108] sm:$0xff]
    %v443 = vld [vmem:[#allocation11 + $0x110] sm:$0xff]
    %v444 = vld [vmem:[#allocation11 + $0x118] sm:$0xff]
    %v445 = vld [vmem:[#allocation11 + $0x120] sm:$0xff]
    %v446 = vld [vmem:[#allocation11 + $0x128] sm:$0xff]
    %v447 = vld [vmem:[#allocation11 + $0x130] sm:$0xff]
    %v448 = vld [vmem:[#allocation11 + $0x138] sm:$0xff]
    %v449 = vld [vmem:[#allocation11 + $0x140] sm:$0xff]
    %v450 = vld [vmem:[#allocation11 + $0x148] sm:$0xff]
    %v451 = vld [vmem:[#allocation11 + $0x150] sm:$0xff]
    %v452 = vld [vmem:[#allocation11 + $0x158] sm:$0xff]
    %v453 = vld [vmem:[#allocation11 + $0x160] sm:$0xff]
    %v454 = vld [vmem:[#allocation11 + $0x168] sm:$0xff]
    %v455 = vld [vmem:[#allocation11 + $0x170] sm:$0xff]
    %v456 = vld [vmem:[#allocation11 + $0x178] sm:$0xff]
    %v457 = vld [vmem:[#allocation11 + $0x180] sm:$0xff]
    %v458 = vld [vmem:[#allocation11 + $0x188] sm:$0xff]
    %v459 = vld [vmem:[#allocation11 + $0x190] sm:$0xff]
    %v460 = vld [vmem:[#allocation11 + $0x198] sm:$0xff]
    %v461 = vld [vmem:[#allocation11 + $0x1a0] sm:$0xff]
    %v462 = vld [vmem:[#allocation11 + $0x1a8] sm:$0xff]
    %v463 = vld [vmem:[#allocation11 + $0x1b0] sm:$0xff]
    %v464 = vld [vmem:[#allocation11 + $0x1b8] sm:$0xff]
    %v465 = vld [vmem:[#allocation11 + $0x1c0] sm:$0xff]
    %v466 = vld [vmem:[#allocation11 + $0x1c8] sm:$0xff]
    %v467 = vld [vmem:[#allocation11 + $0x1d0] sm:$0xff]
    %v468 = vld [vmem:[#allocation11 + $0x1d8] sm:$0xff]
    %v469 = vld [vmem:[#allocation11 + $0x1e0] sm:$0xff]
    %v470 = vld [vmem:[#allocation11 + $0x1e8] sm:$0xff]
    %v471 = vld [vmem:[#allocation11 + $0x1f0] sm:$0xff]
    %v472 = vld [vmem:[#allocation11 + $0x1f8] sm:$0xff]
    %v473 = vld [vmem:[%s6] sm:$0xf]
    %v475 = vperm.slane %v473, 0
    %v476 = vperm.slane %v473, 1
    %v477 = vperm.slane %v473, 2
    %v478 = vperm.slane %v473, 3
    %v547 = vunpack.c.l.b16 %v409
    %v548 = vunpack.c.h.b16 %v409
    %v549 = vunpack.c.l.b16 %v410
    %v550 = vunpack.c.h.b16 %v410
    %v551 = vunpack.c.l.b16 %v411
    %v552 = vunpack.c.h.b16 %v411
    %v553 = vunpack.c.l.b16 %v412
    %v554 = vunpack.c.h.b16 %v412
    %v555 = vunpack.c.l.b16 %v413
    %v556 = vunpack.c.h.b16 %v413
    %v557 = vunpack.c.l.b16 %v414
    %v558 = vunpack.c.h.b16 %v414
    %v559 = vunpack.c.l.b16 %v415
    %v560 = vunpack.c.h.b16 %v415
    %v561 = vunpack.c.l.b16 %v416
    %v562 = vunpack.c.h.b16 %v416
    %v563 = vunpack.c.l.b16 %v417
    %v564 = vunpack.c.h.b16 %v417
    %v565 = vunpack.c.l.b16 %v418
    %v566 = vunpack.c.h.b16 %v418
    %v567 = vunpack.c.l.b16 %v419
    %v568 = vunpack.c.h.b16 %v419
    %v569 = vunpack.c.l.b16 %v420
    %v570 = vunpack.c.h.b16 %v420
    %v571 = vunpack.c.l.b16 %v421
    %v572 = vunpack.c.h.b16 %v421
    %v573 = vunpack.c.l.b16 %v422
    %v574 = vunpack.c.h.b16 %v422
    %v575 = vunpack.c.l.b16 %v423
    %v576 = vunpack.c.h.b16 %v423
    %v577 = vunpack.c.l.b16 %v424
    %v578 = vunpack.c.h.b16 %v424
    %v579 = vunpack.c.l.b16 %v425
    %v580 = vunpack.c.h.b16 %v425
    %v581 = vunpack.c.l.b16 %v426
    %v582 = vunpack.c.h.b16 %v426
    %v583 = vunpack.c.l.b16 %v427
    %v584 = vunpack.c.h.b16 %v427
    %v585 = vunpack.c.l.b16 %v428
    %v586 = vunpack.c.h.b16 %v428
    %v587 = vunpack.c.l.b16 %v429
    %v588 = vunpack.c.h.b16 %v429
    %v589 = vunpack.c.l.b16 %v430
    %v590 = vunpack.c.h.b16 %v430
    %v591 = vunpack.c.l.b16 %v431
    %v592 = vunpack.c.h.b16 %v431
    %v593 = vunpack.c.l.b16 %v432
    %v594 = vunpack.c.h.b16 %v432
    %v595 = vunpack.c.l.b16 %v433
    %v596 = vunpack.c.h.b16 %v433
    %v597 = vunpack.c.l.b16 %v434
    %v598 = vunpack.c.h.b16 %v434
    %v599 = vunpack.c.l.b16 %v435
    %v600 = vunpack.c.h.b16 %v435
    %v601 = vunpack.c.l.b16 %v436
    %v602 = vunpack.c.h.b16 %v436
    %v603 = vunpack.c.l.b16 %v437
    %v604 = vunpack.c.h.b16 %v437
    %v605 = vunpack.c.l.b16 %v438
    %v606 = vunpack.c.h.b16 %v438
    %v607 = vunpack.c.l.b16 %v439
    %v608 = vunpack.c.h.b16 %v439
    %v609 = vunpack.c.l.b16 %v440
    %v610 = vunpack.c.h.b16 %v440
    %v611 = vunpack.c.l.b16 %v441
    %v612 = vunpack.c.h.b16 %v441
    %v613 = vunpack.c.l.b16 %v442
    %v614 = vunpack.c.h.b16 %v442
    %v615 = vunpack.c.l.b16 %v443
    %v616 = vunpack.c.h.b16 %v443
    %v617 = vunpack.c.l.b16 %v444
    %v618 = vunpack.c.h.b16 %v444
    %v619 = vunpack.c.l.b16 %v445
    %v620 = vunpack.c.h.b16 %v445
    %v621 = vunpack.c.l.b16 %v446
    %v622 = vunpack.c.h.b16 %v446
    %v623 = vunpack.c.l.b16 %v447
    %v624 = vunpack.c.h.b16 %v447
    %v625 = vunpack.c.l.b16 %v448
    %v626 = vunpack.c.h.b16 %v448
    %v627 = vunpack.c.l.b16 %v449
    %v628 = vunpack.c.h.b16 %v449
    %v629 = vunpack.c.l.b16 %v450
    %v630 = vunpack.c.h.b16 %v450
    %v631 = vunpack.c.l.b16 %v451
    %v632 = vunpack.c.h.b16 %v451
    %v633 = vunpack.c.l.b16 %v452
    %v634 = vunpack.c.h.b16 %v452
    %v635 = vunpack.c.l.b16 %v453
    %v636 = vunpack.c.h.b16 %v453
    %v637 = vunpack.c.l.b16 %v454
    %v638 = vunpack.c.h.b16 %v454
    %v639 = vunpack.c.l.b16 %v455
    %v640 = vunpack.c.h.b16 %v455
    %v641 = vunpack.c.l.b16 %v456
    %v642 = vunpack.c.h.b16 %v456
    %v643 = vunpack.c.l.b16 %v457
    %v644 = vunpack.c.h.b16 %v457
    %v645 = vunpack.c.l.b16 %v458
    %v646 = vunpack.c.h.b16 %v458
    %v647 = vunpack.c.l.b16 %v459
    %v648 = vunpack.c.h.b16 %v459
    %v649 = vunpack.c.l.b16 %v460
    %v650 = vunpack.c.h.b16 %v460
    %v651 = vunpack.c.l.b16 %v461
    %v652 = vunpack.c.h.b16 %v461
    %v653 = vunpack.c.l.b16 %v462
    %v654 = vunpack.c.h.b16 %v462
    %v655 = vunpack.c.l.b16 %v463
    %v656 = vunpack.c.h.b16 %v463
    %v657 = vunpack.c.l.b16 %v464
    %v658 = vunpack.c.h.b16 %v464
    %v659 = vunpack.c.l.b16 %v465
    %v660 = vunpack.c.h.b16 %v465
    %v661 = vunpack.c.l.b16 %v466
    %v662 = vunpack.c.h.b16 %v466
    %v663 = vunpack.c.l.b16 %v467
    %v664 = vunpack.c.h.b16 %v467
    %v665 = vunpack.c.l.b16 %v468
    %v666 = vunpack.c.h.b16 %v468
    %v667 = vunpack.c.l.b16 %v469
    %v668 = vunpack.c.h.b16 %v469
    %v669 = vunpack.c.l.b16 %v470
    %v670 = vunpack.c.h.b16 %v470
    %v671 = vunpack.c.l.b16 %v471
    %v672 = vunpack.c.h.b16 %v471
    %v673 = vunpack.c.l.b16 %v472
    %v674 = vunpack.c.h.b16 %v472
    %v675 = vpack.c.b16 %v551, %v547
    %v676 = vpack.c.b16 %v552, %v548
    %v677 = vpack.c.b16 %v553, %v549
    %v678 = vpack.c.b16 %v554, %v550
    %v679 = vpack.c.b16 %v559, %v555
    %v680 = vpack.c.b16 %v560, %v556
    %v681 = vpack.c.b16 %v561, %v557
    %v682 = vpack.c.b16 %v562, %v558
    %v683 = vpack.c.b16 %v567, %v563
    %v684 = vpack.c.b16 %v568, %v564
    %v685 = vpack.c.b16 %v569, %v565
    %v686 = vpack.c.b16 %v570, %v566
    %v687 = vpack.c.b16 %v575, %v571
    %v688 = vpack.c.b16 %v576, %v572
    %v689 = vpack.c.b16 %v577, %v573
    %v690 = vpack.c.b16 %v578, %v574
    %v691 = vpack.c.b16 %v583, %v579
    %v692 = vpack.c.b16 %v584, %v580
    %v693 = vpack.c.b16 %v585, %v581
    %v694 = vpack.c.b16 %v586, %v582
    %v695 = vpack.c.b16 %v591, %v587
    %v696 = vpack.c.b16 %v592, %v588
    %v697 = vpack.c.b16 %v593, %v589
    %v698 = vpack.c.b16 %v594, %v590
    %v699 = vpack.c.b16 %v599, %v595
    %v700 = vpack.c.b16 %v600, %v596
    %v701 = vpack.c.b16 %v601, %v597
    %v702 = vpack.c.b16 %v602, %v598
    %v703 = vpack.c.b16 %v607, %v603
    %v704 = vpack.c.b16 %v608, %v604
    %v705 = vpack.c.b16 %v609, %v605
    %v706 = vpack.c.b16 %v610, %v606
    %v707 = vpack.c.b16 %v615, %v611
    %v708 = vpack.c.b16 %v616, %v612
    %v709 = vpack.c.b16 %v617, %v613
    %v710 = vpack.c.b16 %v618, %v614
    %v711 = vpack.c.b16 %v623, %v619
    %v712 = vpack.c.b16 %v624, %v620
    %v713 = vpack.c.b16 %v625, %v621
    %v714 = vpack.c.b16 %v626, %v622
    %v715 = vpack.c.b16 %v631, %v627
    %v716 = vpack.c.b16 %v632, %v628
    %v717 = vpack.c.b16 %v633, %v629
    %v718 = vpack.c.b16 %v634, %v630
    %v719 = vpack.c.b16 %v639, %v635
    %v720 = vpack.c.b16 %v640, %v636
    %v721 = vpack.c.b16 %v641, %v637
    %v722 = vpack.c.b16 %v642, %v638
    %v723 = vpack.c.b16 %v647, %v643
    %v724 = vpack.c.b16 %v648, %v644
    %v725 = vpack.c.b16 %v649, %v645
    %v726 = vpack.c.b16 %v650, %v646
    %v727 = vpack.c.b16 %v655, %v651
    %v728 = vpack.c.b16 %v656, %v652
    %v729 = vpack.c.b16 %v657, %v653
    %v730 = vpack.c.b16 %v658, %v654
    %v731 = vpack.c.b16 %v663, %v659
    %v732 = vpack.c.b16 %v664, %v660
    %v733 = vpack.c.b16 %v665, %v661
    %v734 = vpack.c.b16 %v666, %v662
    %v735 = vpack.c.b16 %v671, %v667
    %v736 = vpack.c.b16 %v672, %v668
    %v737 = vpack.c.b16 %v673, %v669
    %v738 = vpack.c.b16 %v674, %v670
    %803 = vmatpush.bf16.msra.mxu0 %v703
    %804 = vmatpush.bf16.msra.mxu0 %v699
    %805 = vmatpush.bf16.msra.mxu0 %v695
    %806 = vmatpush.bf16.msra.mxu0 %v691
    %807 = vmatpush.bf16.msra.mxu0 %v687
    %808 = vmatpush.bf16.msra.mxu0 %v683
    %809 = vmatpush.bf16.msra.mxu0 %v679
    %810 = vmatpush.bf16.msra.mxu0 %v675
    %811 = vmatmul.bf16.gmra.mxu0 %v407
    %v812 = vpop.f32.mrf.mxu0
    %v813 = vadd.f32 %v475, %v812
    %v814 = vpop.f32.mrf.mxu0
    %v815 = vadd.f32 %v475, %v814
    %816 = vdwg.mxu0
    %817 = vmatpush.bf16.msra.mxu0 %v735
    %818 = vmatpush.bf16.msra.mxu0 %v731
    %819 = vmatpush.bf16.msra.mxu0 %v727
    %820 = vmatpush.bf16.msra.mxu0 %v723
    %821 = vmatpush.bf16.msra.mxu0 %v719
    %822 = vmatpush.bf16.msra.mxu0 %v715
    %823 = vmatpush.bf16.msra.mxu0 %v711
    %824 = vmatpush.bf16.msra.mxu0 %v707
    %825 = vmatmul.bf16.gmra.mxu0 %v408
    %v826 = vpop.f32.mrf.mxu0
    %v827 = vadd.f32 %v813, %v826
    %v828 = vpop.f32.mrf.mxu0
    %v829 = vadd.f32 %v815, %v828
    %830 = vdwg.mxu0
    %831 = vmatpush.bf16.msra.mxu0 %v704
    %832 = vmatpush.bf16.msra.mxu0 %v700
    %833 = vmatpush.bf16.msra.mxu0 %v696
    %834 = vmatpush.bf16.msra.mxu0 %v692
    %835 = vmatpush.bf16.msra.mxu0 %v688
    %836 = vmatpush.bf16.msra.mxu0 %v684
    %837 = vmatpush.bf16.msra.mxu0 %v680
    %838 = vmatpush.bf16.msra.mxu0 %v676
    %839 = vmatmul.bf16.gmra.mxu0 %v407
    %v840 = vpop.f32.mrf.mxu0
    %v841 = vadd.f32 %v476, %v840
    %v842 = vpop.f32.mrf.mxu0
    %v843 = vadd.f32 %v476, %v842
    %844 = vdwg.mxu0
    %845 = vmatpush.bf16.msra.mxu0 %v736
    %846 = vmatpush.bf16.msra.mxu0 %v732
    %847 = vmatpush.bf16.msra.mxu0 %v728
    %848 = vmatpush.bf16.msra.mxu0 %v724
    %849 = vmatpush.bf16.msra.mxu0 %v720
    %850 = vmatpush.bf16.msra.mxu0 %v716
    %851 = vmatpush.bf16.msra.mxu0 %v712
    %852 = vmatpush.bf16.msra.mxu0 %v708
    %853 = vmatmul.bf16.gmra.mxu0 %v408
    %v854 = vpop.f32.mrf.mxu0
    %v855 = vadd.f32 %v841, %v854
    %v856 = vpop.f32.mrf.mxu0
    %v857 = vadd.f32 %v843, %v856
    %858 = vdwg.mxu0
    %859 = vmatpush.bf16.msra.mxu0 %v705
    %860 = vmatpush.bf16.msra.mxu0 %v701
    %861 = vmatpush.bf16.msra.mxu0 %v697
    %862 = vmatpush.bf16.msra.mxu0 %v693
    %863 = vmatpush.bf16.msra.mxu0 %v689
    %864 = vmatpush.bf16.msra.mxu0 %v685
    %865 = vmatpush.bf16.msra.mxu0 %v681
    %866 = vmatpush.bf16.msra.mxu0 %v677
    %867 = vmatmul.bf16.gmra.mxu0 %v407
    %v868 = vpop.f32.mrf.mxu0
    %v869 = vadd.f32 %v477, %v868
    %v870 = vpop.f32.mrf.mxu0
    %v871 = vadd.f32 %v477, %v870
    %872 = vdwg.mxu0
    %873 = vmatpush.bf16.msra.mxu0 %v737
    %874 = vmatpush.bf16.msra.mxu0 %v733
    %875 = vmatpush.bf16.msra.mxu0 %v729
    %876 = vmatpush.bf16.msra.mxu0 %v725
    %877 = vmatpush.bf16.msra.mxu0 %v721
    %878 = vmatpush.bf16.msra.mxu0 %v717
    %879 = vmatpush.bf16.msra.mxu0 %v713
    %880 = vmatpush.bf16.msra.mxu0 %v709
    %881 = vmatmul.bf16.gmra.mxu0 %v408
    %v882 = vpop.f32.mrf.mxu0
    %v883 = vadd.f32 %v869, %v882
    %v884 = vpop.f32.mrf.mxu0
    %v885 = vadd.f32 %v871, %v884
    %886 = vdwg.mxu0
    %887 = vmatpush.bf16.msra.mxu0 %v706
    %888 = vmatpush.bf16.msra.mxu0 %v702
    %889 = vmatpush.bf16.msra.mxu0 %v698
    %890 = vmatpush.bf16.msra.mxu0 %v694
    %891 = vmatpush.bf16.msra.mxu0 %v690
    %892 = vmatpush.bf16.msra.mxu0 %v686
    %893 = vmatpush.bf16.msra.mxu0 %v682
    %894 = vmatpush.bf16.msra.mxu0 %v678
    %895 = vmatmul.bf16.gmra.mxu0 %v407
    %v896 = vpop.f32.mrf.mxu0
    %v897 = vadd.f32 %v478, %v896
    %v898 = vpop.f32.mrf.mxu0
    %v899 = vadd.f32 %v478, %v898
    %900 = vdwg.mxu0
    %901 = vmatpush.bf16.msra.mxu0 %v738
    %902 = vmatpush.bf16.msra.mxu0 %v734
    %903 = vmatpush.bf16.msra.mxu0 %v730
    %904 = vmatpush.bf16.msra.mxu0 %v726
    %905 = vmatpush.bf16.msra.mxu0 %v722
    %906 = vmatpush.bf16.msra.mxu0 %v718
    %907 = vmatpush.bf16.msra.mxu0 %v714
    %908 = vmatpush.bf16.msra.mxu0 %v710
    %909 = vmatmul.bf16.gmra.mxu0 %v408
    %v910 = vpop.f32.mrf.mxu0
    %v911 = vadd.f32 %v897, %v910
    %v912 = vpop.f32.mrf.mxu0
    %v913 = vadd.f32 %v899, %v912
    %914 = vdwg.mxu0
    %vm915 = vcmp.ge.f32.partialorder %v827, 0.0
    %vm916 = vcmp.ge.f32.partialorder %v855, 0.0
    %vm917 = vcmp.ge.f32.partialorder %v883, 0.0
    %vm918 = vcmp.ge.f32.partialorder %v911, 0.0
    %vm919 = vcmp.ge.f32.partialorder %v829, 0.0
    %vm920 = vcmp.ge.f32.partialorder %v857, 0.0
    %vm921 = vcmp.ge.f32.partialorder %v885, 0.0
    %vm922 = vcmp.ge.f32.partialorder %v913, 0.0
    %v923 = vmul.f32 %v827, 0.2
    %v924 = vmul.f32 %v855, 0.2
    %v925 = vmul.f32 %v883, 0.2
    %v926 = vmul.f32 %v911, 0.2
    %v927 = vmul.f32 %v829, 0.2
    %v928 = vmul.f32 %v857, 0.2
    %v929 = vmul.f32 %v885, 0.2
    %v930 = vmul.f32 %v913, 0.2
    %v931 = vsel %vm915, %v827, %v923
    %v932 = vsel %vm916, %v855, %v924
    %v933 = vsel %vm917, %v883, %v925
    %v934 = vsel %vm918, %v911, %v926
    %v935 = vsel %vm919, %v829, %v927
    %v936 = vsel %vm920, %v857, %v928
    %v937 = vsel %vm921, %v885, %v929
    %v938 = vsel %vm922, %v913, %v930
    %v939 = vpack.c.bf16 %v935, %v931
    %v940 = vpack.c.bf16 %v936, %v932
    %v941 = vpack.c.bf16 %v937, %v933
    %v942 = vpack.c.bf16 %v938, %v934
    %v943 = vld [vmem:[#allocation13] sm:$0xff]
    %v944 = vld [vmem:[#allocation13 + $0x8] sm:$0xff]
    %v945 = vld [vmem:[#allocation13 + $0x10] sm:$0xff]
    %v946 = vld [vmem:[#allocation13 + $0x18] sm:$0xff]
    %v947 = vld [vmem:[#allocation13 + $0x20] sm:$0xff]
    %v948 = vld [vmem:[#allocation13 + $0x28] sm:$0xff]
    %v949 = vld [vmem:[#allocation13 + $0x30] sm:$0xff]
    %v950 = vld [vmem:[#allocation13 + $0x38] sm:$0xff]
    %v951 = vld [vmem:[#allocation13 + $0x40] sm:$0xff]
    %v952 = vld [vmem:[#allocation13 + $0x48] sm:$0xff]
    %v953 = vld [vmem:[#allocation13 + $0x50] sm:$0xff]
    %v954 = vld [vmem:[#allocation13 + $0x58] sm:$0xff]
    %v955 = vld [vmem:[#allocation13 + $0x60] sm:$0xff]
    %v956 = vld [vmem:[#allocation13 + $0x68] sm:$0xff]
    %v957 = vld [vmem:[#allocation13 + $0x70] sm:$0xff]
    %v958 = vld [vmem:[#allocation13 + $0x78] sm:$0xff]
    %v959 = vld [vmem:[#allocation13 + $0x80] sm:$0xff]
    %v960 = vld [vmem:[#allocation13 + $0x88] sm:$0xff]
    %v961 = vld [vmem:[#allocation13 + $0x90] sm:$0xff]
    %v962 = vld [vmem:[#allocation13 + $0x98] sm:$0xff]
    %v963 = vld [vmem:[#allocation13 + $0xa0] sm:$0xff]
    %v964 = vld [vmem:[#allocation13 + $0xa8] sm:$0xff]
    %v965 = vld [vmem:[#allocation13 + $0xb0] sm:$0xff]
    %v966 = vld [vmem:[#allocation13 + $0xb8] sm:$0xff]
    %v967 = vld [vmem:[#allocation13 + $0xc0] sm:$0xff]
    %v968 = vld [vmem:[#allocation13 + $0xc8] sm:$0xff]
    %v969 = vld [vmem:[#allocation13 + $0xd0] sm:$0xff]
    %v970 = vld [vmem:[#allocation13 + $0xd8] sm:$0xff]
    %v971 = vld [vmem:[#allocation13 + $0xe0] sm:$0xff]
    %v972 = vld [vmem:[#allocation13 + $0xe8] sm:$0xff]
    %v973 = vld [vmem:[#allocation13 + $0xf0] sm:$0xff]
    %v974 = vld [vmem:[#allocation13 + $0xf8] sm:$0xff]
    %v975 = vld [vmem:[#allocation13 + $0x100] sm:$0xff]
    %v976 = vld [vmem:[#allocation13 + $0x108] sm:$0xff]
    %v977 = vld [vmem:[#allocation13 + $0x110] sm:$0xff]
    %v978 = vld [vmem:[#allocation13 + $0x118] sm:$0xff]
    %v979 = vld [vmem:[#allocation13 + $0x120] sm:$0xff]
    %v980 = vld [vmem:[#allocation13 + $0x128] sm:$0xff]
    %v981 = vld [vmem:[#allocation13 + $0x130] sm:$0xff]
    %v982 = vld [vmem:[#allocation13 + $0x138] sm:$0xff]
    %v983 = vld [vmem:[#allocation13 + $0x140] sm:$0xff]
    %v984 = vld [vmem:[#allocation13 + $0x148] sm:$0xff]
    %v985 = vld [vmem:[#allocation13 + $0x150] sm:$0xff]
    %v986 = vld [vmem:[#allocation13 + $0x158] sm:$0xff]
    %v987 = vld [vmem:[#allocation13 + $0x160] sm:$0xff]
    %v988 = vld [vmem:[#allocation13 + $0x168] sm:$0xff]
    %v989 = vld [vmem:[#allocation13 + $0x170] sm:$0xff]
    %v990 = vld [vmem:[#allocation13 + $0x178] sm:$0xff]
    %v991 = vld [vmem:[#allocation13 + $0x180] sm:$0xff]
    %v992 = vld [vmem:[#allocation13 + $0x188] sm:$0xff]
    %v993 = vld [vmem:[#allocation13 + $0x190] sm:$0xff]
    %v994 = vld [vmem:[#allocation13 + $0x198] sm:$0xff]
    %v995 = vld [vmem:[#allocation13 + $0x1a0] sm:$0xff]
    %v996 = vld [vmem:[#allocation13 + $0x1a8] sm:$0xff]
    %v997 = vld [vmem:[#allocation13 + $0x1b0] sm:$0xff]
    %v998 = vld [vmem:[#allocation13 + $0x1b8] sm:$0xff]
    %v999 = vld [vmem:[#allocation13 + $0x1c0] sm:$0xff]
    %v1000 = vld [vmem:[#allocation13 + $0x1c8] sm:$0xff]
    %v1001 = vld [vmem:[#allocation13 + $0x1d0] sm:$0xff]
    %v1002 = vld [vmem:[#allocation13 + $0x1d8] sm:$0xff]
    %v1003 = vld [vmem:[#allocation13 + $0x1e0] sm:$0xff]
    %v1004 = vld [vmem:[#allocation13 + $0x1e8] sm:$0xff]
    %v1005 = vld [vmem:[#allocation13 + $0x1f0] sm:$0xff]
    %v1006 = vld [vmem:[#allocation13 + $0x1f8] sm:$0xff]
    %v1007 = vld [vmem:[#allocation13 + $0x200] sm:$0xff]
    %v1008 = vld [vmem:[#allocation13 + $0x208] sm:$0xff]
    %v1009 = vld [vmem:[#allocation13 + $0x210] sm:$0xff]
    %v1010 = vld [vmem:[#allocation13 + $0x218] sm:$0xff]
    %v1011 = vld [vmem:[#allocation13 + $0x220] sm:$0xff]
    %v1012 = vld [vmem:[#allocation13 + $0x228] sm:$0xff]
    %v1013 = vld [vmem:[#allocation13 + $0x230] sm:$0xff]
    %v1014 = vld [vmem:[#allocation13 + $0x238] sm:$0xff]
    %v1015 = vld [vmem:[#allocation13 + $0x240] sm:$0xff]
    %v1016 = vld [vmem:[#allocation13 + $0x248] sm:$0xff]
    %v1017 = vld [vmem:[#allocation13 + $0x250] sm:$0xff]
    %v1018 = vld [vmem:[#allocation13 + $0x258] sm:$0xff]
    %v1019 = vld [vmem:[#allocation13 + $0x260] sm:$0xff]
    %v1020 = vld [vmem:[#allocation13 + $0x268] sm:$0xff]
    %v1021 = vld [vmem:[#allocation13 + $0x270] sm:$0xff]
    %v1022 = vld [vmem:[#allocation13 + $0x278] sm:$0xff]
    %v1023 = vld [vmem:[#allocation13 + $0x280] sm:$0xff]
    %v1024 = vld [vmem:[#allocation13 + $0x288] sm:$0xff]
    %v1025 = vld [vmem:[#allocation13 + $0x290] sm:$0xff]
    %v1026 = vld [vmem:[#allocation13 + $0x298] sm:$0xff]
    %v1027 = vld [vmem:[#allocation13 + $0x2a0] sm:$0xff]
    %v1028 = vld [vmem:[#allocation13 + $0x2a8] sm:$0xff]
    %v1029 = vld [vmem:[#allocation13 + $0x2b0] sm:$0xff]
    %v1030 = vld [vmem:[#allocation13 + $0x2b8] sm:$0xff]
    %v1031 = vld [vmem:[#allocation13 + $0x2c0] sm:$0xff]
    %v1032 = vld [vmem:[#allocation13 + $0x2c8] sm:$0xff]
    %v1033 = vld [vmem:[#allocation13 + $0x2d0] sm:$0xff]
    %v1034 = vld [vmem:[#allocation13 + $0x2d8] sm:$0xff]
    %v1035 = vld [vmem:[#allocation13 + $0x2e0] sm:$0xff]
    %v1036 = vld [vmem:[#allocation13 + $0x2e8] sm:$0xff]
    %v1037 = vld [vmem:[#allocation13 + $0x2f0] sm:$0xff]
    %v1038 = vld [vmem:[#allocation13 + $0x2f8] sm:$0xff]
    %v1039 = vld [vmem:[#allocation13 + $0x300] sm:$0xff]
    %v1040 = vld [vmem:[#allocation13 + $0x308] sm:$0xff]
    %v1041 = vld [vmem:[#allocation13 + $0x310] sm:$0xff]
    %v1042 = vld [vmem:[#allocation13 + $0x318] sm:$0xff]
    %v1043 = vld [vmem:[#allocation13 + $0x320] sm:$0xff]
    %v1044 = vld [vmem:[#allocation13 + $0x328] sm:$0xff]
    %v1045 = vld [vmem:[#allocation13 + $0x330] sm:$0xff]
    %v1046 = vld [vmem:[#allocation13 + $0x338] sm:$0xff]
    %v1047 = vld [vmem:[#allocation13 + $0x340] sm:$0xff]
    %v1048 = vld [vmem:[#allocation13 + $0x348] sm:$0xff]
    %v1049 = vld [vmem:[#allocation13 + $0x350] sm:$0xff]
    %v1050 = vld [vmem:[#allocation13 + $0x358] sm:$0xff]
    %v1051 = vld [vmem:[#allocation13 + $0x360] sm:$0xff]
    %v1052 = vld [vmem:[#allocation13 + $0x368] sm:$0xff]
    %v1053 = vld [vmem:[#allocation13 + $0x370] sm:$0xff]
    %v1054 = vld [vmem:[#allocation13 + $0x378] sm:$0xff]
    %v1055 = vld [vmem:[#allocation13 + $0x380] sm:$0xff]
    %v1056 = vld [vmem:[#allocation13 + $0x388] sm:$0xff]
    %v1057 = vld [vmem:[#allocation13 + $0x390] sm:$0xff]
    %v1058 = vld [vmem:[#allocation13 + $0x398] sm:$0xff]
    %v1059 = vld [vmem:[#allocation13 + $0x3a0] sm:$0xff]
    %v1060 = vld [vmem:[#allocation13 + $0x3a8] sm:$0xff]
    %v1061 = vld [vmem:[#allocation13 + $0x3b0] sm:$0xff]
    %v1062 = vld [vmem:[#allocation13 + $0x3b8] sm:$0xff]
    %v1063 = vld [vmem:[#allocation13 + $0x3c0] sm:$0xff]
    %v1064 = vld [vmem:[#allocation13 + $0x3c8] sm:$0xff]
    %v1065 = vld [vmem:[#allocation13 + $0x3d0] sm:$0xff]
    %v1066 = vld [vmem:[#allocation13 + $0x3d8] sm:$0xff]
    %v1067 = vld [vmem:[#allocation13 + $0x3e0] sm:$0xff]
    %v1068 = vld [vmem:[#allocation13 + $0x3e8] sm:$0xff]
    %v1069 = vld [vmem:[#allocation13 + $0x3f0] sm:$0xff]
    %v1070 = vld [vmem:[#allocation13 + $0x3f8] sm:$0xff]
    %v1071 = vld [vmem:[#allocation13 + $0x400] sm:$0xff]
    %v1072 = vld [vmem:[#allocation13 + $0x408] sm:$0xff]
    %v1073 = vld [vmem:[#allocation13 + $0x410] sm:$0xff]
    %v1074 = vld [vmem:[#allocation13 + $0x418] sm:$0xff]
    %v1075 = vld [vmem:[#allocation13 + $0x420] sm:$0xff]
    %v1076 = vld [vmem:[#allocation13 + $0x428] sm:$0xff]
    %v1077 = vld [vmem:[#allocation13 + $0x430] sm:$0xff]
    %v1078 = vld [vmem:[#allocation13 + $0x438] sm:$0xff]
    %v1079 = vld [vmem:[#allocation13 + $0x440] sm:$0xff]
    %v1080 = vld [vmem:[#allocation13 + $0x448] sm:$0xff]
    %v1081 = vld [vmem:[#allocation13 + $0x450] sm:$0xff]
    %v1082 = vld [vmem:[#allocation13 + $0x458] sm:$0xff]
    %v1083 = vld [vmem:[#allocation13 + $0x460] sm:$0xff]
    %v1084 = vld [vmem:[#allocation13 + $0x468] sm:$0xff]
    %v1085 = vld [vmem:[#allocation13 + $0x470] sm:$0xff]
    %v1086 = vld [vmem:[#allocation13 + $0x478] sm:$0xff]
    %v1087 = vld [vmem:[#allocation13 + $0x480] sm:$0xff]
    %v1088 = vld [vmem:[#allocation13 + $0x488] sm:$0xff]
    %v1089 = vld [vmem:[#allocation13 + $0x490] sm:$0xff]
    %v1090 = vld [vmem:[#allocation13 + $0x498] sm:$0xff]
    %v1091 = vld [vmem:[#allocation13 + $0x4a0] sm:$0xff]
    %v1092 = vld [vmem:[#allocation13 + $0x4a8] sm:$0xff]
    %v1093 = vld [vmem:[#allocation13 + $0x4b0] sm:$0xff]
    %v1094 = vld [vmem:[#allocation13 + $0x4b8] sm:$0xff]
    %v1095 = vld [vmem:[#allocation13 + $0x4c0] sm:$0xff]
    %v1096 = vld [vmem:[#allocation13 + $0x4c8] sm:$0xff]
    %v1097 = vld [vmem:[#allocation13 + $0x4d0] sm:$0xff]
    %v1098 = vld [vmem:[#allocation13 + $0x4d8] sm:$0xff]
    %v1099 = vld [vmem:[#allocation13 + $0x4e0] sm:$0xff]
    %v1100 = vld [vmem:[#allocation13 + $0x4e8] sm:$0xff]
    %v1101 = vld [vmem:[#allocation13 + $0x4f0] sm:$0xff]
    %v1102 = vld [vmem:[#allocation13 + $0x4f8] sm:$0xff]
    %v1103 = vld [vmem:[#allocation13 + $0x500] sm:$0xff]
    %v1104 = vld [vmem:[#allocation13 + $0x508] sm:$0xff]
    %v1105 = vld [vmem:[#allocation13 + $0x510] sm:$0xff]
    %v1106 = vld [vmem:[#allocation13 + $0x518] sm:$0xff]
    %v1107 = vld [vmem:[#allocation13 + $0x520] sm:$0xff]
    %v1108 = vld [vmem:[#allocation13 + $0x528] sm:$0xff]
    %v1109 = vld [vmem:[#allocation13 + $0x530] sm:$0xff]
    %v1110 = vld [vmem:[#allocation13 + $0x538] sm:$0xff]
    %v1111 = vld [vmem:[#allocation13 + $0x540] sm:$0xff]
    %v1112 = vld [vmem:[#allocation13 + $0x548] sm:$0xff]
    %v1113 = vld [vmem:[#allocation13 + $0x550] sm:$0xff]
    %v1114 = vld [vmem:[#allocation13 + $0x558] sm:$0xff]
    %v1115 = vld [vmem:[#allocation13 + $0x560] sm:$0xff]
    %v1116 = vld [vmem:[#allocation13 + $0x568] sm:$0xff]
    %v1117 = vld [vmem:[#allocation13 + $0x570] sm:$0xff]
    %v1118 = vld [vmem:[#allocation13 + $0x578] sm:$0xff]
    %v1119 = vld [vmem:[#allocation13 + $0x580] sm:$0xff]
    %v1120 = vld [vmem:[#allocation13 + $0x588] sm:$0xff]
    %v1121 = vld [vmem:[#allocation13 + $0x590] sm:$0xff]
    %v1122 = vld [vmem:[#allocation13 + $0x598] sm:$0xff]
    %v1123 = vld [vmem:[#allocation13 + $0x5a0] sm:$0xff]
    %v1124 = vld [vmem:[#allocation13 + $0x5a8] sm:$0xff]
    %v1125 = vld [vmem:[#allocation13 + $0x5b0] sm:$0xff]
    %v1126 = vld [vmem:[#allocation13 + $0x5b8] sm:$0xff]
    %v1127 = vld [vmem:[#allocation13 + $0x5c0] sm:$0xff]
    %v1128 = vld [vmem:[#allocation13 + $0x5c8] sm:$0xff]
    %v1129 = vld [vmem:[#allocation13 + $0x5d0] sm:$0xff]
    %v1130 = vld [vmem:[#allocation13 + $0x5d8] sm:$0xff]
    %v1131 = vld [vmem:[#allocation13 + $0x5e0] sm:$0xff]
    %v1132 = vld [vmem:[#allocation13 + $0x5e8] sm:$0xff]
    %v1133 = vld [vmem:[#allocation13 + $0x5f0] sm:$0xff]
    %v1134 = vld [vmem:[#allocation13 + $0x5f8] sm:$0xff]
    %v1135 = vld [vmem:[#allocation13 + $0x600] sm:$0xff]
    %v1136 = vld [vmem:[#allocation13 + $0x608] sm:$0xff]
    %v1137 = vld [vmem:[#allocation13 + $0x610] sm:$0xff]
    %v1138 = vld [vmem:[#allocation13 + $0x618] sm:$0xff]
    %v1139 = vld [vmem:[#allocation13 + $0x620] sm:$0xff]
    %v1140 = vld [vmem:[#allocation13 + $0x628] sm:$0xff]
    %v1141 = vld [vmem:[#allocation13 + $0x630] sm:$0xff]
    %v1142 = vld [vmem:[#allocation13 + $0x638] sm:$0xff]
    %v1143 = vld [vmem:[#allocation13 + $0x640] sm:$0xff]
    %v1144 = vld [vmem:[#allocation13 + $0x648] sm:$0xff]
    %v1145 = vld [vmem:[#allocation13 + $0x650] sm:$0xff]
    %v1146 = vld [vmem:[#allocation13 + $0x658] sm:$0xff]
    %v1147 = vld [vmem:[#allocation13 + $0x660] sm:$0xff]
    %v1148 = vld [vmem:[#allocation13 + $0x668] sm:$0xff]
    %v1149 = vld [vmem:[#allocation13 + $0x670] sm:$0xff]
    %v1150 = vld [vmem:[#allocation13 + $0x678] sm:$0xff]
    %v1151 = vld [vmem:[#allocation13 + $0x680] sm:$0xff]
    %v1152 = vld [vmem:[#allocation13 + $0x688] sm:$0xff]
    %v1153 = vld [vmem:[#allocation13 + $0x690] sm:$0xff]
    %v1154 = vld [vmem:[#allocation13 + $0x698] sm:$0xff]
    %v1155 = vld [vmem:[#allocation13 + $0x6a0] sm:$0xff]
    %v1156 = vld [vmem:[#allocation13 + $0x6a8] sm:$0xff]
    %v1157 = vld [vmem:[#allocation13 + $0x6b0] sm:$0xff]
    %v1158 = vld [vmem:[#allocation13 + $0x6b8] sm:$0xff]
    %v1159 = vld [vmem:[#allocation13 + $0x6c0] sm:$0xff]
    %v1160 = vld [vmem:[#allocation13 + $0x6c8] sm:$0xff]
    %v1161 = vld [vmem:[#allocation13 + $0x6d0] sm:$0xff]
    %v1162 = vld [vmem:[#allocation13 + $0x6d8] sm:$0xff]
    %v1163 = vld [vmem:[#allocation13 + $0x6e0] sm:$0xff]
    %v1164 = vld [vmem:[#allocation13 + $0x6e8] sm:$0xff]
    %v1165 = vld [vmem:[#allocation13 + $0x6f0] sm:$0xff]
    %v1166 = vld [vmem:[#allocation13 + $0x6f8] sm:$0xff]
    %v1167 = vld [vmem:[#allocation13 + $0x700] sm:$0xff]
    %v1168 = vld [vmem:[#allocation13 + $0x708] sm:$0xff]
    %v1169 = vld [vmem:[#allocation13 + $0x710] sm:$0xff]
    %v1170 = vld [vmem:[#allocation13 + $0x718] sm:$0xff]
    %v1171 = vld [vmem:[#allocation13 + $0x720] sm:$0xff]
    %v1172 = vld [vmem:[#allocation13 + $0x728] sm:$0xff]
    %v1173 = vld [vmem:[#allocation13 + $0x730] sm:$0xff]
    %v1174 = vld [vmem:[#allocation13 + $0x738] sm:$0xff]
    %v1175 = vld [vmem:[#allocation13 + $0x740] sm:$0xff]
    %v1176 = vld [vmem:[#allocation13 + $0x748] sm:$0xff]
    %v1177 = vld [vmem:[#allocation13 + $0x750] sm:$0xff]
    %v1178 = vld [vmem:[#allocation13 + $0x758] sm:$0xff]
    %v1179 = vld [vmem:[#allocation13 + $0x760] sm:$0xff]
    %v1180 = vld [vmem:[#allocation13 + $0x768] sm:$0xff]
    %v1181 = vld [vmem:[#allocation13 + $0x770] sm:$0xff]
    %v1182 = vld [vmem:[#allocation13 + $0x778] sm:$0xff]
    %v1183 = vld [vmem:[#allocation13 + $0x780] sm:$0xff]
    %v1184 = vld [vmem:[#allocation13 + $0x788] sm:$0xff]
    %v1185 = vld [vmem:[#allocation13 + $0x790] sm:$0xff]
    %v1186 = vld [vmem:[#allocation13 + $0x798] sm:$0xff]
    %v1187 = vld [vmem:[#allocation13 + $0x7a0] sm:$0xff]
    %v1188 = vld [vmem:[#allocation13 + $0x7a8] sm:$0xff]
    %v1189 = vld [vmem:[#allocation13 + $0x7b0] sm:$0xff]
    %v1190 = vld [vmem:[#allocation13 + $0x7b8] sm:$0xff]
    %v1191 = vld [vmem:[#allocation13 + $0x7c0] sm:$0xff]
    %v1192 = vld [vmem:[#allocation13 + $0x7c8] sm:$0xff]
    %v1193 = vld [vmem:[#allocation13 + $0x7d0] sm:$0xff]
    %v1194 = vld [vmem:[#allocation13 + $0x7d8] sm:$0xff]
    %v1195 = vld [vmem:[#allocation13 + $0x7e0] sm:$0xff]
    %v1196 = vld [vmem:[#allocation13 + $0x7e8] sm:$0xff]
    %v1197 = vld [vmem:[#allocation13 + $0x7f0] sm:$0xff]
    %v1198 = vld [vmem:[#allocation13 + $0x7f8] sm:$0xff]
    %v1199 = vld [vmem:[#allocation14] sm:$0xff]
    %v1201 = vperm.slane %v1199, 0
    %v1202 = vperm.slane %v1199, 1
    %v1203 = vperm.slane %v1199, 2
    %v1204 = vperm.slane %v1199, 3
    %v1205 = vperm.slane %v1199, 4
    %v1206 = vperm.slane %v1199, 5
    %v1207 = vperm.slane %v1199, 6
    %v1208 = vperm.slane %v1199, 7
    %v1473 = vunpack.c.l.b16 %v943
    %v1474 = vunpack.c.h.b16 %v943
    %v1475 = vunpack.c.l.b16 %v944
    %v1476 = vunpack.c.h.b16 %v944
    %v1477 = vunpack.c.l.b16 %v945
    %v1478 = vunpack.c.h.b16 %v945
    %v1479 = vunpack.c.l.b16 %v946
    %v1480 = vunpack.c.h.b16 %v946
    %v1481 = vunpack.c.l.b16 %v947
    %v1482 = vunpack.c.h.b16 %v947
    %v1483 = vunpack.c.l.b16 %v948
    %v1484 = vunpack.c.h.b16 %v948
    %v1485 = vunpack.c.l.b16 %v949
    %v1486 = vunpack.c.h.b16 %v949
    %v1487 = vunpack.c.l.b16 %v950
    %v1488 = vunpack.c.h.b16 %v950
    %v1489 = vunpack.c.l.b16 %v951
    %v1490 = vunpack.c.h.b16 %v951
    %v1491 = vunpack.c.l.b16 %v952
    %v1492 = vunpack.c.h.b16 %v952
    %v1493 = vunpack.c.l.b16 %v953
    %v1494 = vunpack.c.h.b16 %v953
    %v1495 = vunpack.c.l.b16 %v954
    %v1496 = vunpack.c.h.b16 %v954
    %v1497 = vunpack.c.l.b16 %v955
    %v1498 = vunpack.c.h.b16 %v955
    %v1499 = vunpack.c.l.b16 %v956
    %v1500 = vunpack.c.h.b16 %v956
    %v1501 = vunpack.c.l.b16 %v957
    %v1502 = vunpack.c.h.b16 %v957
    %v1503 = vunpack.c.l.b16 %v958
    %v1504 = vunpack.c.h.b16 %v958
    %v1505 = vunpack.c.l.b16 %v959
    %v1506 = vunpack.c.h.b16 %v959
    %v1507 = vunpack.c.l.b16 %v960
    %v1508 = vunpack.c.h.b16 %v960
    %v1509 = vunpack.c.l.b16 %v961
    %v1510 = vunpack.c.h.b16 %v961
    %v1511 = vunpack.c.l.b16 %v962
    %v1512 = vunpack.c.h.b16 %v962
    %v1513 = vunpack.c.l.b16 %v963
    %v1514 = vunpack.c.h.b16 %v963
    %v1515 = vunpack.c.l.b16 %v964
    %v1516 = vunpack.c.h.b16 %v964
    %v1517 = vunpack.c.l.b16 %v965
    %v1518 = vunpack.c.h.b16 %v965
    %v1519 = vunpack.c.l.b16 %v966
    %v1520 = vunpack.c.h.b16 %v966
    %v1521 = vunpack.c.l.b16 %v967
    %v1522 = vunpack.c.h.b16 %v967
    %v1523 = vunpack.c.l.b16 %v968
    %v1524 = vunpack.c.h.b16 %v968
    %v1525 = vunpack.c.l.b16 %v969
    %v1526 = vunpack.c.h.b16 %v969
    %v1527 = vunpack.c.l.b16 %v970
    %v1528 = vunpack.c.h.b16 %v970
    %v1529 = vunpack.c.l.b16 %v971
    %v1530 = vunpack.c.h.b16 %v971
    %v1531 = vunpack.c.l.b16 %v972
    %v1532 = vunpack.c.h.b16 %v972
    %v1533 = vunpack.c.l.b16 %v973
    %v1534 = vunpack.c.h.b16 %v973
    %v1535 = vunpack.c.l.b16 %v974
    %v1536 = vunpack.c.h.b16 %v974
    %v1537 = vunpack.c.l.b16 %v975
    %v1538 = vunpack.c.h.b16 %v975
    %v1539 = vunpack.c.l.b16 %v976
    %v1540 = vunpack.c.h.b16 %v976
    %v1541 = vunpack.c.l.b16 %v977
    %v1542 = vunpack.c.h.b16 %v977
    %v1543 = vunpack.c.l.b16 %v978
    %v1544 = vunpack.c.h.b16 %v978
    %v1545 = vunpack.c.l.b16 %v979
    %v1546 = vunpack.c.h.b16 %v979
    %v1547 = vunpack.c.l.b16 %v980
    %v1548 = vunpack.c.h.b16 %v980
    %v1549 = vunpack.c.l.b16 %v981
    %v1550 = vunpack.c.h.b16 %v981
    %v1551 = vunpack.c.l.b16 %v982
    %v1552 = vunpack.c.h.b16 %v982
    %v1553 = vunpack.c.l.b16 %v983
    %v1554 = vunpack.c.h.b16 %v983
    %v1555 = vunpack.c.l.b16 %v984
    %v1556 = vunpack.c.h.b16 %v984
    %v1557 = vunpack.c.l.b16 %v985
    %v1558 = vunpack.c.h.b16 %v985
    %v1559 = vunpack.c.l.b16 %v986
    %v1560 = vunpack.c.h.b16 %v986
    %v1561 = vunpack.c.l.b16 %v987
    %v1562 = vunpack.c.h.b16 %v987
    %v1563 = vunpack.c.l.b16 %v988
    %v1564 = vunpack.c.h.b16 %v988
    %v1565 = vunpack.c.l.b16 %v989
    %v1566 = vunpack.c.h.b16 %v989
    %v1567 = vunpack.c.l.b16 %v990
    %v1568 = vunpack.c.h.b16 %v990
    %v1569 = vunpack.c.l.b16 %v991
    %v1570 = vunpack.c.h.b16 %v991
    %v1571 = vunpack.c.l.b16 %v992
    %v1572 = vunpack.c.h.b16 %v992
    %v1573 = vunpack.c.l.b16 %v993
    %v1574 = vunpack.c.h.b16 %v993
    %v1575 = vunpack.c.l.b16 %v994
    %v1576 = vunpack.c.h.b16 %v994
    %v1577 = vunpack.c.l.b16 %v995
    %v1578 = vunpack.c.h.b16 %v995
    %v1579 = vunpack.c.l.b16 %v996
    %v1580 = vunpack.c.h.b16 %v996
    %v1581 = vunpack.c.l.b16 %v997
    %v1582 = vunpack.c.h.b16 %v997
    %v1583 = vunpack.c.l.b16 %v998
    %v1584 = vunpack.c.h.b16 %v998
    %v1585 = vunpack.c.l.b16 %v999
    %v1586 = vunpack.c.h.b16 %v999
    %v1587 = vunpack.c.l.b16 %v1000
    %v1588 = vunpack.c.h.b16 %v1000
    %v1589 = vunpack.c.l.b16 %v1001
    %v1590 = vunpack.c.h.b16 %v1001
    %v1591 = vunpack.c.l.b16 %v1002
    %v1592 = vunpack.c.h.b16 %v1002
    %v1593 = vunpack.c.l.b16 %v1003
    %v1594 = vunpack.c.h.b16 %v1003
    %v1595 = vunpack.c.l.b16 %v1004
    %v1596 = vunpack.c.h.b16 %v1004
    %v1597 = vunpack.c.l.b16 %v1005
    %v1598 = vunpack.c.h.b16 %v1005
    %v1599 = vunpack.c.l.b16 %v1006
    %v1600 = vunpack.c.h.b16 %v1006
    %v1601 = vunpack.c.l.b16 %v1007
    %v1602 = vunpack.c.h.b16 %v1007
    %v1603 = vunpack.c.l.b16 %v1008
    %v1604 = vunpack.c.h.b16 %v1008
    %v1605 = vunpack.c.l.b16 %v1009
    %v1606 = vunpack.c.h.b16 %v1009
    %v1607 = vunpack.c.l.b16 %v1010
    %v1608 = vunpack.c.h.b16 %v1010
    %v1609 = vunpack.c.l.b16 %v1011
    %v1610 = vunpack.c.h.b16 %v1011
    %v1611 = vunpack.c.l.b16 %v1012
    %v1612 = vunpack.c.h.b16 %v1012
    %v1613 = vunpack.c.l.b16 %v1013
    %v1614 = vunpack.c.h.b16 %v1013
    %v1615 = vunpack.c.l.b16 %v1014
    %v1616 = vunpack.c.h.b16 %v1014
    %v1617 = vunpack.c.l.b16 %v1015
    %v1618 = vunpack.c.h.b16 %v1015
    %v1619 = vunpack.c.l.b16 %v1016
    %v1620 = vunpack.c.h.b16 %v1016
    %v1621 = vunpack.c.l.b16 %v1017
    %v1622 = vunpack.c.h.b16 %v1017
    %v1623 = vunpack.c.l.b16 %v1018
    %v1624 = vunpack.c.h.b16 %v1018
    %v1625 = vunpack.c.l.b16 %v1019
    %v1626 = vunpack.c.h.b16 %v1019
    %v1627 = vunpack.c.l.b16 %v1020
    %v1628 = vunpack.c.h.b16 %v1020
    %v1629 = vunpack.c.l.b16 %v1021
    %v1630 = vunpack.c.h.b16 %v1021
    %v1631 = vunpack.c.l.b16 %v1022
    %v1632 = vunpack.c.h.b16 %v1022
    %v1633 = vunpack.c.l.b16 %v1023
    %v1634 = vunpack.c.h.b16 %v1023
    %v1635 = vunpack.c.l.b16 %v1024
    %v1636 = vunpack.c.h.b16 %v1024
    %v1637 = vunpack.c.l.b16 %v1025
    %v1638 = vunpack.c.h.b16 %v1025
    %v1639 = vunpack.c.l.b16 %v1026
    %v1640 = vunpack.c.h.b16 %v1026
    %v1641 = vunpack.c.l.b16 %v1027
    %v1642 = vunpack.c.h.b16 %v1027
    %v1643 = vunpack.c.l.b16 %v1028
    %v1644 = vunpack.c.h.b16 %v1028
    %v1645 = vunpack.c.l.b16 %v1029
    %v1646 = vunpack.c.h.b16 %v1029
    %v1647 = vunpack.c.l.b16 %v1030
    %v1648 = vunpack.c.h.b16 %v1030
    %v1649 = vunpack.c.l.b16 %v1031
    %v1650 = vunpack.c.h.b16 %v1031
    %v1651 = vunpack.c.l.b16 %v1032
    %v1652 = vunpack.c.h.b16 %v1032
    %v1653 = vunpack.c.l.b16 %v1033
    %v1654 = vunpack.c.h.b16 %v1033
    %v1655 = vunpack.c.l.b16 %v1034
    %v1656 = vunpack.c.h.b16 %v1034
    %v1657 = vunpack.c.l.b16 %v1035
    %v1658 = vunpack.c.h.b16 %v1035
    %v1659 = vunpack.c.l.b16 %v1036
    %v1660 = vunpack.c.h.b16 %v1036
    %v1661 = vunpack.c.l.b16 %v1037
    %v1662 = vunpack.c.h.b16 %v1037
    %v1663 = vunpack.c.l.b16 %v1038
    %v1664 = vunpack.c.h.b16 %v1038
    %v1665 = vunpack.c.l.b16 %v1039
    %v1666 = vunpack.c.h.b16 %v1039
    %v1667 = vunpack.c.l.b16 %v1040
    %v1668 = vunpack.c.h.b16 %v1040
    %v1669 = vunpack.c.l.b16 %v1041
    %v1670 = vunpack.c.h.b16 %v1041
    %v1671 = vunpack.c.l.b16 %v1042
    %v1672 = vunpack.c.h.b16 %v1042
    %v1673 = vunpack.c.l.b16 %v1043
    %v1674 = vunpack.c.h.b16 %v1043
    %v1675 = vunpack.c.l.b16 %v1044
    %v1676 = vunpack.c.h.b16 %v1044
    %v1677 = vunpack.c.l.b16 %v1045
    %v1678 = vunpack.c.h.b16 %v1045
    %v1679 = vunpack.c.l.b16 %v1046
    %v1680 = vunpack.c.h.b16 %v1046
    %v1681 = vunpack.c.l.b16 %v1047
    %v1682 = vunpack.c.h.b16 %v1047
    %v1683 = vunpack.c.l.b16 %v1048
    %v1684 = vunpack.c.h.b16 %v1048
    %v1685 = vunpack.c.l.b16 %v1049
    %v1686 = vunpack.c.h.b16 %v1049
    %v1687 = vunpack.c.l.b16 %v1050
    %v1688 = vunpack.c.h.b16 %v1050
    %v1689 = vunpack.c.l.b16 %v1051
    %v1690 = vunpack.c.h.b16 %v1051
    %v1691 = vunpack.c.l.b16 %v1052
    %v1692 = vunpack.c.h.b16 %v1052
    %v1693 = vunpack.c.l.b16 %v1053
    %v1694 = vunpack.c.h.b16 %v1053
    %v1695 = vunpack.c.l.b16 %v1054
    %v1696 = vunpack.c.h.b16 %v1054
    %v1697 = vunpack.c.l.b16 %v1055
    %v1698 = vunpack.c.h.b16 %v1055
    %v1699 = vunpack.c.l.b16 %v1056
    %v1700 = vunpack.c.h.b16 %v1056
    %v1701 = vunpack.c.l.b16 %v1057
    %v1702 = vunpack.c.h.b16 %v1057
    %v1703 = vunpack.c.l.b16 %v1058
    %v1704 = vunpack.c.h.b16 %v1058
    %v1705 = vunpack.c.l.b16 %v1059
    %v1706 = vunpack.c.h.b16 %v1059
    %v1707 = vunpack.c.l.b16 %v1060
    %v1708 = vunpack.c.h.b16 %v1060
    %v1709 = vunpack.c.l.b16 %v1061
    %v1710 = vunpack.c.h.b16 %v1061
    %v1711 = vunpack.c.l.b16 %v1062
    %v1712 = vunpack.c.h.b16 %v1062
    %v1713 = vunpack.c.l.b16 %v1063
    %v1714 = vunpack.c.h.b16 %v1063
    %v1715 = vunpack.c.l.b16 %v1064
    %v1716 = vunpack.c.h.b16 %v1064
    %v1717 = vunpack.c.l.b16 %v1065
    %v1718 = vunpack.c.h.b16 %v1065
    %v1719 = vunpack.c.l.b16 %v1066
    %v1720 = vunpack.c.h.b16 %v1066
    %v1721 = vunpack.c.l.b16 %v1067
    %v1722 = vunpack.c.h.b16 %v1067
    %v1723 = vunpack.c.l.b16 %v1068
    %v1724 = vunpack.c.h.b16 %v1068
    %v1725 = vunpack.c.l.b16 %v1069
    %v1726 = vunpack.c.h.b16 %v1069
    %v1727 = vunpack.c.l.b16 %v1070
    %v1728 = vunpack.c.h.b16 %v1070
    %v1729 = vunpack.c.l.b16 %v1071
    %v1730 = vunpack.c.h.b16 %v1071
    %v1731 = vunpack.c.l.b16 %v1072
    %v1732 = vunpack.c.h.b16 %v1072
    %v1733 = vunpack.c.l.b16 %v1073
    %v1734 = vunpack.c.h.b16 %v1073
    %v1735 = vunpack.c.l.b16 %v1074
    %v1736 = vunpack.c.h.b16 %v1074
    %v1737 = vunpack.c.l.b16 %v1075
    %v1738 = vunpack.c.h.b16 %v1075
    %v1739 = vunpack.c.l.b16 %v1076
    %v1740 = vunpack.c.h.b16 %v1076
    %v1741 = vunpack.c.l.b16 %v1077
    %v1742 = vunpack.c.h.b16 %v1077
    %v1743 = vunpack.c.l.b16 %v1078
    %v1744 = vunpack.c.h.b16 %v1078
    %v1745 = vunpack.c.l.b16 %v1079
    %v1746 = vunpack.c.h.b16 %v1079
    %v1747 = vunpack.c.l.b16 %v1080
    %v1748 = vunpack.c.h.b16 %v1080
    %v1749 = vunpack.c.l.b16 %v1081
    %v1750 = vunpack.c.h.b16 %v1081
    %v1751 = vunpack.c.l.b16 %v1082
    %v1752 = vunpack.c.h.b16 %v1082
    %v1753 = vunpack.c.l.b16 %v1083
    %v1754 = vunpack.c.h.b16 %v1083
    %v1755 = vunpack.c.l.b16 %v1084
    %v1756 = vunpack.c.h.b16 %v1084
    %v1757 = vunpack.c.l.b16 %v1085
    %v1758 = vunpack.c.h.b16 %v1085
    %v1759 = vunpack.c.l.b16 %v1086
    %v1760 = vunpack.c.h.b16 %v1086
    %v1761 = vunpack.c.l.b16 %v1087
    %v1762 = vunpack.c.h.b16 %v1087
    %v1763 = vunpack.c.l.b16 %v1088
    %v1764 = vunpack.c.h.b16 %v1088
    %v1765 = vunpack.c.l.b16 %v1089
    %v1766 = vunpack.c.h.b16 %v1089
    %v1767 = vunpack.c.l.b16 %v1090
    %v1768 = vunpack.c.h.b16 %v1090
    %v1769 = vunpack.c.l.b16 %v1091
    %v1770 = vunpack.c.h.b16 %v1091
    %v1771 = vunpack.c.l.b16 %v1092
    %v1772 = vunpack.c.h.b16 %v1092
    %v1773 = vunpack.c.l.b16 %v1093
    %v1774 = vunpack.c.h.b16 %v1093
    %v1775 = vunpack.c.l.b16 %v1094
    %v1776 = vunpack.c.h.b16 %v1094
    %v1777 = vunpack.c.l.b16 %v1095
    %v1778 = vunpack.c.h.b16 %v1095
    %v1779 = vunpack.c.l.b16 %v1096
    %v1780 = vunpack.c.h.b16 %v1096
    %v1781 = vunpack.c.l.b16 %v1097
    %v1782 = vunpack.c.h.b16 %v1097
    %v1783 = vunpack.c.l.b16 %v1098
    %v1784 = vunpack.c.h.b16 %v1098
    %v1785 = vunpack.c.l.b16 %v1099
    %v1786 = vunpack.c.h.b16 %v1099
    %v1787 = vunpack.c.l.b16 %v1100
    %v1788 = vunpack.c.h.b16 %v1100
    %v1789 = vunpack.c.l.b16 %v1101
    %v1790 = vunpack.c.h.b16 %v1101
    %v1791 = vunpack.c.l.b16 %v1102
    %v1792 = vunpack.c.h.b16 %v1102
    %v1793 = vunpack.c.l.b16 %v1103
    %v1794 = vunpack.c.h.b16 %v1103
    %v1795 = vunpack.c.l.b16 %v1104
    %v1796 = vunpack.c.h.b16 %v1104
    %v1797 = vunpack.c.l.b16 %v1105
    %v1798 = vunpack.c.h.b16 %v1105
    %v1799 = vunpack.c.l.b16 %v1106
    %v1800 = vunpack.c.h.b16 %v1106
    %v1801 = vunpack.c.l.b16 %v1107
    %v1802 = vunpack.c.h.b16 %v1107
    %v1803 = vunpack.c.l.b16 %v1108
    %v1804 = vunpack.c.h.b16 %v1108
    %v1805 = vunpack.c.l.b16 %v1109
    %v1806 = vunpack.c.h.b16 %v1109
    %v1807 = vunpack.c.l.b16 %v1110
    %v1808 = vunpack.c.h.b16 %v1110
    %v1809 = vunpack.c.l.b16 %v1111
    %v1810 = vunpack.c.h.b16 %v1111
    %v1811 = vunpack.c.l.b16 %v1112
    %v1812 = vunpack.c.h.b16 %v1112
    %v1813 = vunpack.c.l.b16 %v1113
    %v1814 = vunpack.c.h.b16 %v1113
    %v1815 = vunpack.c.l.b16 %v1114
    %v1816 = vunpack.c.h.b16 %v1114
    %v1817 = vunpack.c.l.b16 %v1115
    %v1818 = vunpack.c.h.b16 %v1115
    %v1819 = vunpack.c.l.b16 %v1116
    %v1820 = vunpack.c.h.b16 %v1116
    %v1821 = vunpack.c.l.b16 %v1117
    %v1822 = vunpack.c.h.b16 %v1117
    %v1823 = vunpack.c.l.b16 %v1118
    %v1824 = vunpack.c.h.b16 %v1118
    %v1825 = vunpack.c.l.b16 %v1119
    %v1826 = vunpack.c.h.b16 %v1119
    %v1827 = vunpack.c.l.b16 %v1120
    %v1828 = vunpack.c.h.b16 %v1120
    %v1829 = vunpack.c.l.b16 %v1121
    %v1830 = vunpack.c.h.b16 %v1121
    %v1831 = vunpack.c.l.b16 %v1122
    %v1832 = vunpack.c.h.b16 %v1122
    %v1833 = vunpack.c.l.b16 %v1123
    %v1834 = vunpack.c.h.b16 %v1123
    %v1835 = vunpack.c.l.b16 %v1124
    %v1836 = vunpack.c.h.b16 %v1124
    %v1837 = vunpack.c.l.b16 %v1125
    %v1838 = vunpack.c.h.b16 %v1125
    %v1839 = vunpack.c.l.b16 %v1126
    %v1840 = vunpack.c.h.b16 %v1126
    %v1841 = vunpack.c.l.b16 %v1127
    %v1842 = vunpack.c.h.b16 %v1127
    %v1843 = vunpack.c.l.b16 %v1128
    %v1844 = vunpack.c.h.b16 %v1128
    %v1845 = vunpack.c.l.b16 %v1129
    %v1846 = vunpack.c.h.b16 %v1129
    %v1847 = vunpack.c.l.b16 %v1130
    %v1848 = vunpack.c.h.b16 %v1130
    %v1849 = vunpack.c.l.b16 %v1131
    %v1850 = vunpack.c.h.b16 %v1131
    %v1851 = vunpack.c.l.b16 %v1132
    %v1852 = vunpack.c.h.b16 %v1132
    %v1853 = vunpack.c.l.b16 %v1133
    %v1854 = vunpack.c.h.b16 %v1133
    %v1855 = vunpack.c.l.b16 %v1134
    %v1856 = vunpack.c.h.b16 %v1134
    %v1857 = vunpack.c.l.b16 %v1135
    %v1858 = vunpack.c.h.b16 %v1135
    %v1859 = vunpack.c.l.b16 %v1136
    %v1860 = vunpack.c.h.b16 %v1136
    %v1861 = vunpack.c.l.b16 %v1137
    %v1862 = vunpack.c.h.b16 %v1137
    %v1863 = vunpack.c.l.b16 %v1138
    %v1864 = vunpack.c.h.b16 %v1138
    %v1865 = vunpack.c.l.b16 %v1139
    %v1866 = vunpack.c.h.b16 %v1139
    %v1867 = vunpack.c.l.b16 %v1140
    %v1868 = vunpack.c.h.b16 %v1140
    %v1869 = vunpack.c.l.b16 %v1141
    %v1870 = vunpack.c.h.b16 %v1141
    %v1871 = vunpack.c.l.b16 %v1142
    %v1872 = vunpack.c.h.b16 %v1142
    %v1873 = vunpack.c.l.b16 %v1143
    %v1874 = vunpack.c.h.b16 %v1143
    %v1875 = vunpack.c.l.b16 %v1144
    %v1876 = vunpack.c.h.b16 %v1144
    %v1877 = vunpack.c.l.b16 %v1145
    %v1878 = vunpack.c.h.b16 %v1145
    %v1879 = vunpack.c.l.b16 %v1146
    %v1880 = vunpack.c.h.b16 %v1146
    %v1881 = vunpack.c.l.b16 %v1147
    %v1882 = vunpack.c.h.b16 %v1147
    %v1883 = vunpack.c.l.b16 %v1148
    %v1884 = vunpack.c.h.b16 %v1148
    %v1885 = vunpack.c.l.b16 %v1149
    %v1886 = vunpack.c.h.b16 %v1149
    %v1887 = vunpack.c.l.b16 %v1150
    %v1888 = vunpack.c.h.b16 %v1150
    %v1889 = vunpack.c.l.b16 %v1151
    %v1890 = vunpack.c.h.b16 %v1151
    %v1891 = vunpack.c.l.b16 %v1152
    %v1892 = vunpack.c.h.b16 %v1152
    %v1893 = vunpack.c.l.b16 %v1153
    %v1894 = vunpack.c.h.b16 %v1153
    %v1895 = vunpack.c.l.b16 %v1154
    %v1896 = vunpack.c.h.b16 %v1154
    %v1897 = vunpack.c.l.b16 %v1155
    %v1898 = vunpack.c.h.b16 %v1155
    %v1899 = vunpack.c.l.b16 %v1156
    %v1900 = vunpack.c.h.b16 %v1156
    %v1901 = vunpack.c.l.b16 %v1157
    %v1902 = vunpack.c.h.b16 %v1157
    %v1903 = vunpack.c.l.b16 %v1158
    %v1904 = vunpack.c.h.b16 %v1158
    %v1905 = vunpack.c.l.b16 %v1159
    %v1906 = vunpack.c.h.b16 %v1159
    %v1907 = vunpack.c.l.b16 %v1160
    %v1908 = vunpack.c.h.b16 %v1160
    %v1909 = vunpack.c.l.b16 %v1161
    %v1910 = vunpack.c.h.b16 %v1161
    %v1911 = vunpack.c.l.b16 %v1162
    %v1912 = vunpack.c.h.b16 %v1162
    %v1913 = vunpack.c.l.b16 %v1163
    %v1914 = vunpack.c.h.b16 %v1163
    %v1915 = vunpack.c.l.b16 %v1164
    %v1916 = vunpack.c.h.b16 %v1164
    %v1917 = vunpack.c.l.b16 %v1165
    %v1918 = vunpack.c.h.b16 %v1165
    %v1919 = vunpack.c.l.b16 %v1166
    %v1920 = vunpack.c.h.b16 %v1166
    %v1921 = vunpack.c.l.b16 %v1167
    %v1922 = vunpack.c.h.b16 %v1167
    %v1923 = vunpack.c.l.b16 %v1168
    %v1924 = vunpack.c.h.b16 %v1168
    %v1925 = vunpack.c.l.b16 %v1169
    %v1926 = vunpack.c.h.b16 %v1169
    %v1927 = vunpack.c.l.b16 %v1170
    %v1928 = vunpack.c.h.b16 %v1170
    %v1929 = vunpack.c.l.b16 %v1171
    %v1930 = vunpack.c.h.b16 %v1171
    %v1931 = vunpack.c.l.b16 %v1172
    %v1932 = vunpack.c.h.b16 %v1172
    %v1933 = vunpack.c.l.b16 %v1173
    %v1934 = vunpack.c.h.b16 %v1173
    %v1935 = vunpack.c.l.b16 %v1174
    %v1936 = vunpack.c.h.b16 %v1174
    %v1937 = vunpack.c.l.b16 %v1175
    %v1938 = vunpack.c.h.b16 %v1175
    %v1939 = vunpack.c.l.b16 %v1176
    %v1940 = vunpack.c.h.b16 %v1176
    %v1941 = vunpack.c.l.b16 %v1177
    %v1942 = vunpack.c.h.b16 %v1177
    %v1943 = vunpack.c.l.b16 %v1178
    %v1944 = vunpack.c.h.b16 %v1178
    %v1945 = vunpack.c.l.b16 %v1179
    %v1946 = vunpack.c.h.b16 %v1179
    %v1947 = vunpack.c.l.b16 %v1180
    %v1948 = vunpack.c.h.b16 %v1180
    %v1949 = vunpack.c.l.b16 %v1181
    %v1950 = vunpack.c.h.b16 %v1181
    %v1951 = vunpack.c.l.b16 %v1182
    %v1952 = vunpack.c.h.b16 %v1182
    %v1953 = vunpack.c.l.b16 %v1183
    %v1954 = vunpack.c.h.b16 %v1183
    %v1955 = vunpack.c.l.b16 %v1184
    %v1956 = vunpack.c.h.b16 %v1184
    %v1957 = vunpack.c.l.b16 %v1185
    %v1958 = vunpack.c.h.b16 %v1185
    %v1959 = vunpack.c.l.b16 %v1186
    %v1960 = vunpack.c.h.b16 %v1186
    %v1961 = vunpack.c.l.b16 %v1187
    %v1962 = vunpack.c.h.b16 %v1187
    %v1963 = vunpack.c.l.b16 %v1188
    %v1964 = vunpack.c.h.b16 %v1188
    %v1965 = vunpack.c.l.b16 %v1189
    %v1966 = vunpack.c.h.b16 %v1189
    %v1967 = vunpack.c.l.b16 %v1190
    %v1968 = vunpack.c.h.b16 %v1190
    %v1969 = vunpack.c.l.b16 %v1191
    %v1970 = vunpack.c.h.b16 %v1191
    %v1971 = vunpack.c.l.b16 %v1192
    %v1972 = vunpack.c.h.b16 %v1192
    %v1973 = vunpack.c.l.b16 %v1193
    %v1974 = vunpack.c.h.b16 %v1193
    %v1975 = vunpack.c.l.b16 %v1194
    %v1976 = vunpack.c.h.b16 %v1194
    %v1977 = vunpack.c.l.b16 %v1195
    %v1978 = vunpack.c.h.b16 %v1195
    %v1979 = vunpack.c.l.b16 %v1196
    %v1980 = vunpack.c.h.b16 %v1196
    %v1981 = vunpack.c.l.b16 %v1197
    %v1982 = vunpack.c.h.b16 %v1197
    %v1983 = vunpack.c.l.b16 %v1198
    %v1984 = vunpack.c.h.b16 %v1198
    %v1985 = vpack.c.b16 %v1481, %v1473
    %v1986 = vpack.c.b16 %v1482, %v1474
    %v1987 = vpack.c.b16 %v1483, %v1475
    %v1988 = vpack.c.b16 %v1484, %v1476
    %v1989 = vpack.c.b16 %v1485, %v1477
    %v1990 = vpack.c.b16 %v1486, %v1478
    %v1991 = vpack.c.b16 %v1487, %v1479
    %v1992 = vpack.c.b16 %v1488, %v1480
    %v1993 = vpack.c.b16 %v1497, %v1489
    %v1994 = vpack.c.b16 %v1498, %v1490
    %v1995 = vpack.c.b16 %v1499, %v1491
    %v1996 = vpack.c.b16 %v1500, %v1492
    %v1997 = vpack.c.b16 %v1501, %v1493
    %v1998 = vpack.c.b16 %v1502, %v1494
    %v1999 = vpack.c.b16 %v1503, %v1495
    %v2000 = vpack.c.b16 %v1504, %v1496
    %v2001 = vpack.c.b16 %v1513, %v1505
    %v2002 = vpack.c.b16 %v1514, %v1506
    %v2003 = vpack.c.b16 %v1515, %v1507
    %v2004 = vpack.c.b16 %v1516, %v1508
    %v2005 = vpack.c.b16 %v1517, %v1509
    %v2006 = vpack.c.b16 %v1518, %v1510
    %v2007 = vpack.c.b16 %v1519, %v1511
    %v2008 = vpack.c.b16 %v1520, %v1512
    %v2009 = vpack.c.b16 %v1529, %v1521
    %v2010 = vpack.c.b16 %v1530, %v1522
    %v2011 = vpack.c.b16 %v1531, %v1523
    %v2012 = vpack.c.b16 %v1532, %v1524
    %v2013 = vpack.c.b16 %v1533, %v1525
    %v2014 = vpack.c.b16 %v1534, %v1526
    %v2015 = vpack.c.b16 %v1535, %v1527
    %v2016 = vpack.c.b16 %v1536, %v1528
    %v2017 = vpack.c.b16 %v1545, %v1537
    %v2018 = vpack.c.b16 %v1546, %v1538
    %v2019 = vpack.c.b16 %v1547, %v1539
    %v2020 = vpack.c.b16 %v1548, %v1540
    %v2021 = vpack.c.b16 %v1549, %v1541
    %v2022 = vpack.c.b16 %v1550, %v1542
    %v2023 = vpack.c.b16 %v1551, %v1543
    %v2024 = vpack.c.b16 %v1552, %v1544
    %v2025 = vpack.c.b16 %v1561, %v1553
    %v2026 = vpack.c.b16 %v1562, %v1554
    %v2027 = vpack.c.b16 %v1563, %v1555
    %v2028 = vpack.c.b16 %v1564, %v1556
    %v2029 = vpack.c.b16 %v1565, %v1557
    %v2030 = vpack.c.b16 %v1566, %v1558
    %v2031 = vpack.c.b16 %v1567, %v1559
    %v2032 = vpack.c.b16 %v1568, %v1560
    %v2033 = vpack.c.b16 %v1577, %v1569
    %v2034 = vpack.c.b16 %v1578, %v1570
    %v2035 = vpack.c.b16 %v1579, %v1571
    %v2036 = vpack.c.b16 %v1580, %v1572
    %v2037 = vpack.c.b16 %v1581, %v1573
    %v2038 = vpack.c.b16 %v1582, %v1574
    %v2039 = vpack.c.b16 %v1583, %v1575
    %v2040 = vpack.c.b16 %v1584, %v1576
    %v2041 = vpack.c.b16 %v1593, %v1585
    %v2042 = vpack.c.b16 %v1594, %v1586
    %v2043 = vpack.c.b16 %v1595, %v1587
    %v2044 = vpack.c.b16 %v1596, %v1588
    %v2045 = vpack.c.b16 %v1597, %v1589
    %v2046 = vpack.c.b16 %v1598, %v1590
    %v2047 = vpack.c.b16 %v1599, %v1591
    %v2048 = vpack.c.b16 %v1600, %v1592
    %v2049 = vpack.c.b16 %v1609, %v1601
    %v2050 = vpack.c.b16 %v1610, %v1602
    %v2051 = vpack.c.b16 %v1611, %v1603
    %v2052 = vpack.c.b16 %v1612, %v1604
    %v2053 = vpack.c.b16 %v1613, %v1605
    %v2054 = vpack.c.b16 %v1614, %v1606
    %v2055 = vpack.c.b16 %v1615, %v1607
    %v2056 = vpack.c.b16 %v1616, %v1608
    %v2057 = vpack.c.b16 %v1625, %v1617
    %v2058 = vpack.c.b16 %v1626, %v1618
    %v2059 = vpack.c.b16 %v1627, %v1619
    %v2060 = vpack.c.b16 %v1628, %v1620
    %v2061 = vpack.c.b16 %v1629, %v1621
    %v2062 = vpack.c.b16 %v1630, %v1622
    %v2063 = vpack.c.b16 %v1631, %v1623
    %v2064 = vpack.c.b16 %v1632, %v1624
    %v2065 = vpack.c.b16 %v1641, %v1633
    %v2066 = vpack.c.b16 %v1642, %v1634
    %v2067 = vpack.c.b16 %v1643, %v1635
    %v2068 = vpack.c.b16 %v1644, %v1636
    %v2069 = vpack.c.b16 %v1645, %v1637
    %v2070 = vpack.c.b16 %v1646, %v1638
    %v2071 = vpack.c.b16 %v1647, %v1639
    %v2072 = vpack.c.b16 %v1648, %v1640
    %v2073 = vpack.c.b16 %v1657, %v1649
    %v2074 = vpack.c.b16 %v1658, %v1650
    %v2075 = vpack.c.b16 %v1659, %v1651
    %v2076 = vpack.c.b16 %v1660, %v1652
    %v2077 = vpack.c.b16 %v1661, %v1653
    %v2078 = vpack.c.b16 %v1662, %v1654
    %v2079 = vpack.c.b16 %v1663, %v1655
    %v2080 = vpack.c.b16 %v1664, %v1656
    %v2081 = vpack.c.b16 %v1673, %v1665
    %v2082 = vpack.c.b16 %v1674, %v1666
    %v2083 = vpack.c.b16 %v1675, %v1667
    %v2084 = vpack.c.b16 %v1676, %v1668
    %v2085 = vpack.c.b16 %v1677, %v1669
    %v2086 = vpack.c.b16 %v1678, %v1670
    %v2087 = vpack.c.b16 %v1679, %v1671
    %v2088 = vpack.c.b16 %v1680, %v1672
    %v2089 = vpack.c.b16 %v1689, %v1681
    %v2090 = vpack.c.b16 %v1690, %v1682
    %v2091 = vpack.c.b16 %v1691, %v1683
    %v2092 = vpack.c.b16 %v1692, %v1684
    %v2093 = vpack.c.b16 %v1693, %v1685
    %v2094 = vpack.c.b16 %v1694, %v1686
    %v2095 = vpack.c.b16 %v1695, %v1687
    %v2096 = vpack.c.b16 %v1696, %v1688
    %v2097 = vpack.c.b16 %v1705, %v1697
    %v2098 = vpack.c.b16 %v1706, %v1698
    %v2099 = vpack.c.b16 %v1707, %v1699
    %v2100 = vpack.c.b16 %v1708, %v1700
    %v2101 = vpack.c.b16 %v1709, %v1701
    %v2102 = vpack.c.b16 %v1710, %v1702
    %v2103 = vpack.c.b16 %v1711, %v1703
    %v2104 = vpack.c.b16 %v1712, %v1704
    %v2105 = vpack.c.b16 %v1721, %v1713
    %v2106 = vpack.c.b16 %v1722, %v1714
    %v2107 = vpack.c.b16 %v1723, %v1715
    %v2108 = vpack.c.b16 %v1724, %v1716
    %v2109 = vpack.c.b16 %v1725, %v1717
    %v2110 = vpack.c.b16 %v1726, %v1718
    %v2111 = vpack.c.b16 %v1727, %v1719
    %v2112 = vpack.c.b16 %v1728, %v1720
    %v2113 = vpack.c.b16 %v1737, %v1729
    %v2114 = vpack.c.b16 %v1738, %v1730
    %v2115 = vpack.c.b16 %v1739, %v1731
    %v2116 = vpack.c.b16 %v1740, %v1732
    %v2117 = vpack.c.b16 %v1741, %v1733
    %v2118 = vpack.c.b16 %v1742, %v1734
    %v2119 = vpack.c.b16 %v1743, %v1735
    %v2120 = vpack.c.b16 %v1744, %v1736
    %v2121 = vpack.c.b16 %v1753, %v1745
    %v2122 = vpack.c.b16 %v1754, %v1746
    %v2123 = vpack.c.b16 %v1755, %v1747
    %v2124 = vpack.c.b16 %v1756, %v1748
    %v2125 = vpack.c.b16 %v1757, %v1749
    %v2126 = vpack.c.b16 %v1758, %v1750
    %v2127 = vpack.c.b16 %v1759, %v1751
    %v2128 = vpack.c.b16 %v1760, %v1752
    %v2129 = vpack.c.b16 %v1769, %v1761
    %v2130 = vpack.c.b16 %v1770, %v1762
    %v2131 = vpack.c.b16 %v1771, %v1763
    %v2132 = vpack.c.b16 %v1772, %v1764
    %v2133 = vpack.c.b16 %v1773, %v1765
    %v2134 = vpack.c.b16 %v1774, %v1766
    %v2135 = vpack.c.b16 %v1775, %v1767
    %v2136 = vpack.c.b16 %v1776, %v1768
    %v2137 = vpack.c.b16 %v1785, %v1777
    %v2138 = vpack.c.b16 %v1786, %v1778
    %v2139 = vpack.c.b16 %v1787, %v1779
    %v2140 = vpack.c.b16 %v1788, %v1780
    %v2141 = vpack.c.b16 %v1789, %v1781
    %v2142 = vpack.c.b16 %v1790, %v1782
    %v2143 = vpack.c.b16 %v1791, %v1783
    %v2144 = vpack.c.b16 %v1792, %v1784
    %v2145 = vpack.c.b16 %v1801, %v1793
    %v2146 = vpack.c.b16 %v1802, %v1794
    %v2147 = vpack.c.b16 %v1803, %v1795
    %v2148 = vpack.c.b16 %v1804, %v1796
    %v2149 = vpack.c.b16 %v1805, %v1797
    %v2150 = vpack.c.b16 %v1806, %v1798
    %v2151 = vpack.c.b16 %v1807, %v1799
    %v2152 = vpack.c.b16 %v1808, %v1800
    %v2153 = vpack.c.b16 %v1817, %v1809
    %v2154 = vpack.c.b16 %v1818, %v1810
    %v2155 = vpack.c.b16 %v1819, %v1811
    %v2156 = vpack.c.b16 %v1820, %v1812
    %v2157 = vpack.c.b16 %v1821, %v1813
    %v2158 = vpack.c.b16 %v1822, %v1814
    %v2159 = vpack.c.b16 %v1823, %v1815
    %v2160 = vpack.c.b16 %v1824, %v1816
    %v2161 = vpack.c.b16 %v1833, %v1825
    %v2162 = vpack.c.b16 %v1834, %v1826
    %v2163 = vpack.c.b16 %v1835, %v1827
    %v2164 = vpack.c.b16 %v1836, %v1828
    %v2165 = vpack.c.b16 %v1837, %v1829
    %v2166 = vpack.c.b16 %v1838, %v1830
    %v2167 = vpack.c.b16 %v1839, %v1831
    %v2168 = vpack.c.b16 %v1840, %v1832
    %v2169 = vpack.c.b16 %v1849, %v1841
    %v2170 = vpack.c.b16 %v1850, %v1842
    %v2171 = vpack.c.b16 %v1851, %v1843
    %v2172 = vpack.c.b16 %v1852, %v1844
    %v2173 = vpack.c.b16 %v1853, %v1845
    %v2174 = vpack.c.b16 %v1854, %v1846
    %v2175 = vpack.c.b16 %v1855, %v1847
    %v2176 = vpack.c.b16 %v1856, %v1848
    %v2177 = vpack.c.b16 %v1865, %v1857
    %v2178 = vpack.c.b16 %v1866, %v1858
    %v2179 = vpack.c.b16 %v1867, %v1859
    %v2180 = vpack.c.b16 %v1868, %v1860
    %v2181 = vpack.c.b16 %v1869, %v1861
    %v2182 = vpack.c.b16 %v1870, %v1862
    %v2183 = vpack.c.b16 %v1871, %v1863
    %v2184 = vpack.c.b16 %v1872, %v1864
    %v2185 = vpack.c.b16 %v1881, %v1873
    %v2186 = vpack.c.b16 %v1882, %v1874
    %v2187 = vpack.c.b16 %v1883, %v1875
    %v2188 = vpack.c.b16 %v1884, %v1876
    %v2189 = vpack.c.b16 %v1885, %v1877
    %v2190 = vpack.c.b16 %v1886, %v1878
    %v2191 = vpack.c.b16 %v1887, %v1879
    %v2192 = vpack.c.b16 %v1888, %v1880
    %v2193 = vpack.c.b16 %v1897, %v1889
    %v2194 = vpack.c.b16 %v1898, %v1890
    %v2195 = vpack.c.b16 %v1899, %v1891
    %v2196 = vpack.c.b16 %v1900, %v1892
    %v2197 = vpack.c.b16 %v1901, %v1893
    %v2198 = vpack.c.b16 %v1902, %v1894
    %v2199 = vpack.c.b16 %v1903, %v1895
    %v2200 = vpack.c.b16 %v1904, %v1896
    %v2201 = vpack.c.b16 %v1913, %v1905
    %v2202 = vpack.c.b16 %v1914, %v1906
    %v2203 = vpack.c.b16 %v1915, %v1907
    %v2204 = vpack.c.b16 %v1916, %v1908
    %v2205 = vpack.c.b16 %v1917, %v1909
    %v2206 = vpack.c.b16 %v1918, %v1910
    %v2207 = vpack.c.b16 %v1919, %v1911
    %v2208 = vpack.c.b16 %v1920, %v1912
    %v2209 = vpack.c.b16 %v1929, %v1921
    %v2210 = vpack.c.b16 %v1930, %v1922
    %v2211 = vpack.c.b16 %v1931, %v1923
    %v2212 = vpack.c.b16 %v1932, %v1924
    %v2213 = vpack.c.b16 %v1933, %v1925
    %v2214 = vpack.c.b16 %v1934, %v1926
    %v2215 = vpack.c.b16 %v1935, %v1927
    %v2216 = vpack.c.b16 %v1936, %v1928
    %v2217 = vpack.c.b16 %v1945, %v1937
    %v2218 = vpack.c.b16 %v1946, %v1938
    %v2219 = vpack.c.b16 %v1947, %v1939
    %v2220 = vpack.c.b16 %v1948, %v1940
    %v2221 = vpack.c.b16 %v1949, %v1941
    %v2222 = vpack.c.b16 %v1950, %v1942
    %v2223 = vpack.c.b16 %v1951, %v1943
    %v2224 = vpack.c.b16 %v1952, %v1944
    %v2225 = vpack.c.b16 %v1961, %v1953
    %v2226 = vpack.c.b16 %v1962, %v1954
    %v2227 = vpack.c.b16 %v1963, %v1955
    %v2228 = vpack.c.b16 %v1964, %v1956
    %v2229 = vpack.c.b16 %v1965, %v1957
    %v2230 = vpack.c.b16 %v1966, %v1958
    %v2231 = vpack.c.b16 %v1967, %v1959
    %v2232 = vpack.c.b16 %v1968, %v1960
    %v2233 = vpack.c.b16 %v1977, %v1969
    %v2234 = vpack.c.b16 %v1978, %v1970
    %v2235 = vpack.c.b16 %v1979, %v1971
    %v2236 = vpack.c.b16 %v1980, %v1972
    %v2237 = vpack.c.b16 %v1981, %v1973
    %v2238 = vpack.c.b16 %v1982, %v1974
    %v2239 = vpack.c.b16 %v1983, %v1975
    %v2240 = vpack.c.b16 %v1984, %v1976
    %2497 = vmatpush.bf16.msra.mxu0 %v2041
    %2498 = vmatpush.bf16.msra.mxu0 %v2033
    %2499 = vmatpush.bf16.msra.mxu0 %v2025
    %2500 = vmatpush.bf16.msra.mxu0 %v2017
    %2501 = vmatpush.bf16.msra.mxu0 %v2009
    %2502 = vmatpush.bf16.msra.mxu0 %v2001
    %2503 = vmatpush.bf16.msra.mxu0 %v1993
    %2504 = vmatpush.bf16.msra.mxu0 %v1985
    %2505 = vmatmul.bf16.gmra.mxu0 %v939
    %v2506 = vpop.f32.mrf.mxu0
    %v2507 = vadd.f32 %v1201, %v2506
    %v2508 = vpop.f32.mrf.mxu0
    %v2509 = vadd.f32 %v1201, %v2508
    %2510 = vdwg.mxu0
    %2511 = vmatpush.bf16.msra.mxu0 %v2105
    %2512 = vmatpush.bf16.msra.mxu0 %v2097
    %2513 = vmatpush.bf16.msra.mxu0 %v2089
    %2514 = vmatpush.bf16.msra.mxu0 %v2081
    %2515 = vmatpush.bf16.msra.mxu0 %v2073
    %2516 = vmatpush.bf16.msra.mxu0 %v2065
    %2517 = vmatpush.bf16.msra.mxu0 %v2057
    %2518 = vmatpush.bf16.msra.mxu0 %v2049
    %2519 = vmatmul.bf16.gmra.mxu0 %v940
    %v2520 = vpop.f32.mrf.mxu0
    %v2521 = vadd.f32 %v2507, %v2520
    %v2522 = vpop.f32.mrf.mxu0
    %v2523 = vadd.f32 %v2509, %v2522
    %2524 = vdwg.mxu0
    %2525 = vmatpush.bf16.msra.mxu0 %v2169
    %2526 = vmatpush.bf16.msra.mxu0 %v2161
    %2527 = vmatpush.bf16.msra.mxu0 %v2153
    %2528 = vmatpush.bf16.msra.mxu0 %v2145
    %2529 = vmatpush.bf16.msra.mxu0 %v2137
    %2530 = vmatpush.bf16.msra.mxu0 %v2129
    %2531 = vmatpush.bf16.msra.mxu0 %v2121
    %2532 = vmatpush.bf16.msra.mxu0 %v2113
    %2533 = vmatmul.bf16.gmra.mxu0 %v941
    %v2534 = vpop.f32.mrf.mxu0
    %v2535 = vadd.f32 %v2521, %v2534
    %v2536 = vpop.f32.mrf.mxu0
    %v2537 = vadd.f32 %v2523, %v2536
    %2538 = vdwg.mxu0
    %2539 = vmatpush.bf16.msra.mxu0 %v2233
    %2540 = vmatpush.bf16.msra.mxu0 %v2225
    %2541 = vmatpush.bf16.msra.mxu0 %v2217
    %2542 = vmatpush.bf16.msra.mxu0 %v2209
    %2543 = vmatpush.bf16.msra.mxu0 %v2201
    %2544 = vmatpush.bf16.msra.mxu0 %v2193
    %2545 = vmatpush.bf16.msra.mxu0 %v2185
    %2546 = vmatpush.bf16.msra.mxu0 %v2177
    %2547 = vmatmul.bf16.gmra.mxu0 %v942
    %v2548 = vpop.f32.mrf.mxu0
    %v2549 = vadd.f32 %v2535, %v2548
    %v2550 = vpop.f32.mrf.mxu0
    %v2551 = vadd.f32 %v2537, %v2550
    %2552 = vdwg.mxu0
    %2553 = vmatpush.bf16.msra.mxu0 %v2042
    %2554 = vmatpush.bf16.msra.mxu0 %v2034
    %2555 = vmatpush.bf16.msra.mxu0 %v2026
    %2556 = vmatpush.bf16.msra.mxu0 %v2018
    %2557 = vmatpush.bf16.msra.mxu0 %v2010
    %2558 = vmatpush.bf16.msra.mxu0 %v2002
    %2559 = vmatpush.bf16.msra.mxu0 %v1994
    %2560 = vmatpush.bf16.msra.mxu0 %v1986
    %2561 = vmatmul.bf16.gmra.mxu0 %v939
    %v2562 = vpop.f32.mrf.mxu0
    %v2563 = vadd.f32 %v1202, %v2562
    %v2564 = vpop.f32.mrf.mxu0
    %v2565 = vadd.f32 %v1202, %v2564
    %2566 = vdwg.mxu0
    %2567 = vmatpush.bf16.msra.mxu0 %v2106
    %2568 = vmatpush.bf16.msra.mxu0 %v2098
    %2569 = vmatpush.bf16.msra.mxu0 %v2090
    %2570 = vmatpush.bf16.msra.mxu0 %v2082
    %2571 = vmatpush.bf16.msra.mxu0 %v2074
    %2572 = vmatpush.bf16.msra.mxu0 %v2066
    %2573 = vmatpush.bf16.msra.mxu0 %v2058
    %2574 = vmatpush.bf16.msra.mxu0 %v2050
    %2575 = vmatmul.bf16.gmra.mxu0 %v940
    %v2576 = vpop.f32.mrf.mxu0
    %v2577 = vadd.f32 %v2563, %v2576
    %v2578 = vpop.f32.mrf.mxu0
    %v2579 = vadd.f32 %v2565, %v2578
    %2580 = vdwg.mxu0
    %2581 = vmatpush.bf16.msra.mxu0 %v2170
    %2582 = vmatpush.bf16.msra.mxu0 %v2162
    %2583 = vmatpush.bf16.msra.mxu0 %v2154
    %2584 = vmatpush.bf16.msra.mxu0 %v2146
    %2585 = vmatpush.bf16.msra.mxu0 %v2138
    %2586 = vmatpush.bf16.msra.mxu0 %v2130
    %2587 = vmatpush.bf16.msra.mxu0 %v2122
    %2588 = vmatpush.bf16.msra.mxu0 %v2114
    %2589 = vmatmul.bf16.gmra.mxu0 %v941
    %v2590 = vpop.f32.mrf.mxu0
    %v2591 = vadd.f32 %v2577, %v2590
    %v2592 = vpop.f32.mrf.mxu0
    %v2593 = vadd.f32 %v2579, %v2592
    %2594 = vdwg.mxu0
    %2595 = vmatpush.bf16.msra.mxu0 %v2234
    %2596 = vmatpush.bf16.msra.mxu0 %v2226
    %2597 = vmatpush.bf16.msra.mxu0 %v2218
    %2598 = vmatpush.bf16.msra.mxu0 %v2210
    %2599 = vmatpush.bf16.msra.mxu0 %v2202
    %2600 = vmatpush.bf16.msra.mxu0 %v2194
    %2601 = vmatpush.bf16.msra.mxu0 %v2186
    %2602 = vmatpush.bf16.msra.mxu0 %v2178
    %2603 = vmatmul.bf16.gmra.mxu0 %v942
    %v2604 = vpop.f32.mrf.mxu0
    %v2605 = vadd.f32 %v2591, %v2604
    %v2606 = vpop.f32.mrf.mxu0
    %v2607 = vadd.f32 %v2593, %v2606
    %2608 = vdwg.mxu0
    %2609 = vmatpush.bf16.msra.mxu0 %v2043
    %2610 = vmatpush.bf16.msra.mxu0 %v2035
    %2611 = vmatpush.bf16.msra.mxu0 %v2027
    %2612 = vmatpush.bf16.msra.mxu0 %v2019
    %2613 = vmatpush.bf16.msra.mxu0 %v2011
    %2614 = vmatpush.bf16.msra.mxu0 %v2003
    %2615 = vmatpush.bf16.msra.mxu0 %v1995
    %2616 = vmatpush.bf16.msra.mxu0 %v1987
    %2617 = vmatmul.bf16.gmra.mxu0 %v939
    %v2618 = vpop.f32.mrf.mxu0
    %v2619 = vadd.f32 %v1203, %v2618
    %v2620 = vpop.f32.mrf.mxu0
    %v2621 = vadd.f32 %v1203, %v2620
    %2622 = vdwg.mxu0
    %2623 = vmatpush.bf16.msra.mxu0 %v2107
    %2624 = vmatpush.bf16.msra.mxu0 %v2099
    %2625 = vmatpush.bf16.msra.mxu0 %v2091
    %2626 = vmatpush.bf16.msra.mxu0 %v2083
    %2627 = vmatpush.bf16.msra.mxu0 %v2075
    %2628 = vmatpush.bf16.msra.mxu0 %v2067
    %2629 = vmatpush.bf16.msra.mxu0 %v2059
    %2630 = vmatpush.bf16.msra.mxu0 %v2051
    %2631 = vmatmul.bf16.gmra.mxu0 %v940
    %v2632 = vpop.f32.mrf.mxu0
    %v2633 = vadd.f32 %v2619, %v2632
    %v2634 = vpop.f32.mrf.mxu0
    %v2635 = vadd.f32 %v2621, %v2634
    %2636 = vdwg.mxu0
    %2637 = vmatpush.bf16.msra.mxu0 %v2171
    %2638 = vmatpush.bf16.msra.mxu0 %v2163
    %2639 = vmatpush.bf16.msra.mxu0 %v2155
    %2640 = vmatpush.bf16.msra.mxu0 %v2147
    %2641 = vmatpush.bf16.msra.mxu0 %v2139
    %2642 = vmatpush.bf16.msra.mxu0 %v2131
    %2643 = vmatpush.bf16.msra.mxu0 %v2123
    %2644 = vmatpush.bf16.msra.mxu0 %v2115
    %2645 = vmatmul.bf16.gmra.mxu0 %v941
    %v2646 = vpop.f32.mrf.mxu0
    %v2647 = vadd.f32 %v2633, %v2646
    %v2648 = vpop.f32.mrf.mxu0
    %v2649 = vadd.f32 %v2635, %v2648
    %2650 = vdwg.mxu0
    %2651 = vmatpush.bf16.msra.mxu0 %v2235
    %2652 = vmatpush.bf16.msra.mxu0 %v2227
    %2653 = vmatpush.bf16.msra.mxu0 %v2219
    %2654 = vmatpush.bf16.msra.mxu0 %v2211
    %2655 = vmatpush.bf16.msra.mxu0 %v2203
    %2656 = vmatpush.bf16.msra.mxu0 %v2195
    %2657 = vmatpush.bf16.msra.mxu0 %v2187
    %2658 = vmatpush.bf16.msra.mxu0 %v2179
    %2659 = vmatmul.bf16.gmra.mxu0 %v942
    %v2660 = vpop.f32.mrf.mxu0
    %v2661 = vadd.f32 %v2647, %v2660
    %v2662 = vpop.f32.mrf.mxu0
    %v2663 = vadd.f32 %v2649, %v2662
    %2664 = vdwg.mxu0
    %2665 = vmatpush.bf16.msra.mxu0 %v2044
    %2666 = vmatpush.bf16.msra.mxu0 %v2036
    %2667 = vmatpush.bf16.msra.mxu0 %v2028
    %2668 = vmatpush.bf16.msra.mxu0 %v2020
    %2669 = vmatpush.bf16.msra.mxu0 %v2012
    %2670 = vmatpush.bf16.msra.mxu0 %v2004
    %2671 = vmatpush.bf16.msra.mxu0 %v1996
    %2672 = vmatpush.bf16.msra.mxu0 %v1988
    %2673 = vmatmul.bf16.gmra.mxu0 %v939
    %v2674 = vpop.f32.mrf.mxu0
    %v2675 = vadd.f32 %v1204, %v2674
    %v2676 = vpop.f32.mrf.mxu0
    %v2677 = vadd.f32 %v1204, %v2676
    %2678 = vdwg.mxu0
    %2679 = vmatpush.bf16.msra.mxu0 %v2108
    %2680 = vmatpush.bf16.msra.mxu0 %v2100
    %2681 = vmatpush.bf16.msra.mxu0 %v2092
    %2682 = vmatpush.bf16.msra.mxu0 %v2084
    %2683 = vmatpush.bf16.msra.mxu0 %v2076
    %2684 = vmatpush.bf16.msra.mxu0 %v2068
    %2685 = vmatpush.bf16.msra.mxu0 %v2060
    %2686 = vmatpush.bf16.msra.mxu0 %v2052
    %2687 = vmatmul.bf16.gmra.mxu0 %v940
    %v2688 = vpop.f32.mrf.mxu0
    %v2689 = vadd.f32 %v2675, %v2688
    %v2690 = vpop.f32.mrf.mxu0
    %v2691 = vadd.f32 %v2677, %v2690
    %2692 = vdwg.mxu0
    %2693 = vmatpush.bf16.msra.mxu0 %v2172
    %2694 = vmatpush.bf16.msra.mxu0 %v2164
    %2695 = vmatpush.bf16.msra.mxu0 %v2156
    %2696 = vmatpush.bf16.msra.mxu0 %v2148
    %2697 = vmatpush.bf16.msra.mxu0 %v2140
    %2698 = vmatpush.bf16.msra.mxu0 %v2132
    %2699 = vmatpush.bf16.msra.mxu0 %v2124
    %2700 = vmatpush.bf16.msra.mxu0 %v2116
    %2701 = vmatmul.bf16.gmra.mxu0 %v941
    %v2702 = vpop.f32.mrf.mxu0
    %v2703 = vadd.f32 %v2689, %v2702
    %v2704 = vpop.f32.mrf.mxu0
    %v2705 = vadd.f32 %v2691, %v2704
    %2706 = vdwg.mxu0
    %2707 = vmatpush.bf16.msra.mxu0 %v2236
    %2708 = vmatpush.bf16.msra.mxu0 %v2228
    %2709 = vmatpush.bf16.msra.mxu0 %v2220
    %2710 = vmatpush.bf16.msra.mxu0 %v2212
    %2711 = vmatpush.bf16.msra.mxu0 %v2204
    %2712 = vmatpush.bf16.msra.mxu0 %v2196
    %2713 = vmatpush.bf16.msra.mxu0 %v2188
    %2714 = vmatpush.bf16.msra.mxu0 %v2180
    %2715 = vmatmul.bf16.gmra.mxu0 %v942
    %v2716 = vpop.f32.mrf.mxu0
    %v2717 = vadd.f32 %v2703, %v2716
    %v2718 = vpop.f32.mrf.mxu0
    %v2719 = vadd.f32 %v2705, %v2718
    %2720 = vdwg.mxu0
    %2721 = vmatpush.bf16.msra.mxu0 %v2045
    %2722 = vmatpush.bf16.msra.mxu0 %v2037
    %2723 = vmatpush.bf16.msra.mxu0 %v2029
    %2724 = vmatpush.bf16.msra.mxu0 %v2021
    %2725 = vmatpush.bf16.msra.mxu0 %v2013
    %2726 = vmatpush.bf16.msra.mxu0 %v2005
    %2727 = vmatpush.bf16.msra.mxu0 %v1997
    %2728 = vmatpush.bf16.msra.mxu0 %v1989
    %2729 = vmatmul.bf16.gmra.mxu0 %v939
    %v2730 = vpop.f32.mrf.mxu0
    %v2731 = vadd.f32 %v1205, %v2730
    %v2732 = vpop.f32.mrf.mxu0
    %v2733 = vadd.f32 %v1205, %v2732
    %2734 = vdwg.mxu0
    %2735 = vmatpush.bf16.msra.mxu0 %v2109
    %2736 = vmatpush.bf16.msra.mxu0 %v2101
    %2737 = vmatpush.bf16.msra.mxu0 %v2093
    %2738 = vmatpush.bf16.msra.mxu0 %v2085
    %2739 = vmatpush.bf16.msra.mxu0 %v2077
    %2740 = vmatpush.bf16.msra.mxu0 %v2069
    %2741 = vmatpush.bf16.msra.mxu0 %v2061
    %2742 = vmatpush.bf16.msra.mxu0 %v2053
    %2743 = vmatmul.bf16.gmra.mxu0 %v940
    %v2744 = vpop.f32.mrf.mxu0
    %v2745 = vadd.f32 %v2731, %v2744
    %v2746 = vpop.f32.mrf.mxu0
    %v2747 = vadd.f32 %v2733, %v2746
    %2748 = vdwg.mxu0
    %2749 = vmatpush.bf16.msra.mxu0 %v2173
    %2750 = vmatpush.bf16.msra.mxu0 %v2165
    %2751 = vmatpush.bf16.msra.mxu0 %v2157
    %2752 = vmatpush.bf16.msra.mxu0 %v2149
    %2753 = vmatpush.bf16.msra.mxu0 %v2141
    %2754 = vmatpush.bf16.msra.mxu0 %v2133
    %2755 = vmatpush.bf16.msra.mxu0 %v2125
    %2756 = vmatpush.bf16.msra.mxu0 %v2117
    %2757 = vmatmul.bf16.gmra.mxu0 %v941
    %v2758 = vpop.f32.mrf.mxu0
    %v2759 = vadd.f32 %v2745, %v2758
    %v2760 = vpop.f32.mrf.mxu0
    %v2761 = vadd.f32 %v2747, %v2760
    %2762 = vdwg.mxu0
    %2763 = vmatpush.bf16.msra.mxu0 %v2237
    %2764 = vmatpush.bf16.msra.mxu0 %v2229
    %2765 = vmatpush.bf16.msra.mxu0 %v2221
    %2766 = vmatpush.bf16.msra.mxu0 %v2213
    %2767 = vmatpush.bf16.msra.mxu0 %v2205
    %2768 = vmatpush.bf16.msra.mxu0 %v2197
    %2769 = vmatpush.bf16.msra.mxu0 %v2189
    %2770 = vmatpush.bf16.msra.mxu0 %v2181
    %2771 = vmatmul.bf16.gmra.mxu0 %v942
    %v2772 = vpop.f32.mrf.mxu0
    %v2773 = vadd.f32 %v2759, %v2772
    %v2774 = vpop.f32.mrf.mxu0
    %v2775 = vadd.f32 %v2761, %v2774
    %2776 = vdwg.mxu0
    %2777 = vmatpush.bf16.msra.mxu0 %v2046
    %2778 = vmatpush.bf16.msra.mxu0 %v2038
    %2779 = vmatpush.bf16.msra.mxu0 %v2030
    %2780 = vmatpush.bf16.msra.mxu0 %v2022
    %2781 = vmatpush.bf16.msra.mxu0 %v2014
    %2782 = vmatpush.bf16.msra.mxu0 %v2006
    %2783 = vmatpush.bf16.msra.mxu0 %v1998
    %2784 = vmatpush.bf16.msra.mxu0 %v1990
    %2785 = vmatmul.bf16.gmra.mxu0 %v939
    %v2786 = vpop.f32.mrf.mxu0
    %v2787 = vadd.f32 %v1206, %v2786
    %v2788 = vpop.f32.mrf.mxu0
    %v2789 = vadd.f32 %v1206, %v2788
    %2790 = vdwg.mxu0
    %2791 = vmatpush.bf16.msra.mxu0 %v2110
    %2792 = vmatpush.bf16.msra.mxu0 %v2102
    %2793 = vmatpush.bf16.msra.mxu0 %v2094
    %2794 = vmatpush.bf16.msra.mxu0 %v2086
    %2795 = vmatpush.bf16.msra.mxu0 %v2078
    %2796 = vmatpush.bf16.msra.mxu0 %v2070
    %2797 = vmatpush.bf16.msra.mxu0 %v2062
    %2798 = vmatpush.bf16.msra.mxu0 %v2054
    %2799 = vmatmul.bf16.gmra.mxu0 %v940
    %v2800 = vpop.f32.mrf.mxu0
    %v2801 = vadd.f32 %v2787, %v2800
    %v2802 = vpop.f32.mrf.mxu0
    %v2803 = vadd.f32 %v2789, %v2802
    %2804 = vdwg.mxu0
    %2805 = vmatpush.bf16.msra.mxu0 %v2174
    %2806 = vmatpush.bf16.msra.mxu0 %v2166
    %2807 = vmatpush.bf16.msra.mxu0 %v2158
    %2808 = vmatpush.bf16.msra.mxu0 %v2150
    %2809 = vmatpush.bf16.msra.mxu0 %v2142
    %2810 = vmatpush.bf16.msra.mxu0 %v2134
    %2811 = vmatpush.bf16.msra.mxu0 %v2126
    %2812 = vmatpush.bf16.msra.mxu0 %v2118
    %2813 = vmatmul.bf16.gmra.mxu0 %v941
    %v2814 = vpop.f32.mrf.mxu0
    %v2815 = vadd.f32 %v2801, %v2814
    %v2816 = vpop.f32.mrf.mxu0
    %v2817 = vadd.f32 %v2803, %v2816
    %2818 = vdwg.mxu0
    %2819 = vmatpush.bf16.msra.mxu0 %v2238
    %2820 = vmatpush.bf16.msra.mxu0 %v2230
    %2821 = vmatpush.bf16.msra.mxu0 %v2222
    %2822 = vmatpush.bf16.msra.mxu0 %v2214
    %2823 = vmatpush.bf16.msra.mxu0 %v2206
    %2824 = vmatpush.bf16.msra.mxu0 %v2198
    %2825 = vmatpush.bf16.msra.mxu0 %v2190
    %2826 = vmatpush.bf16.msra.mxu0 %v2182
    %2827 = vmatmul.bf16.gmra.mxu0 %v942
    %v2828 = vpop.f32.mrf.mxu0
    %v2829 = vadd.f32 %v2815, %v2828
    %v2830 = vpop.f32.mrf.mxu0
    %v2831 = vadd.f32 %v2817, %v2830
    %2832 = vdwg.mxu0
    %2833 = vmatpush.bf16.msra.mxu0 %v2047
    %2834 = vmatpush.bf16.msra.mxu0 %v2039
    %2835 = vmatpush.bf16.msra.mxu0 %v2031
    %2836 = vmatpush.bf16.msra.mxu0 %v2023
    %2837 = vmatpush.bf16.msra.mxu0 %v2015
    %2838 = vmatpush.bf16.msra.mxu0 %v2007
    %2839 = vmatpush.bf16.msra.mxu0 %v1999
    %2840 = vmatpush.bf16.msra.mxu0 %v1991
    %2841 = vmatmul.bf16.gmra.mxu0 %v939
    %v2842 = vpop.f32.mrf.mxu0
    %v2843 = vadd.f32 %v1207, %v2842
    %v2844 = vpop.f32.mrf.mxu0
    %v2845 = vadd.f32 %v1207, %v2844
    %2846 = vdwg.mxu0
    %2847 = vmatpush.bf16.msra.mxu0 %v2111
    %2848 = vmatpush.bf16.msra.mxu0 %v2103
    %2849 = vmatpush.bf16.msra.mxu0 %v2095
    %2850 = vmatpush.bf16.msra.mxu0 %v2087
    %2851 = vmatpush.bf16.msra.mxu0 %v2079
    %2852 = vmatpush.bf16.msra.mxu0 %v2071
    %2853 = vmatpush.bf16.msra.mxu0 %v2063
    %2854 = vmatpush.bf16.msra.mxu0 %v2055
    %2855 = vmatmul.bf16.gmra.mxu0 %v940
    %v2856 = vpop.f32.mrf.mxu0
    %v2857 = vadd.f32 %v2843, %v2856
    %v2858 = vpop.f32.mrf.mxu0
    %v2859 = vadd.f32 %v2845, %v2858
    %2860 = vdwg.mxu0
    %2861 = vmatpush.bf16.msra.mxu0 %v2175
    %2862 = vmatpush.bf16.msra.mxu0 %v2167
    %2863 = vmatpush.bf16.msra.mxu0 %v2159
    %2864 = vmatpush.bf16.msra.mxu0 %v2151
    %2865 = vmatpush.bf16.msra.mxu0 %v2143
    %2866 = vmatpush.bf16.msra.mxu0 %v2135
    %2867 = vmatpush.bf16.msra.mxu0 %v2127
    %2868 = vmatpush.bf16.msra.mxu0 %v2119
    %2869 = vmatmul.bf16.gmra.mxu0 %v941
    %v2870 = vpop.f32.mrf.mxu0
    %v2871 = vadd.f32 %v2857, %v2870
    %v2872 = vpop.f32.mrf.mxu0
    %v2873 = vadd.f32 %v2859, %v2872
    %2874 = vdwg.mxu0
    %2875 = vmatpush.bf16.msra.mxu0 %v2239
    %2876 = vmatpush.bf16.msra.mxu0 %v2231
    %2877 = vmatpush.bf16.msra.mxu0 %v2223
    %2878 = vmatpush.bf16.msra.mxu0 %v2215
    %2879 = vmatpush.bf16.msra.mxu0 %v2207
    %2880 = vmatpush.bf16.msra.mxu0 %v2199
    %2881 = vmatpush.bf16.msra.mxu0 %v2191
    %2882 = vmatpush.bf16.msra.mxu0 %v2183
    %2883 = vmatmul.bf16.gmra.mxu0 %v942
    %v2884 = vpop.f32.mrf.mxu0
    %v2885 = vadd.f32 %v2871, %v2884
    %v2886 = vpop.f32.mrf.mxu0
    %v2887 = vadd.f32 %v2873, %v2886
    %2888 = vdwg.mxu0
    %2889 = vmatpush.bf16.msra.mxu0 %v2048
    %2890 = vmatpush.bf16.msra.mxu0 %v2040
    %2891 = vmatpush.bf16.msra.mxu0 %v2032
    %2892 = vmatpush.bf16.msra.mxu0 %v2024
    %2893 = vmatpush.bf16.msra.mxu0 %v2016
    %2894 = vmatpush.bf16.msra.mxu0 %v2008
    %2895 = vmatpush.bf16.msra.mxu0 %v2000
    %2896 = vmatpush.bf16.msra.mxu0 %v1992
    %2897 = vmatmul.bf16.gmra.mxu0 %v939
    %v2898 = vpop.f32.mrf.mxu0
    %v2899 = vadd.f32 %v1208, %v2898
    %v2900 = vpop.f32.mrf.mxu0
    %v2901 = vadd.f32 %v1208, %v2900
    %2902 = vdwg.mxu0
    %2903 = vmatpush.bf16.msra.mxu0 %v2112
    %2904 = vmatpush.bf16.msra.mxu0 %v2104
    %2905 = vmatpush.bf16.msra.mxu0 %v2096
    %2906 = vmatpush.bf16.msra.mxu0 %v2088
    %2907 = vmatpush.bf16.msra.mxu0 %v2080
    %2908 = vmatpush.bf16.msra.mxu0 %v2072
    %2909 = vmatpush.bf16.msra.mxu0 %v2064
    %2910 = vmatpush.bf16.msra.mxu0 %v2056
    %2911 = vmatmul.bf16.gmra.mxu0 %v940
    %v2912 = vpop.f32.mrf.mxu0
    %v2913 = vadd.f32 %v2899, %v2912
    %v2914 = vpop.f32.mrf.mxu0
    %v2915 = vadd.f32 %v2901, %v2914
    %2916 = vdwg.mxu0
    %2917 = vmatpush.bf16.msra.mxu0 %v2176
    %2918 = vmatpush.bf16.msra.mxu0 %v2168
    %2919 = vmatpush.bf16.msra.mxu0 %v2160
    %2920 = vmatpush.bf16.msra.mxu0 %v2152
    %2921 = vmatpush.bf16.msra.mxu0 %v2144
    %2922 = vmatpush.bf16.msra.mxu0 %v2136
    %2923 = vmatpush.bf16.msra.mxu0 %v2128
    %2924 = vmatpush.bf16.msra.mxu0 %v2120
    %2925 = vmatmul.bf16.gmra.mxu0 %v941
    %v2926 = vpop.f32.mrf.mxu0
    %v2927 = vadd.f32 %v2913, %v2926
    %v2928 = vpop.f32.mrf.mxu0
    %v2929 = vadd.f32 %v2915, %v2928
    %2930 = vdwg.mxu0
    %2931 = vmatpush.bf16.msra.mxu0 %v2240
    %2932 = vmatpush.bf16.msra.mxu0 %v2232
    %2933 = vmatpush.bf16.msra.mxu0 %v2224
    %2934 = vmatpush.bf16.msra.mxu0 %v2216
    %2935 = vmatpush.bf16.msra.mxu0 %v2208
    %2936 = vmatpush.bf16.msra.mxu0 %v2200
    %2937 = vmatpush.bf16.msra.mxu0 %v2192
    %2938 = vmatpush.bf16.msra.mxu0 %v2184
    %2939 = vmatmul.bf16.gmra.mxu0 %v942
    %v2940 = vpop.f32.mrf.mxu0
    %v2941 = vadd.f32 %v2927, %v2940
    %v2942 = vpop.f32.mrf.mxu0
    %v2943 = vadd.f32 %v2929, %v2942
    %2944 = vdwg.mxu0
    %vm2945 = vcmp.ge.f32.partialorder %v2549, 0.0
    %vm2946 = vcmp.ge.f32.partialorder %v2605, 0.0
    %vm2947 = vcmp.ge.f32.partialorder %v2661, 0.0
    %vm2948 = vcmp.ge.f32.partialorder %v2717, 0.0
    %vm2949 = vcmp.ge.f32.partialorder %v2773, 0.0
    %vm2950 = vcmp.ge.f32.partialorder %v2829, 0.0
    %vm2951 = vcmp.ge.f32.partialorder %v2885, 0.0
    %vm2952 = vcmp.ge.f32.partialorder %v2941, 0.0
    %vm2953 = vcmp.ge.f32.partialorder %v2551, 0.0
    %vm2954 = vcmp.ge.f32.partialorder %v2607, 0.0
    %vm2955 = vcmp.ge.f32.partialorder %v2663, 0.0
    %vm2956 = vcmp.ge.f32.partialorder %v2719, 0.0
    %vm2957 = vcmp.ge.f32.partialorder %v2775, 0.0
    %vm2958 = vcmp.ge.f32.partialorder %v2831, 0.0
    %vm2959 = vcmp.ge.f32.partialorder %v2887, 0.0
    %vm2960 = vcmp.ge.f32.partialorder %v2943, 0.0
    %v2961 = vmul.f32 %v2549, 0.2
    %v2962 = vmul.f32 %v2605, 0.2
    %v2963 = vmul.f32 %v2661, 0.2
    %v2964 = vmul.f32 %v2717, 0.2
    %v2965 = vmul.f32 %v2773, 0.2
    %v2966 = vmul.f32 %v2829, 0.2
    %v2967 = vmul.f32 %v2885, 0.2
    %v2968 = vmul.f32 %v2941, 0.2
    %v2969 = vmul.f32 %v2551, 0.2
    %v2970 = vmul.f32 %v2607, 0.2
    %v2971 = vmul.f32 %v2663, 0.2
    %v2972 = vmul.f32 %v2719, 0.2
    %v2973 = vmul.f32 %v2775, 0.2
    %v2974 = vmul.f32 %v2831, 0.2
    %v2975 = vmul.f32 %v2887, 0.2
    %v2976 = vmul.f32 %v2943, 0.2
    %v2977 = vsel %vm2945, %v2549, %v2961
    %v2978 = vsel %vm2946, %v2605, %v2962
    %v2979 = vsel %vm2947, %v2661, %v2963
    %v2980 = vsel %vm2948, %v2717, %v2964
    %v2981 = vsel %vm2949, %v2773, %v2965
    %v2982 = vsel %vm2950, %v2829, %v2966
    %v2983 = vsel %vm2951, %v2885, %v2967
    %v2984 = vsel %vm2952, %v2941, %v2968
    %v2985 = vsel %vm2953, %v2551, %v2969
    %v2986 = vsel %vm2954, %v2607, %v2970
    %v2987 = vsel %vm2955, %v2663, %v2971
    %v2988 = vsel %vm2956, %v2719, %v2972
    %v2989 = vsel %vm2957, %v2775, %v2973
    %v2990 = vsel %vm2958, %v2831, %v2974
    %v2991 = vsel %vm2959, %v2887, %v2975
    %v2992 = vsel %vm2960, %v2943, %v2976
    %v2993 = vpack.c.bf16 %v2985, %v2977
    %v2994 = vpack.c.bf16 %v2986, %v2978
    %v2995 = vpack.c.bf16 %v2987, %v2979
    %v2996 = vpack.c.bf16 %v2988, %v2980
    %v2997 = vpack.c.bf16 %v2989, %v2981
    %v2998 = vpack.c.bf16 %v2990, %v2982
    %v2999 = vpack.c.bf16 %v2991, %v2983
    %v3000 = vpack.c.bf16 %v2992, %v2984
    %v3001 = vld [vmem:[#allocation16] sm:$0xff]
    %v3002 = vld [vmem:[#allocation16 + $0x8] sm:$0xff]
    %v3003 = vld [vmem:[#allocation16 + $0x10] sm:$0xff]
    %v3004 = vld [vmem:[#allocation16 + $0x18] sm:$0xff]
    %v3005 = vld [vmem:[#allocation16 + $0x20] sm:$0xff]
    %v3006 = vld [vmem:[#allocation16 + $0x28] sm:$0xff]
    %v3007 = vld [vmem:[#allocation16 + $0x30] sm:$0xff]
    %v3008 = vld [vmem:[#allocation16 + $0x38] sm:$0xff]
    %v3009 = vld [vmem:[#allocation16 + $0x40] sm:$0xff]
    %v3010 = vld [vmem:[#allocation16 + $0x48] sm:$0xff]
    %v3011 = vld [vmem:[#allocation16 + $0x50] sm:$0xff]
    %v3012 = vld [vmem:[#allocation16 + $0x58] sm:$0xff]
    %v3013 = vld [vmem:[#allocation16 + $0x60] sm:$0xff]
    %v3014 = vld [vmem:[#allocation16 + $0x68] sm:$0xff]
    %v3015 = vld [vmem:[#allocation16 + $0x70] sm:$0xff]
    %v3016 = vld [vmem:[#allocation16 + $0x78] sm:$0xff]
    %v3017 = vld [vmem:[#allocation16 + $0x80] sm:$0xff]
    %v3018 = vld [vmem:[#allocation16 + $0x88] sm:$0xff]
    %v3019 = vld [vmem:[#allocation16 + $0x90] sm:$0xff]
    %v3020 = vld [vmem:[#allocation16 + $0x98] sm:$0xff]
    %v3021 = vld [vmem:[#allocation16 + $0xa0] sm:$0xff]
    %v3022 = vld [vmem:[#allocation16 + $0xa8] sm:$0xff]
    %v3023 = vld [vmem:[#allocation16 + $0xb0] sm:$0xff]
    %v3024 = vld [vmem:[#allocation16 + $0xb8] sm:$0xff]
    %v3025 = vld [vmem:[#allocation16 + $0xc0] sm:$0xff]
    %v3026 = vld [vmem:[#allocation16 + $0xc8] sm:$0xff]
    %v3027 = vld [vmem:[#allocation16 + $0xd0] sm:$0xff]
    %v3028 = vld [vmem:[#allocation16 + $0xd8] sm:$0xff]
    %v3029 = vld [vmem:[#allocation16 + $0xe0] sm:$0xff]
    %v3030 = vld [vmem:[#allocation16 + $0xe8] sm:$0xff]
    %v3031 = vld [vmem:[#allocation16 + $0xf0] sm:$0xff]
    %v3032 = vld [vmem:[#allocation16 + $0xf8] sm:$0xff]
    %v3033 = vld [vmem:[#allocation16 + $0x100] sm:$0xff]
    %v3034 = vld [vmem:[#allocation16 + $0x108] sm:$0xff]
    %v3035 = vld [vmem:[#allocation16 + $0x110] sm:$0xff]
    %v3036 = vld [vmem:[#allocation16 + $0x118] sm:$0xff]
    %v3037 = vld [vmem:[#allocation16 + $0x120] sm:$0xff]
    %v3038 = vld [vmem:[#allocation16 + $0x128] sm:$0xff]
    %v3039 = vld [vmem:[#allocation16 + $0x130] sm:$0xff]
    %v3040 = vld [vmem:[#allocation16 + $0x138] sm:$0xff]
    %v3041 = vld [vmem:[#allocation16 + $0x140] sm:$0xff]
    %v3042 = vld [vmem:[#allocation16 + $0x148] sm:$0xff]
    %v3043 = vld [vmem:[#allocation16 + $0x150] sm:$0xff]
    %v3044 = vld [vmem:[#allocation16 + $0x158] sm:$0xff]
    %v3045 = vld [vmem:[#allocation16 + $0x160] sm:$0xff]
    %v3046 = vld [vmem:[#allocation16 + $0x168] sm:$0xff]
    %v3047 = vld [vmem:[#allocation16 + $0x170] sm:$0xff]
    %v3048 = vld [vmem:[#allocation16 + $0x178] sm:$0xff]
    %v3049 = vld [vmem:[#allocation16 + $0x180] sm:$0xff]
    %v3050 = vld [vmem:[#allocation16 + $0x188] sm:$0xff]
    %v3051 = vld [vmem:[#allocation16 + $0x190] sm:$0xff]
    %v3052 = vld [vmem:[#allocation16 + $0x198] sm:$0xff]
    %v3053 = vld [vmem:[#allocation16 + $0x1a0] sm:$0xff]
    %v3054 = vld [vmem:[#allocation16 + $0x1a8] sm:$0xff]
    %v3055 = vld [vmem:[#allocation16 + $0x1b0] sm:$0xff]
    %v3056 = vld [vmem:[#allocation16 + $0x1b8] sm:$0xff]
    %v3057 = vld [vmem:[#allocation16 + $0x1c0] sm:$0xff]
    %v3058 = vld [vmem:[#allocation16 + $0x1c8] sm:$0xff]
    %v3059 = vld [vmem:[#allocation16 + $0x1d0] sm:$0xff]
    %v3060 = vld [vmem:[#allocation16 + $0x1d8] sm:$0xff]
    %v3061 = vld [vmem:[#allocation16 + $0x1e0] sm:$0xff]
    %v3062 = vld [vmem:[#allocation16 + $0x1e8] sm:$0xff]
    %v3063 = vld [vmem:[#allocation16 + $0x1f0] sm:$0xff]
    %v3064 = vld [vmem:[#allocation16 + $0x1f8] sm:$0xff]
    %v3065 = vld [vmem:[#allocation16 + $0x200] sm:$0xff]
    %v3066 = vld [vmem:[#allocation16 + $0x208] sm:$0xff]
    %v3067 = vld [vmem:[#allocation16 + $0x210] sm:$0xff]
    %v3068 = vld [vmem:[#allocation16 + $0x218] sm:$0xff]
    %v3069 = vld [vmem:[#allocation16 + $0x220] sm:$0xff]
    %v3070 = vld [vmem:[#allocation16 + $0x228] sm:$0xff]
    %v3071 = vld [vmem:[#allocation16 + $0x230] sm:$0xff]
    %v3072 = vld [vmem:[#allocation16 + $0x238] sm:$0xff]
    %v3073 = vld [vmem:[#allocation16 + $0x240] sm:$0xff]
    %v3074 = vld [vmem:[#allocation16 + $0x248] sm:$0xff]
    %v3075 = vld [vmem:[#allocation16 + $0x250] sm:$0xff]
    %v3076 = vld [vmem:[#allocation16 + $0x258] sm:$0xff]
    %v3077 = vld [vmem:[#allocation16 + $0x260] sm:$0xff]
    %v3078 = vld [vmem:[#allocation16 + $0x268] sm:$0xff]
    %v3079 = vld [vmem:[#allocation16 + $0x270] sm:$0xff]
    %v3080 = vld [vmem:[#allocation16 + $0x278] sm:$0xff]
    %v3081 = vld [vmem:[#allocation16 + $0x280] sm:$0xff]
    %v3082 = vld [vmem:[#allocation16 + $0x288] sm:$0xff]
    %v3083 = vld [vmem:[#allocation16 + $0x290] sm:$0xff]
    %v3084 = vld [vmem:[#allocation16 + $0x298] sm:$0xff]
    %v3085 = vld [vmem:[#allocation16 + $0x2a0] sm:$0xff]
    %v3086 = vld [vmem:[#allocation16 + $0x2a8] sm:$0xff]
    %v3087 = vld [vmem:[#allocation16 + $0x2b0] sm:$0xff]
    %v3088 = vld [vmem:[#allocation16 + $0x2b8] sm:$0xff]
    %v3089 = vld [vmem:[#allocation16 + $0x2c0] sm:$0xff]
    %v3090 = vld [vmem:[#allocation16 + $0x2c8] sm:$0xff]
    %v3091 = vld [vmem:[#allocation16 + $0x2d0] sm:$0xff]
    %v3092 = vld [vmem:[#allocation16 + $0x2d8] sm:$0xff]
    %v3093 = vld [vmem:[#allocation16 + $0x2e0] sm:$0xff]
    %v3094 = vld [vmem:[#allocation16 + $0x2e8] sm:$0xff]
    %v3095 = vld [vmem:[#allocation16 + $0x2f0] sm:$0xff]
    %v3096 = vld [vmem:[#allocation16 + $0x2f8] sm:$0xff]
    %v3097 = vld [vmem:[#allocation16 + $0x300] sm:$0xff]
    %v3098 = vld [vmem:[#allocation16 + $0x308] sm:$0xff]
    %v3099 = vld [vmem:[#allocation16 + $0x310] sm:$0xff]
    %v3100 = vld [vmem:[#allocation16 + $0x318] sm:$0xff]
    %v3101 = vld [vmem:[#allocation16 + $0x320] sm:$0xff]
    %v3102 = vld [vmem:[#allocation16 + $0x328] sm:$0xff]
    %v3103 = vld [vmem:[#allocation16 + $0x330] sm:$0xff]
    %v3104 = vld [vmem:[#allocation16 + $0x338] sm:$0xff]
    %v3105 = vld [vmem:[#allocation16 + $0x340] sm:$0xff]
    %v3106 = vld [vmem:[#allocation16 + $0x348] sm:$0xff]
    %v3107 = vld [vmem:[#allocation16 + $0x350] sm:$0xff]
    %v3108 = vld [vmem:[#allocation16 + $0x358] sm:$0xff]
    %v3109 = vld [vmem:[#allocation16 + $0x360] sm:$0xff]
    %v3110 = vld [vmem:[#allocation16 + $0x368] sm:$0xff]
    %v3111 = vld [vmem:[#allocation16 + $0x370] sm:$0xff]
    %v3112 = vld [vmem:[#allocation16 + $0x378] sm:$0xff]
    %v3113 = vld [vmem:[#allocation16 + $0x380] sm:$0xff]
    %v3114 = vld [vmem:[#allocation16 + $0x388] sm:$0xff]
    %v3115 = vld [vmem:[#allocation16 + $0x390] sm:$0xff]
    %v3116 = vld [vmem:[#allocation16 + $0x398] sm:$0xff]
    %v3117 = vld [vmem:[#allocation16 + $0x3a0] sm:$0xff]
    %v3118 = vld [vmem:[#allocation16 + $0x3a8] sm:$0xff]
    %v3119 = vld [vmem:[#allocation16 + $0x3b0] sm:$0xff]
    %v3120 = vld [vmem:[#allocation16 + $0x3b8] sm:$0xff]
    %v3121 = vld [vmem:[#allocation16 + $0x3c0] sm:$0xff]
    %v3122 = vld [vmem:[#allocation16 + $0x3c8] sm:$0xff]
    %v3123 = vld [vmem:[#allocation16 + $0x3d0] sm:$0xff]
    %v3124 = vld [vmem:[#allocation16 + $0x3d8] sm:$0xff]
    %v3125 = vld [vmem:[#allocation16 + $0x3e0] sm:$0xff]
    %v3126 = vld [vmem:[#allocation16 + $0x3e8] sm:$0xff]
    %v3127 = vld [vmem:[#allocation16 + $0x3f0] sm:$0xff]
    %v3128 = vld [vmem:[#allocation16 + $0x3f8] sm:$0xff]
    %v3129 = vld [vmem:[%s10] sm:$0x3]
    %v3131 = vperm.slane %v3129, 0
    %v3132 = vperm.slane %v3129, 1
    %v3263 = vunpack.c.l.b16 %v3001
    %v3264 = vunpack.c.h.b16 %v3001
    %v3265 = vunpack.c.l.b16 %v3002
    %v3266 = vunpack.c.h.b16 %v3002
    %v3267 = vunpack.c.l.b16 %v3003
    %v3268 = vunpack.c.h.b16 %v3003
    %v3269 = vunpack.c.l.b16 %v3004
    %v3270 = vunpack.c.h.b16 %v3004
    %v3271 = vunpack.c.l.b16 %v3005
    %v3272 = vunpack.c.h.b16 %v3005
    %v3273 = vunpack.c.l.b16 %v3006
    %v3274 = vunpack.c.h.b16 %v3006
    %v3275 = vunpack.c.l.b16 %v3007
    %v3276 = vunpack.c.h.b16 %v3007
    %v3277 = vunpack.c.l.b16 %v3008
    %v3278 = vunpack.c.h.b16 %v3008
    %v3279 = vunpack.c.l.b16 %v3009
    %v3280 = vunpack.c.h.b16 %v3009
    %v3281 = vunpack.c.l.b16 %v3010
    %v3282 = vunpack.c.h.b16 %v3010
    %v3283 = vunpack.c.l.b16 %v3011
    %v3284 = vunpack.c.h.b16 %v3011
    %v3285 = vunpack.c.l.b16 %v3012
    %v3286 = vunpack.c.h.b16 %v3012
    %v3287 = vunpack.c.l.b16 %v3013
    %v3288 = vunpack.c.h.b16 %v3013
    %v3289 = vunpack.c.l.b16 %v3014
    %v3290 = vunpack.c.h.b16 %v3014
    %v3291 = vunpack.c.l.b16 %v3015
    %v3292 = vunpack.c.h.b16 %v3015
    %v3293 = vunpack.c.l.b16 %v3016
    %v3294 = vunpack.c.h.b16 %v3016
    %v3295 = vunpack.c.l.b16 %v3017
    %v3296 = vunpack.c.h.b16 %v3017
    %v3297 = vunpack.c.l.b16 %v3018
    %v3298 = vunpack.c.h.b16 %v3018
    %v3299 = vunpack.c.l.b16 %v3019
    %v3300 = vunpack.c.h.b16 %v3019
    %v3301 = vunpack.c.l.b16 %v3020
    %v3302 = vunpack.c.h.b16 %v3020
    %v3303 = vunpack.c.l.b16 %v3021
    %v3304 = vunpack.c.h.b16 %v3021
    %v3305 = vunpack.c.l.b16 %v3022
    %v3306 = vunpack.c.h.b16 %v3022
    %v3307 = vunpack.c.l.b16 %v3023
    %v3308 = vunpack.c.h.b16 %v3023
    %v3309 = vunpack.c.l.b16 %v3024
    %v3310 = vunpack.c.h.b16 %v3024
    %v3311 = vunpack.c.l.b16 %v3025
    %v3312 = vunpack.c.h.b16 %v3025
    %v3313 = vunpack.c.l.b16 %v3026
    %v3314 = vunpack.c.h.b16 %v3026
    %v3315 = vunpack.c.l.b16 %v3027
    %v3316 = vunpack.c.h.b16 %v3027
    %v3317 = vunpack.c.l.b16 %v3028
    %v3318 = vunpack.c.h.b16 %v3028
    %v3319 = vunpack.c.l.b16 %v3029
    %v3320 = vunpack.c.h.b16 %v3029
    %v3321 = vunpack.c.l.b16 %v3030
    %v3322 = vunpack.c.h.b16 %v3030
    %v3323 = vunpack.c.l.b16 %v3031
    %v3324 = vunpack.c.h.b16 %v3031
    %v3325 = vunpack.c.l.b16 %v3032
    %v3326 = vunpack.c.h.b16 %v3032
    %v3327 = vunpack.c.l.b16 %v3033
    %v3328 = vunpack.c.h.b16 %v3033
    %v3329 = vunpack.c.l.b16 %v3034
    %v3330 = vunpack.c.h.b16 %v3034
    %v3331 = vunpack.c.l.b16 %v3035
    %v3332 = vunpack.c.h.b16 %v3035
    %v3333 = vunpack.c.l.b16 %v3036
    %v3334 = vunpack.c.h.b16 %v3036
    %v3335 = vunpack.c.l.b16 %v3037
    %v3336 = vunpack.c.h.b16 %v3037
    %v3337 = vunpack.c.l.b16 %v3038
    %v3338 = vunpack.c.h.b16 %v3038
    %v3339 = vunpack.c.l.b16 %v3039
    %v3340 = vunpack.c.h.b16 %v3039
    %v3341 = vunpack.c.l.b16 %v3040
    %v3342 = vunpack.c.h.b16 %v3040
    %v3343 = vunpack.c.l.b16 %v3041
    %v3344 = vunpack.c.h.b16 %v3041
    %v3345 = vunpack.c.l.b16 %v3042
    %v3346 = vunpack.c.h.b16 %v3042
    %v3347 = vunpack.c.l.b16 %v3043
    %v3348 = vunpack.c.h.b16 %v3043
    %v3349 = vunpack.c.l.b16 %v3044
    %v3350 = vunpack.c.h.b16 %v3044
    %v3351 = vunpack.c.l.b16 %v3045
    %v3352 = vunpack.c.h.b16 %v3045
    %v3353 = vunpack.c.l.b16 %v3046
    %v3354 = vunpack.c.h.b16 %v3046
    %v3355 = vunpack.c.l.b16 %v3047
    %v3356 = vunpack.c.h.b16 %v3047
    %v3357 = vunpack.c.l.b16 %v3048
    %v3358 = vunpack.c.h.b16 %v3048
    %v3359 = vunpack.c.l.b16 %v3049
    %v3360 = vunpack.c.h.b16 %v3049
    %v3361 = vunpack.c.l.b16 %v3050
    %v3362 = vunpack.c.h.b16 %v3050
    %v3363 = vunpack.c.l.b16 %v3051
    %v3364 = vunpack.c.h.b16 %v3051
    %v3365 = vunpack.c.l.b16 %v3052
    %v3366 = vunpack.c.h.b16 %v3052
    %v3367 = vunpack.c.l.b16 %v3053
    %v3368 = vunpack.c.h.b16 %v3053
    %v3369 = vunpack.c.l.b16 %v3054
    %v3370 = vunpack.c.h.b16 %v3054
    %v3371 = vunpack.c.l.b16 %v3055
    %v3372 = vunpack.c.h.b16 %v3055
    %v3373 = vunpack.c.l.b16 %v3056
    %v3374 = vunpack.c.h.b16 %v3056
    %v3375 = vunpack.c.l.b16 %v3057
    %v3376 = vunpack.c.h.b16 %v3057
    %v3377 = vunpack.c.l.b16 %v3058
    %v3378 = vunpack.c.h.b16 %v3058
    %v3379 = vunpack.c.l.b16 %v3059
    %v3380 = vunpack.c.h.b16 %v3059
    %v3381 = vunpack.c.l.b16 %v3060
    %v3382 = vunpack.c.h.b16 %v3060
    %v3383 = vunpack.c.l.b16 %v3061
    %v3384 = vunpack.c.h.b16 %v3061
    %v3385 = vunpack.c.l.b16 %v3062
    %v3386 = vunpack.c.h.b16 %v3062
    %v3387 = vunpack.c.l.b16 %v3063
    %v3388 = vunpack.c.h.b16 %v3063
    %v3389 = vunpack.c.l.b16 %v3064
    %v3390 = vunpack.c.h.b16 %v3064
    %v3391 = vunpack.c.l.b16 %v3065
    %v3392 = vunpack.c.h.b16 %v3065
    %v3393 = vunpack.c.l.b16 %v3066
    %v3394 = vunpack.c.h.b16 %v3066
    %v3395 = vunpack.c.l.b16 %v3067
    %v3396 = vunpack.c.h.b16 %v3067
    %v3397 = vunpack.c.l.b16 %v3068
    %v3398 = vunpack.c.h.b16 %v3068
    %v3399 = vunpack.c.l.b16 %v3069
    %v3400 = vunpack.c.h.b16 %v3069
    %v3401 = vunpack.c.l.b16 %v3070
    %v3402 = vunpack.c.h.b16 %v3070
    %v3403 = vunpack.c.l.b16 %v3071
    %v3404 = vunpack.c.h.b16 %v3071
    %v3405 = vunpack.c.l.b16 %v3072
    %v3406 = vunpack.c.h.b16 %v3072
    %v3407 = vunpack.c.l.b16 %v3073
    %v3408 = vunpack.c.h.b16 %v3073
    %v3409 = vunpack.c.l.b16 %v3074
    %v3410 = vunpack.c.h.b16 %v3074
    %v3411 = vunpack.c.l.b16 %v3075
    %v3412 = vunpack.c.h.b16 %v3075
    %v3413 = vunpack.c.l.b16 %v3076
    %v3414 = vunpack.c.h.b16 %v3076
    %v3415 = vunpack.c.l.b16 %v3077
    %v3416 = vunpack.c.h.b16 %v3077
    %v3417 = vunpack.c.l.b16 %v3078
    %v3418 = vunpack.c.h.b16 %v3078
    %v3419 = vunpack.c.l.b16 %v3079
    %v3420 = vunpack.c.h.b16 %v3079
    %v3421 = vunpack.c.l.b16 %v3080
    %v3422 = vunpack.c.h.b16 %v3080
    %v3423 = vunpack.c.l.b16 %v3081
    %v3424 = vunpack.c.h.b16 %v3081
    %v3425 = vunpack.c.l.b16 %v3082
    %v3426 = vunpack.c.h.b16 %v3082
    %v3427 = vunpack.c.l.b16 %v3083
    %v3428 = vunpack.c.h.b16 %v3083
    %v3429 = vunpack.c.l.b16 %v3084
    %v3430 = vunpack.c.h.b16 %v3084
    %v3431 = vunpack.c.l.b16 %v3085
    %v3432 = vunpack.c.h.b16 %v3085
    %v3433 = vunpack.c.l.b16 %v3086
    %v3434 = vunpack.c.h.b16 %v3086
    %v3435 = vunpack.c.l.b16 %v3087
    %v3436 = vunpack.c.h.b16 %v3087
    %v3437 = vunpack.c.l.b16 %v3088
    %v3438 = vunpack.c.h.b16 %v3088
    %v3439 = vunpack.c.l.b16 %v3089
    %v3440 = vunpack.c.h.b16 %v3089
    %v3441 = vunpack.c.l.b16 %v3090
    %v3442 = vunpack.c.h.b16 %v3090
    %v3443 = vunpack.c.l.b16 %v3091
    %v3444 = vunpack.c.h.b16 %v3091
    %v3445 = vunpack.c.l.b16 %v3092
    %v3446 = vunpack.c.h.b16 %v3092
    %v3447 = vunpack.c.l.b16 %v3093
    %v3448 = vunpack.c.h.b16 %v3093
    %v3449 = vunpack.c.l.b16 %v3094
    %v3450 = vunpack.c.h.b16 %v3094
    %v3451 = vunpack.c.l.b16 %v3095
    %v3452 = vunpack.c.h.b16 %v3095
    %v3453 = vunpack.c.l.b16 %v3096
    %v3454 = vunpack.c.h.b16 %v3096
    %v3455 = vunpack.c.l.b16 %v3097
    %v3456 = vunpack.c.h.b16 %v3097
    %v3457 = vunpack.c.l.b16 %v3098
    %v3458 = vunpack.c.h.b16 %v3098
    %v3459 = vunpack.c.l.b16 %v3099
    %v3460 = vunpack.c.h.b16 %v3099
    %v3461 = vunpack.c.l.b16 %v3100
    %v3462 = vunpack.c.h.b16 %v3100
    %v3463 = vunpack.c.l.b16 %v3101
    %v3464 = vunpack.c.h.b16 %v3101
    %v3465 = vunpack.c.l.b16 %v3102
    %v3466 = vunpack.c.h.b16 %v3102
    %v3467 = vunpack.c.l.b16 %v3103
    %v3468 = vunpack.c.h.b16 %v3103
    %v3469 = vunpack.c.l.b16 %v3104
    %v3470 = vunpack.c.h.b16 %v3104
    %v3471 = vunpack.c.l.b16 %v3105
    %v3472 = vunpack.c.h.b16 %v3105
    %v3473 = vunpack.c.l.b16 %v3106
    %v3474 = vunpack.c.h.b16 %v3106
    %v3475 = vunpack.c.l.b16 %v3107
    %v3476 = vunpack.c.h.b16 %v3107
    %v3477 = vunpack.c.l.b16 %v3108
    %v3478 = vunpack.c.h.b16 %v3108
    %v3479 = vunpack.c.l.b16 %v3109
    %v3480 = vunpack.c.h.b16 %v3109
    %v3481 = vunpack.c.l.b16 %v3110
    %v3482 = vunpack.c.h.b16 %v3110
    %v3483 = vunpack.c.l.b16 %v3111
    %v3484 = vunpack.c.h.b16 %v3111
    %v3485 = vunpack.c.l.b16 %v3112
    %v3486 = vunpack.c.h.b16 %v3112
    %v3487 = vunpack.c.l.b16 %v3113
    %v3488 = vunpack.c.h.b16 %v3113
    %v3489 = vunpack.c.l.b16 %v3114
    %v3490 = vunpack.c.h.b16 %v3114
    %v3491 = vunpack.c.l.b16 %v3115
    %v3492 = vunpack.c.h.b16 %v3115
    %v3493 = vunpack.c.l.b16 %v3116
    %v3494 = vunpack.c.h.b16 %v3116
    %v3495 = vunpack.c.l.b16 %v3117
    %v3496 = vunpack.c.h.b16 %v3117
    %v3497 = vunpack.c.l.b16 %v3118
    %v3498 = vunpack.c.h.b16 %v3118
    %v3499 = vunpack.c.l.b16 %v3119
    %v3500 = vunpack.c.h.b16 %v3119
    %v3501 = vunpack.c.l.b16 %v3120
    %v3502 = vunpack.c.h.b16 %v3120
    %v3503 = vunpack.c.l.b16 %v3121
    %v3504 = vunpack.c.h.b16 %v3121
    %v3505 = vunpack.c.l.b16 %v3122
    %v3506 = vunpack.c.h.b16 %v3122
    %v3507 = vunpack.c.l.b16 %v3123
    %v3508 = vunpack.c.h.b16 %v3123
    %v3509 = vunpack.c.l.b16 %v3124
    %v3510 = vunpack.c.h.b16 %v3124
    %v3511 = vunpack.c.l.b16 %v3125
    %v3512 = vunpack.c.h.b16 %v3125
    %v3513 = vunpack.c.l.b16 %v3126
    %v3514 = vunpack.c.h.b16 %v3126
    %v3515 = vunpack.c.l.b16 %v3127
    %v3516 = vunpack.c.h.b16 %v3127
    %v3517 = vunpack.c.l.b16 %v3128
    %v3518 = vunpack.c.h.b16 %v3128
    %v3519 = vpack.c.b16 %v3265, %v3263
    %v3520 = vpack.c.b16 %v3266, %v3264
    %v3521 = vpack.c.b16 %v3269, %v3267
    %v3522 = vpack.c.b16 %v3270, %v3268
    %v3523 = vpack.c.b16 %v3273, %v3271
    %v3524 = vpack.c.b16 %v3274, %v3272
    %v3525 = vpack.c.b16 %v3277, %v3275
    %v3526 = vpack.c.b16 %v3278, %v3276
    %v3527 = vpack.c.b16 %v3281, %v3279
    %v3528 = vpack.c.b16 %v3282, %v3280
    %v3529 = vpack.c.b16 %v3285, %v3283
    %v3530 = vpack.c.b16 %v3286, %v3284
    %v3531 = vpack.c.b16 %v3289, %v3287
    %v3532 = vpack.c.b16 %v3290, %v3288
    %v3533 = vpack.c.b16 %v3293, %v3291
    %v3534 = vpack.c.b16 %v3294, %v3292
    %v3535 = vpack.c.b16 %v3297, %v3295
    %v3536 = vpack.c.b16 %v3298, %v3296
    %v3537 = vpack.c.b16 %v3301, %v3299
    %v3538 = vpack.c.b16 %v3302, %v3300
    %v3539 = vpack.c.b16 %v3305, %v3303
    %v3540 = vpack.c.b16 %v3306, %v3304
    %v3541 = vpack.c.b16 %v3309, %v3307
    %v3542 = vpack.c.b16 %v3310, %v3308
    %v3543 = vpack.c.b16 %v3313, %v3311
    %v3544 = vpack.c.b16 %v3314, %v3312
    %v3545 = vpack.c.b16 %v3317, %v3315
    %v3546 = vpack.c.b16 %v3318, %v3316
    %v3547 = vpack.c.b16 %v3321, %v3319
    %v3548 = vpack.c.b16 %v3322, %v3320
    %v3549 = vpack.c.b16 %v3325, %v3323
    %v3550 = vpack.c.b16 %v3326, %v3324
    %v3551 = vpack.c.b16 %v3329, %v3327
    %v3552 = vpack.c.b16 %v3330, %v3328
    %v3553 = vpack.c.b16 %v3333, %v3331
    %v3554 = vpack.c.b16 %v3334, %v3332
    %v3555 = vpack.c.b16 %v3337, %v3335
    %v3556 = vpack.c.b16 %v3338, %v3336
    %v3557 = vpack.c.b16 %v3341, %v3339
    %v3558 = vpack.c.b16 %v3342, %v3340
    %v3559 = vpack.c.b16 %v3345, %v3343
    %v3560 = vpack.c.b16 %v3346, %v3344
    %v3561 = vpack.c.b16 %v3349, %v3347
    %v3562 = vpack.c.b16 %v3350, %v3348
    %v3563 = vpack.c.b16 %v3353, %v3351
    %v3564 = vpack.c.b16 %v3354, %v3352
    %v3565 = vpack.c.b16 %v3357, %v3355
    %v3566 = vpack.c.b16 %v3358, %v3356
    %v3567 = vpack.c.b16 %v3361, %v3359
    %v3568 = vpack.c.b16 %v3362, %v3360
    %v3569 = vpack.c.b16 %v3365, %v3363
    %v3570 = vpack.c.b16 %v3366, %v3364
    %v3571 = vpack.c.b16 %v3369, %v3367
    %v3572 = vpack.c.b16 %v3370, %v3368
    %v3573 = vpack.c.b16 %v3373, %v3371
    %v3574 = vpack.c.b16 %v3374, %v3372
    %v3575 = vpack.c.b16 %v3377, %v3375
    %v3576 = vpack.c.b16 %v3378, %v3376
    %v3577 = vpack.c.b16 %v3381, %v3379
    %v3578 = vpack.c.b16 %v3382, %v3380
    %v3579 = vpack.c.b16 %v3385, %v3383
    %v3580 = vpack.c.b16 %v3386, %v3384
    %v3581 = vpack.c.b16 %v3389, %v3387
    %v3582 = vpack.c.b16 %v3390, %v3388
    %v3583 = vpack.c.b16 %v3393, %v3391
    %v3584 = vpack.c.b16 %v3394, %v3392
    %v3585 = vpack.c.b16 %v3397, %v3395
    %v3586 = vpack.c.b16 %v3398, %v3396
    %v3587 = vpack.c.b16 %v3401, %v3399
    %v3588 = vpack.c.b16 %v3402, %v3400
    %v3589 = vpack.c.b16 %v3405, %v3403
    %v3590 = vpack.c.b16 %v3406, %v3404
    %v3591 = vpack.c.b16 %v3409, %v3407
    %v3592 = vpack.c.b16 %v3410, %v3408
    %v3593 = vpack.c.b16 %v3413, %v3411
    %v3594 = vpack.c.b16 %v3414, %v3412
    %v3595 = vpack.c.b16 %v3417, %v3415
    %v3596 = vpack.c.b16 %v3418, %v3416
    %v3597 = vpack.c.b16 %v3421, %v3419
    %v3598 = vpack.c.b16 %v3422, %v3420
    %v3599 = vpack.c.b16 %v3425, %v3423
    %v3600 = vpack.c.b16 %v3426, %v3424
    %v3601 = vpack.c.b16 %v3429, %v3427
    %v3602 = vpack.c.b16 %v3430, %v3428
    %v3603 = vpack.c.b16 %v3433, %v3431
    %v3604 = vpack.c.b16 %v3434, %v3432
    %v3605 = vpack.c.b16 %v3437, %v3435
    %v3606 = vpack.c.b16 %v3438, %v3436
    %v3607 = vpack.c.b16 %v3441, %v3439
    %v3608 = vpack.c.b16 %v3442, %v3440
    %v3609 = vpack.c.b16 %v3445, %v3443
    %v3610 = vpack.c.b16 %v3446, %v3444
    %v3611 = vpack.c.b16 %v3449, %v3447
    %v3612 = vpack.c.b16 %v3450, %v3448
    %v3613 = vpack.c.b16 %v3453, %v3451
    %v3614 = vpack.c.b16 %v3454, %v3452
    %v3615 = vpack.c.b16 %v3457, %v3455
    %v3616 = vpack.c.b16 %v3458, %v3456
    %v3617 = vpack.c.b16 %v3461, %v3459
    %v3618 = vpack.c.b16 %v3462, %v3460
    %v3619 = vpack.c.b16 %v3465, %v3463
    %v3620 = vpack.c.b16 %v3466, %v3464
    %v3621 = vpack.c.b16 %v3469, %v3467
    %v3622 = vpack.c.b16 %v3470, %v3468
    %v3623 = vpack.c.b16 %v3473, %v3471
    %v3624 = vpack.c.b16 %v3474, %v3472
    %v3625 = vpack.c.b16 %v3477, %v3475
    %v3626 = vpack.c.b16 %v3478, %v3476
    %v3627 = vpack.c.b16 %v3481, %v3479
    %v3628 = vpack.c.b16 %v3482, %v3480
    %v3629 = vpack.c.b16 %v3485, %v3483
    %v3630 = vpack.c.b16 %v3486, %v3484
    %v3631 = vpack.c.b16 %v3489, %v3487
    %v3632 = vpack.c.b16 %v3490, %v3488
    %v3633 = vpack.c.b16 %v3493, %v3491
    %v3634 = vpack.c.b16 %v3494, %v3492
    %v3635 = vpack.c.b16 %v3497, %v3495
    %v3636 = vpack.c.b16 %v3498, %v3496
    %v3637 = vpack.c.b16 %v3501, %v3499
    %v3638 = vpack.c.b16 %v3502, %v3500
    %v3639 = vpack.c.b16 %v3505, %v3503
    %v3640 = vpack.c.b16 %v3506, %v3504
    %v3641 = vpack.c.b16 %v3509, %v3507
    %v3642 = vpack.c.b16 %v3510, %v3508
    %v3643 = vpack.c.b16 %v3513, %v3511
    %v3644 = vpack.c.b16 %v3514, %v3512
    %v3645 = vpack.c.b16 %v3517, %v3515
    %v3646 = vpack.c.b16 %v3518, %v3516
    %3775 = vmatpush.bf16.msra.mxu0 %v3533
    %3776 = vmatpush.bf16.msra.mxu0 %v3531
    %3777 = vmatpush.bf16.msra.mxu0 %v3529
    %3778 = vmatpush.bf16.msra.mxu0 %v3527
    %3779 = vmatpush.bf16.msra.mxu0 %v3525
    %3780 = vmatpush.bf16.msra.mxu0 %v3523
    %3781 = vmatpush.bf16.msra.mxu0 %v3521
    %3782 = vmatpush.bf16.msra.mxu0 %v3519
    %3783 = vmatmul.bf16.gmra.mxu0 %v2993
    %v3784 = vpop.f32.mrf.mxu0
    %v3785 = vadd.f32 %v3131, %v3784
    %v3786 = vpop.f32.mrf.mxu0
    %v3787 = vadd.f32 %v3131, %v3786
    %3788 = vdwg.mxu0
    %3789 = vmatpush.bf16.msra.mxu0 %v3549
    %3790 = vmatpush.bf16.msra.mxu0 %v3547
    %3791 = vmatpush.bf16.msra.mxu0 %v3545
    %3792 = vmatpush.bf16.msra.mxu0 %v3543
    %3793 = vmatpush.bf16.msra.mxu0 %v3541
    %3794 = vmatpush.bf16.msra.mxu0 %v3539
    %3795 = vmatpush.bf16.msra.mxu0 %v3537
    %3796 = vmatpush.bf16.msra.mxu0 %v3535
    %3797 = vmatmul.bf16.gmra.mxu0 %v2994
    %v3798 = vpop.f32.mrf.mxu0
    %v3799 = vadd.f32 %v3785, %v3798
    %v3800 = vpop.f32.mrf.mxu0
    %v3801 = vadd.f32 %v3787, %v3800
    %3802 = vdwg.mxu0
    %3803 = vmatpush.bf16.msra.mxu0 %v3565
    %3804 = vmatpush.bf16.msra.mxu0 %v3563
    %3805 = vmatpush.bf16.msra.mxu0 %v3561
    %3806 = vmatpush.bf16.msra.mxu0 %v3559
    %3807 = vmatpush.bf16.msra.mxu0 %v3557
    %3808 = vmatpush.bf16.msra.mxu0 %v3555
    %3809 = vmatpush.bf16.msra.mxu0 %v3553
    %3810 = vmatpush.bf16.msra.mxu0 %v3551
    %3811 = vmatmul.bf16.gmra.mxu0 %v2995
    %v3812 = vpop.f32.mrf.mxu0
    %v3813 = vadd.f32 %v3799, %v3812
    %v3814 = vpop.f32.mrf.mxu0
    %v3815 = vadd.f32 %v3801, %v3814
    %3816 = vdwg.mxu0
    %3817 = vmatpush.bf16.msra.mxu0 %v3581
    %3818 = vmatpush.bf16.msra.mxu0 %v3579
    %3819 = vmatpush.bf16.msra.mxu0 %v3577
    %3820 = vmatpush.bf16.msra.mxu0 %v3575
    %3821 = vmatpush.bf16.msra.mxu0 %v3573
    %3822 = vmatpush.bf16.msra.mxu0 %v3571
    %3823 = vmatpush.bf16.msra.mxu0 %v3569
    %3824 = vmatpush.bf16.msra.mxu0 %v3567
    %3825 = vmatmul.bf16.gmra.mxu0 %v2996
    %v3826 = vpop.f32.mrf.mxu0
    %v3827 = vadd.f32 %v3813, %v3826
    %v3828 = vpop.f32.mrf.mxu0
    %v3829 = vadd.f32 %v3815, %v3828
    %3830 = vdwg.mxu0
    %3831 = vmatpush.bf16.msra.mxu0 %v3597
    %3832 = vmatpush.bf16.msra.mxu0 %v3595
    %3833 = vmatpush.bf16.msra.mxu0 %v3593
    %3834 = vmatpush.bf16.msra.mxu0 %v3591
    %3835 = vmatpush.bf16.msra.mxu0 %v3589
    %3836 = vmatpush.bf16.msra.mxu0 %v3587
    %3837 = vmatpush.bf16.msra.mxu0 %v3585
    %3838 = vmatpush.bf16.msra.mxu0 %v3583
    %3839 = vmatmul.bf16.gmra.mxu0 %v2997
    %v3840 = vpop.f32.mrf.mxu0
    %v3841 = vadd.f32 %v3827, %v3840
    %v3842 = vpop.f32.mrf.mxu0
    %v3843 = vadd.f32 %v3829, %v3842
    %3844 = vdwg.mxu0
    %3845 = vmatpush.bf16.msra.mxu0 %v3613
    %3846 = vmatpush.bf16.msra.mxu0 %v3611
    %3847 = vmatpush.bf16.msra.mxu0 %v3609
    %3848 = vmatpush.bf16.msra.mxu0 %v3607
    %3849 = vmatpush.bf16.msra.mxu0 %v3605
    %3850 = vmatpush.bf16.msra.mxu0 %v3603
    %3851 = vmatpush.bf16.msra.mxu0 %v3601
    %3852 = vmatpush.bf16.msra.mxu0 %v3599
    %3853 = vmatmul.bf16.gmra.mxu0 %v2998
    %v3854 = vpop.f32.mrf.mxu0
    %v3855 = vadd.f32 %v3841, %v3854
    %v3856 = vpop.f32.mrf.mxu0
    %v3857 = vadd.f32 %v3843, %v3856
    %3858 = vdwg.mxu0
    %3859 = vmatpush.bf16.msra.mxu0 %v3629
    %3860 = vmatpush.bf16.msra.mxu0 %v3627
    %3861 = vmatpush.bf16.msra.mxu0 %v3625
    %3862 = vmatpush.bf16.msra.mxu0 %v3623
    %3863 = vmatpush.bf16.msra.mxu0 %v3621
    %3864 = vmatpush.bf16.msra.mxu0 %v3619
    %3865 = vmatpush.bf16.msra.mxu0 %v3617
    %3866 = vmatpush.bf16.msra.mxu0 %v3615
    %3867 = vmatmul.bf16.gmra.mxu0 %v2999
    %v3868 = vpop.f32.mrf.mxu0
    %v3869 = vadd.f32 %v3855, %v3868
    %v3870 = vpop.f32.mrf.mxu0
    %v3871 = vadd.f32 %v3857, %v3870
    %3872 = vdwg.mxu0
    %3873 = vmatpush.bf16.msra.mxu0 %v3645
    %3874 = vmatpush.bf16.msra.mxu0 %v3643
    %3875 = vmatpush.bf16.msra.mxu0 %v3641
    %3876 = vmatpush.bf16.msra.mxu0 %v3639
    %3877 = vmatpush.bf16.msra.mxu0 %v3637
    %3878 = vmatpush.bf16.msra.mxu0 %v3635
    %3879 = vmatpush.bf16.msra.mxu0 %v3633
    %3880 = vmatpush.bf16.msra.mxu0 %v3631
    %3881 = vmatmul.bf16.gmra.mxu0 %v3000
    %v3882 = vpop.f32.mrf.mxu0
    %v3883 = vadd.f32 %v3869, %v3882
    %v3884 = vpop.f32.mrf.mxu0
    %v3885 = vadd.f32 %v3871, %v3884
    %3886 = vdwg.mxu0
    %3887 = vmatpush.bf16.msra.mxu0 %v3534
    %3888 = vmatpush.bf16.msra.mxu0 %v3532
    %3889 = vmatpush.bf16.msra.mxu0 %v3530
    %3890 = vmatpush.bf16.msra.mxu0 %v3528
    %3891 = vmatpush.bf16.msra.mxu0 %v3526
    %3892 = vmatpush.bf16.msra.mxu0 %v3524
    %3893 = vmatpush.bf16.msra.mxu0 %v3522
    %3894 = vmatpush.bf16.msra.mxu0 %v3520
    %3895 = vmatmul.bf16.gmra.mxu0 %v2993
    %v3896 = vpop.f32.mrf.mxu0
    %v3897 = vadd.f32 %v3132, %v3896
    %v3898 = vpop.f32.mrf.mxu0
    %v3899 = vadd.f32 %v3132, %v3898
    %3900 = vdwg.mxu0
    %3901 = vmatpush.bf16.msra.mxu0 %v3550
    %3902 = vmatpush.bf16.msra.mxu0 %v3548
    %3903 = vmatpush.bf16.msra.mxu0 %v3546
    %3904 = vmatpush.bf16.msra.mxu0 %v3544
    %3905 = vmatpush.bf16.msra.mxu0 %v3542
    %3906 = vmatpush.bf16.msra.mxu0 %v3540
    %3907 = vmatpush.bf16.msra.mxu0 %v3538
    %3908 = vmatpush.bf16.msra.mxu0 %v3536
    %3909 = vmatmul.bf16.gmra.mxu0 %v2994
    %v3910 = vpop.f32.mrf.mxu0
    %v3911 = vadd.f32 %v3897, %v3910
    %v3912 = vpop.f32.mrf.mxu0
    %v3913 = vadd.f32 %v3899, %v3912
    %3914 = vdwg.mxu0
    %3915 = vmatpush.bf16.msra.mxu0 %v3566
    %3916 = vmatpush.bf16.msra.mxu0 %v3564
    %3917 = vmatpush.bf16.msra.mxu0 %v3562
    %3918 = vmatpush.bf16.msra.mxu0 %v3560
    %3919 = vmatpush.bf16.msra.mxu0 %v3558
    %3920 = vmatpush.bf16.msra.mxu0 %v3556
    %3921 = vmatpush.bf16.msra.mxu0 %v3554
    %3922 = vmatpush.bf16.msra.mxu0 %v3552
    %3923 = vmatmul.bf16.gmra.mxu0 %v2995
    %v3924 = vpop.f32.mrf.mxu0
    %v3925 = vadd.f32 %v3911, %v3924
    %v3926 = vpop.f32.mrf.mxu0
    %v3927 = vadd.f32 %v3913, %v3926
    %3928 = vdwg.mxu0
    %3929 = vmatpush.bf16.msra.mxu0 %v3582
    %3930 = vmatpush.bf16.msra.mxu0 %v3580
    %3931 = vmatpush.bf16.msra.mxu0 %v3578
    %3932 = vmatpush.bf16.msra.mxu0 %v3576
    %3933 = vmatpush.bf16.msra.mxu0 %v3574
    %3934 = vmatpush.bf16.msra.mxu0 %v3572
    %3935 = vmatpush.bf16.msra.mxu0 %v3570
    %3936 = vmatpush.bf16.msra.mxu0 %v3568
    %3937 = vmatmul.bf16.gmra.mxu0 %v2996
    %v3938 = vpop.f32.mrf.mxu0
    %v3939 = vadd.f32 %v3925, %v3938
    %v3940 = vpop.f32.mrf.mxu0
    %v3941 = vadd.f32 %v3927, %v3940
    %3942 = vdwg.mxu0
    %3943 = vmatpush.bf16.msra.mxu0 %v3598
    %3944 = vmatpush.bf16.msra.mxu0 %v3596
    %3945 = vmatpush.bf16.msra.mxu0 %v3594
    %3946 = vmatpush.bf16.msra.mxu0 %v3592
    %3947 = vmatpush.bf16.msra.mxu0 %v3590
    %3948 = vmatpush.bf16.msra.mxu0 %v3588
    %3949 = vmatpush.bf16.msra.mxu0 %v3586
    %3950 = vmatpush.bf16.msra.mxu0 %v3584
    %3951 = vmatmul.bf16.gmra.mxu0 %v2997
    %v3952 = vpop.f32.mrf.mxu0
    %v3953 = vadd.f32 %v3939, %v3952
    %v3954 = vpop.f32.mrf.mxu0
    %v3955 = vadd.f32 %v3941, %v3954
    %3956 = vdwg.mxu0
    %3957 = vmatpush.bf16.msra.mxu0 %v3614
    %3958 = vmatpush.bf16.msra.mxu0 %v3612
    %3959 = vmatpush.bf16.msra.mxu0 %v3610
    %3960 = vmatpush.bf16.msra.mxu0 %v3608
    %3961 = vmatpush.bf16.msra.mxu0 %v3606
    %3962 = vmatpush.bf16.msra.mxu0 %v3604
    %3963 = vmatpush.bf16.msra.mxu0 %v3602
    %3964 = vmatpush.bf16.msra.mxu0 %v3600
    %3965 = vmatmul.bf16.gmra.mxu0 %v2998
    %v3966 = vpop.f32.mrf.mxu0
    %v3967 = vadd.f32 %v3953, %v3966
    %v3968 = vpop.f32.mrf.mxu0
    %v3969 = vadd.f32 %v3955, %v3968
    %3970 = vdwg.mxu0
    %3971 = vmatpush.bf16.msra.mxu0 %v3630
    %3972 = vmatpush.bf16.msra.mxu0 %v3628
    %3973 = vmatpush.bf16.msra.mxu0 %v3626
    %3974 = vmatpush.bf16.msra.mxu0 %v3624
    %3975 = vmatpush.bf16.msra.mxu0 %v3622
    %3976 = vmatpush.bf16.msra.mxu0 %v3620
    %3977 = vmatpush.bf16.msra.mxu0 %v3618
    %3978 = vmatpush.bf16.msra.mxu0 %v3616
    %3979 = vmatmul.bf16.gmra.mxu0 %v2999
    %v3980 = vpop.f32.mrf.mxu0
    %v3981 = vadd.f32 %v3967, %v3980
    %v3982 = vpop.f32.mrf.mxu0
    %v3983 = vadd.f32 %v3969, %v3982
    %3984 = vdwg.mxu0
    %3985 = vmatpush.bf16.msra.mxu0 %v3646
    %3986 = vmatpush.bf16.msra.mxu0 %v3644
    %3987 = vmatpush.bf16.msra.mxu0 %v3642
    %3988 = vmatpush.bf16.msra.mxu0 %v3640
    %3989 = vmatpush.bf16.msra.mxu0 %v3638
    %3990 = vmatpush.bf16.msra.mxu0 %v3636
    %3991 = vmatpush.bf16.msra.mxu0 %v3634
    %3992 = vmatpush.bf16.msra.mxu0 %v3632
    %3993 = vmatmul.bf16.gmra.mxu0 %v3000
    %v3994 = vpop.f32.mrf.mxu0
    %v3995 = vadd.f32 %v3981, %v3994
    %v3996 = vpop.f32.mrf.mxu0
    %v3997 = vadd.f32 %v3983, %v3996
    %3998 = vdwg.mxu0
    %v3999 = vtanh.pop %v3883
    %v4000 = vtanh.pop %v3995
    %v4001 = vtanh.pop %v3885
    %v4002 = vtanh.pop %v3997
    %4003 = vst [vmem:[#allocation17] sm:$0xff] %v3999
    %4004 = vst [vmem:[#allocation17 + $0x8] sm:$0xff] %v4000
    %4005 = vst [vmem:[#allocation17 + $0x10] sm:$0xff] %v4001
    %4006 = vst [vmem:[#allocation17 + $0x18] sm:$0xff] %v4002
    // Predicated region
    $region82: #{tpu_custom_call.1} parent=1 // pred_check
      _
    $region83: #{tpu_custom_call.1} parent=1 // pred_check_branch
      %4008 = sbr.rel (0) target = $region85
    $region84: #{tpu_custom_call.1} parent=1 // pred_region
      %4010 = vsyncadd [#allocation4], 0
      %s4011 = sshll.u32 [#allocation17], 4
      %s4012 = int_to_ptr.vmem [resolvable:$true] %s4011
      %s4013 = sshll.u32 %s11, 4
      %s4014 = int_to_ptr.hbm [resolvable:$true] %s4013
      %4019 = dma.vmem_to_hbm [thread:$0]  %s4012, 512, %s4014, [#allocation4], 256, 256, 16
    $region85: #{tpu_custom_call.1} parent=1 // pred_fallthru
      _
    // Predicated region
    $region86: #{tpu_custom_call.1} parent=1 // pred_check
      _
    $region87: #{tpu_custom_call.1} parent=1 // pred_check_branch
      %4021 = sbr.rel (0) target = $region89
    $region88: #{tpu_custom_call.1} parent=1 // pred_region
      %4023 = dma.done [#allocation4], 512
    $region89: #{tpu_custom_call.1} parent=1 // pred_fallthru
      _
    %4024 = vsyncpa [#allocation3], 1
    %4025 = vsyncpa [#allocation6], 1
    %4026 = vsyncpa [#allocation9], 1
    %4027 = vsyncpa [#allocation12], 1
    %4028 = vsyncpa [#allocation15], 1
    %4029 = vsyncpa [#allocation4], 1

</llo_original>
